<compile_context>
chip_gen: v5e
topology: v5e:2x2
jax: 0.10.0
libtpu: 0.0.40
codegen_flags: <defaults>
</compile_context>

<pallas_src>
import functools

import jax
import jax.numpy as jnp
from jax.experimental import pallas as pl
from jax.experimental.pallas import tpu as pltpu


def _chip_config():
    """Per-generation (q_tile_target, kv_tile_target, vmem_limit_bytes).

    v5e / v6e: 128 MiB VMEM and lower HBM BW -> big tiles cut K/V re-fetch traffic
    and per-grid-step overhead.  v7x: 64 MiB VMEM per TensorCore -> cap tiles (the
    f32 score/exp temporaries dominate) and get parallelism from the 2 TCs instead.
    """
    try:
        vmem_bytes = pltpu.get_tpu_info().vmem_capacity_bytes
    except Exception:  # non-TPU tracing / older jax: conservative defaults
        vmem_bytes = 64 << 20
    if vmem_bytes >= (96 << 20):          # v5e / v6e class (128 MiB VMEM)
        return 512, 512, 100 << 20
    return 256, 512, 44 << 20              # v7x class (64 MiB VMEM per TC)


def _pick_tile(n, target, dtype):
    """Largest tile <= target dividing n; prefer lane-width (128) multiples, then the
    native sublane multiple for `dtype` (8 for f32, 16 for bf16, 32 for int8/fp8)."""
    gran = max(8, 32 // max(1, jnp.dtype(dtype).itemsize))
    if n <= target:
        return n
    for step in (128, gran):
        t = (target // step) * step
        while t >= step:
            if n % t == 0:
                return t
            t -= step
    # TODO(synk): no nice divisor (prime-ish N) -> full-N block; pad N in the caller
    # for very long awkward sequence lengths.
    return n


# ---------------------------------------------------------------------------
# Fused kernel: QKV projection + flash attention (online softmax) + out-proj
# ---------------------------------------------------------------------------
def _fused_attn_kernel(xq_ref, xk_ref, wq_ref, wkv_ref, wp_ref, b_ref, o_ref,
                       q_scr, m_scr, l_scr, acc_scr, ctx_scr,
                       *, num_heads, head_dim, exp_dtype):
    # xq_ref: (1, TQ, C)   x tile for queries (resident across ki)
    # xk_ref: (1, TK, C)   x tile for keys/values (changes each ki)
    # wq_ref: (H, C, D)    per-head Q weight, attention scale folded in (resident)
    # wkv_ref:(H, C, 2D)   fused per-head K|V weight (resident)
    # wp_ref: (C, C)       output projection (resident); b_ref: (1, C)
    # o_ref:  (1, TQ, C)
    # scratch: q_scr (H,TQ,D) in compute dtype; m/l (H,TQ,1) f32; acc (H,TQ,D) f32;
    #          ctx_scr (TQ, C) f32 (head-concatenated context for the projection).
    ki = pl.program_id(2)
    H, D = num_heads, head_dim
    cdtype = xq_ref.dtype

    @pl.when(ki == 0)
    def _init():
        m_scr[...] = jnp.full(m_scr.shape, -jnp.inf, dtype=m_scr.dtype)
        l_scr[...] = jnp.zeros(l_scr.shape, dtype=l_scr.dtype)
        acc_scr[...] = jnp.zeros(acc_scr.shape, dtype=acc_scr.dtype)
        # Q projection for this q-tile: one batched-over-heads MXU matmul, kept in
        # VMEM for all kv steps (scale is already folded into Wq).
        xq = jnp.broadcast_to(xq_ref[0][None], (H,) + tuple(xq_ref.shape[1:]))
        q_scr[...] = jnp.einsum(
            "htc,hcd->htd", xq, wq_ref[...],
            preferred_element_type=jnp.float32).astype(q_scr.dtype)

    # K/V projection for this kv-tile: fused (C -> 2D) per-head weight -> one batched
    # matmul per step (2x wider MXU output than separate K/V), then a cheap lane split.
    xk = jnp.broadcast_to(xk_ref[0][None], (H,) + tuple(xk_ref.shape[1:]))
    kv = jnp.einsum("htc,hcd->htd", xk, wkv_ref[...],
                    preferred_element_type=jnp.float32).astype(cdtype)   # (H, TK, 2D)
    k = kv[:, :, :D]
    v = kv[:, :, D:]

    # Batched-over-heads scores; contraction over D on the lane dim (no k.T in VMEM).
    s = jnp.einsum("hqd,hkd->hqk", q_scr[...], k,
                   preferred_element_type=jnp.float32)                    # (H, TQ, TK)

    # Online softmax update; running stats stay f32 regardless of exp dtype.
    m_prev = m_scr[...]
    m_new = jnp.maximum(m_prev, jnp.max(s, axis=-1, keepdims=True))
    alpha = jnp.exp(m_prev - m_new)
    # exp_dtype = bf16 when the model runs in bf16 (v6e/v7x bf16 EUP: ~2x exp, and
    # bf16 p is the native MXU input); f32 otherwise (v5e has no bf16 EUP/VPU).
    p = jnp.exp((s - m_new).astype(exp_dtype))
    l_scr[...] = alpha * l_scr[...] + jnp.sum(p.astype(jnp.float32),
                                              axis=-1, keepdims=True)
    acc_scr[...] = alpha * acc_scr[...] + jnp.einsum(
        "hqk,hkd->hqd", p.astype(cdtype), v, preferred_element_type=jnp.float32)
    m_scr[...] = m_new

    @pl.when(ki == pl.num_programs(2) - 1)
    def _finalize():
        # Exact reciprocal: runs once per q-tile, negligible cost, tighter parity.
        inv_l = pl.reciprocal(l_scr[...], approx=False)      # (H, TQ, 1)
        ctx = acc_scr[...] * inv_l                           # (H, TQ, D) f32
        # Assemble the head-concatenated context so the output projection is a SINGLE
        # full-depth (contract C = H*D) MXU matmul instead of H shallow D-deep ones.
        for h in range(H):
            ctx_scr[:, h * D:(h + 1) * D] = ctx[h]
        out = jnp.dot(ctx_scr[...].astype(wp_ref.dtype), wp_ref[...],
                      preferred_element_type=jnp.float32) + b_ref[...]
        o_ref[0] = out.astype(o_ref.dtype)                   # lane-dense (TQ, C) store


def attention_forward(x, w_qkv_t, w_proj_t, b_proj, *, num_heads,
                      q_tile=None, kv_tile=None, exp_dtype=None):
    """CCT Attention forward (eval). x: (B,N,C); w_qkv_t: (C,3C); w_proj_t: (C,C); b_proj: (C,)."""
    B, N, C = x.shape
    H = num_heads
    assert C % H == 0, "dim must be divisible by num_heads"
    D = C // H
    scale = float(D) ** -0.5

    q_target, kv_target, vmem_limit = _chip_config()
    if q_tile is None:
        q_tile = q_target
    if kv_tile is None:
        kv_tile = kv_target
    if exp_dtype is None:
        # bf16 exp path only when the model itself runs in bf16 (keeps f32 parity for
        # f32 models; accumulators are f32 either way).
        exp_dtype = jnp.bfloat16 if x.dtype == jnp.bfloat16 else jnp.float32

    TQ = _pick_tile(N, q_tile, x.dtype)
    TK = _pick_tile(N, kv_tile, x.dtype)
    # Megacore (v7x has 2 TensorCores): keep at least 2 parallel grid steps (b, qi)
    # so a core never idles when B is small.
    if B * (N // TQ) < 2:
        TQ = _pick_tile(N, max(8, N // 2), x.dtype)

    # --- wrapper-side weight restructuring (one-time layout plumbing) -------------
    w3 = w_qkv_t.reshape(C, 3, H, D)
    wq_h = jnp.transpose(w3[:, 0], (1, 0, 2)) * scale        # (H, C, D); scale folded
    wk_h = jnp.transpose(w3[:, 1], (1, 0, 2))                 # (H, C, D)
    wv_h = jnp.transpose(w3[:, 2], (1, 0, 2))                 # (H, C, D)
    wkv_h = jnp.concatenate([wk_h, wv_h], axis=-1)            # (H, C, 2D) fused K|V
    b2 = b_proj.reshape(1, C)

    cparams = pltpu.CompilerParams(
        dimension_semantics=("parallel", "parallel", "arbitrary"),
        vmem_limit_bytes=vmem_limit,
    )

    kernel = functools.partial(_fused_attn_kernel, num_heads=H, head_dim=D,
                               exp_dtype=exp_dtype)
    out = pl.pallas_call(
        kernel,
        out_shape=jax.ShapeDtypeStruct((B, N, C), x.dtype),
        grid_spec=pltpu.PrefetchScalarGridSpec(
            num_scalar_prefetch=0,
            grid=(B, N // TQ, N // TK),
            in_specs=[
                pl.BlockSpec((1, TQ, C), lambda b, qi, ki: (b, qi, 0)),   # x (queries)
                pl.BlockSpec((1, TK, C), lambda b, qi, ki: (b, ki, 0)),   # x (keys/vals)
                pl.BlockSpec((H, C, D), lambda b, qi, ki: (0, 0, 0)),     # Wq (resident)
                pl.BlockSpec((H, C, 2 * D), lambda b, qi, ki: (0, 0, 0)), # Wk|Wv (resident)
                pl.BlockSpec((C, C), lambda b, qi, ki: (0, 0)),           # W_proj (resident)
                pl.BlockSpec((1, C), lambda b, qi, ki: (0, 0)),           # bias (resident)
            ],
            out_specs=pl.BlockSpec((1, TQ, C), lambda b, qi, ki: (b, qi, 0)),
            scratch_shapes=[
                pltpu.VMEM((H, TQ, D), x.dtype),       # projected Q for the q-tile
                pltpu.VMEM((H, TQ, 1), jnp.float32),   # running max
                pltpu.VMEM((H, TQ, 1), jnp.float32),   # running sum
                pltpu.VMEM((H, TQ, D), jnp.float32),   # output accumulator
                pltpu.VMEM((TQ, C), jnp.float32),      # head-concat context for proj
            ],
        ),
        compiler_params=cparams,
    )(x, x, wq_h, wkv_h, w_proj_t, b2)

    return out


def _reference(x, w_qkv_t, w_proj_t, b_proj, num_heads):
    """Plain-JAX mirror of the PyTorch forward (eval mode)."""
    B, N, C = x.shape
    D = C // num_heads
    scale = float(D) ** -0.5
    qkv = x @ w_qkv_t                                                # (B, N, 3C)
    qkv = qkv.reshape(B, N, 3, num_heads, D).transpose(2, 0, 3, 1, 4)
    q, k, v = qkv[0], qkv[1], qkv[2]                                 # (B, H, N, D)
    attn = (q @ jnp.swapaxes(k, -2, -1)) * scale
    attn = jax.nn.softmax(attn, axis=-1)
    ctx = (attn @ v).transpose(0, 2, 1, 3).reshape(B, N, C)
    return ctx @ w_proj_t + b_proj


if __name__ == "__main__":
    B, N, C = 2, 64, 64
    num_heads = 8   # head_dim = 8

    key = jax.random.PRNGKey(0)
    kx, kqkv, kproj, kbias = jax.random.split(key, 4)

    x = jax.random.normal(kx, (B, N, C), dtype=jnp.float32)
    # PyTorch Linear stores (out, in); weights are passed pre-transposed as (in, out).
    w_qkv_t = jax.random.normal(kqkv, (C, 3 * C), dtype=jnp.float32) * 0.05
    w_proj_t = jax.random.normal(kproj, (C, C), dtype=jnp.float32) * 0.05
    b_proj = jax.random.normal(kbias, (C,), dtype=jnp.float32) * 0.01

    # Small tiles so the demo exercises the multi-kv-tile flash path
    # (grid = (B, 2 q-tiles, 2 kv-tiles)); production defaults come from _chip_config.
    out = attention_forward(x, w_qkv_t, w_proj_t, b_proj, num_heads=num_heads,
                            q_tile=32, kv_tile=32)
    out = jax.block_until_ready(out)

    ref = _reference(x, w_qkv_t, w_proj_t, b_proj, num_heads)
    assert out.shape == (B, N, C)
    assert jnp.allclose(out, ref, atol=2e-3, rtol=2e-3), "mismatch vs reference"

    print("KERNEL_OK")
</pallas_src>

<mosaic_0001>
module attributes {stable_mosaic.version = 11 : i64} {
  func.func @_fused_attn_kernel(%arg0: i32, %arg1: i32, %arg2: i32, %arg3: memref<1x32x64xf32, #tpu.memory_space<vmem>>, %arg4: memref<1x32x64xf32, #tpu.memory_space<vmem>>, %arg5: memref<8x64x8xf32, #tpu.memory_space<vmem>>, %arg6: memref<8x64x16xf32, #tpu.memory_space<vmem>>, %arg7: memref<64x64xf32, #tpu.memory_space<vmem>>, %arg8: memref<1x64xf32, #tpu.memory_space<vmem>>, %arg9: memref<1x32x64xf32, #tpu.memory_space<vmem>>, %arg10: memref<8x32x8xf32, #tpu.memory_space<vmem>>, %arg11: memref<8x32x1xf32, #tpu.memory_space<vmem>>, %arg12: memref<8x32x1xf32, #tpu.memory_space<vmem>>, %arg13: memref<8x32x8xf32, #tpu.memory_space<vmem>>, %arg14: memref<32x64xf32, #tpu.memory_space<vmem>>) attributes {dimension_semantics = [#tpu.dimension_semantics<parallel>, #tpu.dimension_semantics<parallel>, #tpu.dimension_semantics<arbitrary>], iteration_bounds = array<i64: 2, 2, 2>, scalar_prefetch = 0 : i64, scratch_operands = 5 : i64, tpu.core_type = #tpu.core_type<tc>, window_params = [{transform_indices = @transform_0, window_bounds = array<i64: 1, 32, 64>}, {transform_indices = @transform_1, window_bounds = array<i64: 1, 32, 64>}, {pipeline_mode = #tpu.pipeline_mode<synchronous>, transform_indices = @transform_2, window_bounds = array<i64: 8, 64, 8>}, {pipeline_mode = #tpu.pipeline_mode<synchronous>, transform_indices = @transform_3, window_bounds = array<i64: 8, 64, 16>}, {pipeline_mode = #tpu.pipeline_mode<synchronous>, transform_indices = @transform_4, window_bounds = array<i64: 64, 64>}, {pipeline_mode = #tpu.pipeline_mode<synchronous>, transform_indices = @transform_5, window_bounds = array<i64: 1, 64>}, {transform_indices = @transform_6, window_bounds = array<i64: 1, 32, 64>}]} {
    %c0_i32 = arith.constant 0 : i32
    %0 = arith.cmpi eq, %arg2, %c0_i32 : i32
    %1 = arith.extui %0 : i1 to i32
    %c0_i32_0 = arith.constant 0 : i32
    %2 = arith.cmpi ne, %1, %c0_i32_0 : i32
    scf.if %2 {
      %cst_32 = arith.constant 0xFF800000 : f32
      %39 = vector.broadcast %cst_32 : f32 to vector<8x32x1xf32>
      %c0_33 = arith.constant 0 : index
      %c0_34 = arith.constant 0 : index
      %c0_35 = arith.constant 0 : index
      %40 = vector.load %arg11[%c0_33, %c0_34, %c0_35] : memref<8x32x1xf32, #tpu.memory_space<vmem>>, vector<8x32x1xf32>
      tpu.vector_store %arg11[%c0_33, %c0_34, %c0_35], %39 {strides = array<i32>} : memref<8x32x1xf32, #tpu.memory_space<vmem>>, vector<8x32x1xf32>,
      %cst_36 = arith.constant 0.000000e+00 : f32
      %41 = vector.broadcast %cst_36 : f32 to vector<8x32x1xf32>
      %c0_37 = arith.constant 0 : index
      %c0_38 = arith.constant 0 : index
      %c0_39 = arith.constant 0 : index
      %42 = vector.load %arg12[%c0_37, %c0_38, %c0_39] : memref<8x32x1xf32, #tpu.memory_space<vmem>>, vector<8x32x1xf32>
      tpu.vector_store %arg12[%c0_37, %c0_38, %c0_39], %41 {strides = array<i32>} : memref<8x32x1xf32, #tpu.memory_space<vmem>>, vector<8x32x1xf32>,
      %cst_40 = arith.constant 0.000000e+00 : f32
      %43 = vector.broadcast %cst_40 : f32 to vector<8x32x8xf32>
      %c0_41 = arith.constant 0 : index
      %c0_42 = arith.constant 0 : index
      %c0_43 = arith.constant 0 : index
      %44 = vector.load %arg13[%c0_41, %c0_42, %c0_43] : memref<8x32x8xf32, #tpu.memory_space<vmem>>, vector<8x32x8xf32>
      tpu.vector_store %arg13[%c0_41, %c0_42, %c0_43], %43 {strides = array<i32>} : memref<8x32x8xf32, #tpu.memory_space<vmem>>, vector<8x32x8xf32>,
      %c0_44 = arith.constant 0 : index
      %c0_45 = arith.constant 0 : index
      %c0_46 = arith.constant 0 : index
      %45 = vector.load %arg3[%c0_44, %c0_45, %c0_46] : memref<1x32x64xf32, #tpu.memory_space<vmem>>, vector<1x32x64xf32>
      %46 = vector.shape_cast %45 : vector<1x32x64xf32> to vector<32x64xf32>
      %47 = vector.shape_cast %46 : vector<32x64xf32> to vector<1x32x64xf32>
      %48 = vector.shape_cast %47 : vector<1x32x64xf32> to vector<1x32x64xf32>
      %49 = vector.broadcast %48 : vector<1x32x64xf32> to vector<8x32x64xf32>
      %c0_47 = arith.constant 0 : index
      %c0_48 = arith.constant 0 : index
      %c0_49 = arith.constant 0 : index
      %50 = vector.load %arg5[%c0_47, %c0_48, %c0_49] : memref<8x64x8xf32, #tpu.memory_space<vmem>>, vector<8x64x8xf32>
      "tpu.trace_start"() <{level = 10 : i32, message = "htc,hcd->htd"}> : () -> ()
      %cst_50 = arith.constant dense<0.000000e+00> : vector<8x32x8xf32>
      %51 = tpu.matmul %49, %50, %cst_50 {dimension_numbers = #tpu.dot_dimension_numbers<[2], [1], [1], [2], [0, 0, 0, 1, 1, 2], [0], [0]>} : vector<8x32x64xf32>, vector<8x64x8xf32>, vector<8x32x8xf32> -> vector<8x32x8xf32>
      "tpu.trace_stop"() : () -> ()
      %c0_51 = arith.constant 0 : index
      %c0_52 = arith.constant 0 : index
      %c0_53 = arith.constant 0 : index
      %52 = vector.load %arg10[%c0_51, %c0_52, %c0_53] : memref<8x32x8xf32, #tpu.memory_space<vmem>>, vector<8x32x8xf32>
      tpu.vector_store %arg10[%c0_51, %c0_52, %c0_53], %51 {strides = array<i32>} : memref<8x32x8xf32, #tpu.memory_space<vmem>>, vector<8x32x8xf32>,
    } else {
    }
    %c0 = arith.constant 0 : index
    %c0_1 = arith.constant 0 : index
    %c0_2 = arith.constant 0 : index
    %3 = vector.load %arg4[%c0, %c0_1, %c0_2] : memref<1x32x64xf32, #tpu.memory_space<vmem>>, vector<1x32x64xf32>
    %4 = vector.shape_cast %3 : vector<1x32x64xf32> to vector<32x64xf32>
    %5 = vector.shape_cast %4 : vector<32x64xf32> to vector<1x32x64xf32>
    %6 = vector.shape_cast %5 : vector<1x32x64xf32> to vector<1x32x64xf32>
    %7 = vector.broadcast %6 : vector<1x32x64xf32> to vector<8x32x64xf32>
    %c0_3 = arith.constant 0 : index
    %c0_4 = arith.constant 0 : index
    %c0_5 = arith.constant 0 : index
    %8 = vector.load %arg6[%c0_3, %c0_4, %c0_5] : memref<8x64x16xf32, #tpu.memory_space<vmem>>, vector<8x64x16xf32>
    "tpu.trace_start"() <{level = 10 : i32, message = "htc,hcd->htd"}> : () -> ()
    %cst = arith.constant dense<0.000000e+00> : vector<8x32x16xf32>
    %9 = tpu.matmul %7, %8, %cst {dimension_numbers = #tpu.dot_dimension_numbers<[2], [1], [1], [2], [0, 0, 0, 1, 1, 2], [0], [0]>} : vector<8x32x64xf32>, vector<8x64x16xf32>, vector<8x32x16xf32> -> vector<8x32x16xf32>
    "tpu.trace_stop"() : () -> ()
    %10 = vector.extract_strided_slice %9 {offsets = [0, 0, 0], sizes = [8, 32, 8], strides = [1, 1, 1]} : vector<8x32x16xf32> to vector<8x32x8xf32>
    %11 = vector.extract_strided_slice %9 {offsets = [0, 0, 8], sizes = [8, 32, 8], strides = [1, 1, 1]} : vector<8x32x16xf32> to vector<8x32x8xf32>
    %c0_6 = arith.constant 0 : index
    %c0_7 = arith.constant 0 : index
    %c0_8 = arith.constant 0 : index
    %12 = vector.load %arg10[%c0_6, %c0_7, %c0_8] : memref<8x32x8xf32, #tpu.memory_space<vmem>>, vector<8x32x8xf32>
    "tpu.trace_start"() <{level = 10 : i32, message = "hqd,hkd->hqk"}> : () -> ()
    %cst_9 = arith.constant dense<0.000000e+00> : vector<8x32x32xf32>
    %13 = tpu.matmul %12, %10, %cst_9 {dimension_numbers = #tpu.dot_dimension_numbers<[2], [2], [1], [1], [0, 0, 0, 1, 1, 1], [0], [0]>} : vector<8x32x8xf32>, vector<8x32x8xf32>, vector<8x32x32xf32> -> vector<8x32x32xf32>
    "tpu.trace_stop"() : () -> ()
    %c0_10 = arith.constant 0 : index
    %c0_11 = arith.constant 0 : index
    %c0_12 = arith.constant 0 : index
    %14 = vector.load %arg11[%c0_10, %c0_11, %c0_12] : memref<8x32x1xf32, #tpu.memory_space<vmem>>, vector<8x32x1xf32>
    %cst_13 = arith.constant dense<0xFF800000> : vector<8x32xf32>
    %15 = vector.multi_reduction <maximumf>, %13, %cst_13 [2] : vector<8x32x32xf32> to vector<8x32xf32>
    %16 = vector.shape_cast %15 : vector<8x32xf32> to vector<8x32x1xf32>
    %17 = arith.maximumf %14, %16 : vector<8x32x1xf32>
    %18 = arith.subf %14, %17 : vector<8x32x1xf32>
    %19 = math.exp %18 : vector<8x32x1xf32>
    %20 = vector.broadcast %17 : vector<8x32x1xf32> to vector<8x32x32xf32>
    %21 = arith.subf %13, %20 : vector<8x32x32xf32>
    %22 = math.exp %21 : vector<8x32x32xf32>
    %c0_14 = arith.constant 0 : index
    %c0_15 = arith.constant 0 : index
    %c0_16 = arith.constant 0 : index
    %23 = vector.load %arg12[%c0_14, %c0_15, %c0_16] : memref<8x32x1xf32, #tpu.memory_space<vmem>>, vector<8x32x1xf32>
    %24 = arith.mulf %19, %23 : vector<8x32x1xf32>
    %cst_17 = arith.constant dense<0.000000e+00> : vector<8x32xf32>
    %25 = vector.multi_reduction <add>, %22, %cst_17 [2] : vector<8x32x32xf32> to vector<8x32xf32>
    %26 = vector.shape_cast %25 : vector<8x32xf32> to vector<8x32x1xf32>
    %27 = arith.addf %24, %26 : vector<8x32x1xf32>
    %c0_18 = arith.constant 0 : index
    %c0_19 = arith.constant 0 : index
    %c0_20 = arith.constant 0 : index
    %28 = vector.load %arg12[%c0_18, %c0_19, %c0_20] : memref<8x32x1xf32, #tpu.memory_space<vmem>>, vector<8x32x1xf32>
    tpu.vector_store %arg12[%c0_18, %c0_19, %c0_20], %27 {strides = array<i32>} : memref<8x32x1xf32, #tpu.memory_space<vmem>>, vector<8x32x1xf32>,
    %c0_21 = arith.constant 0 : index
    %c0_22 = arith.constant 0 : index
    %c0_23 = arith.constant 0 : index
    %29 = vector.load %arg13[%c0_21, %c0_22, %c0_23] : memref<8x32x8xf32, #tpu.memory_space<vmem>>, vector<8x32x8xf32>
    %30 = vector.broadcast %19 : vector<8x32x1xf32> to vector<8x32x8xf32>
    %31 = arith.mulf %30, %29 : vector<8x32x8xf32>
    "tpu.trace_start"() <{level = 10 : i32, message = "hqk,hkd->hqd"}> : () -> ()
    %cst_24 = arith.constant dense<0.000000e+00> : vector<8x32x8xf32>
    %32 = tpu.matmul %22, %11, %cst_24 {dimension_numbers = #tpu.dot_dimension_numbers<[2], [1], [1], [2], [0, 0, 0, 1, 1, 2], [0], [0]>} : vector<8x32x32xf32>, vector<8x32x8xf32>, vector<8x32x8xf32> -> vector<8x32x8xf32>
    "tpu.trace_stop"() : () -> ()
    %33 = arith.addf %31, %32 : vector<8x32x8xf32>
    %c0_25 = arith.constant 0 : index
    %c0_26 = arith.constant 0 : index
    %c0_27 = arith.constant 0 : index
    %34 = vector.load %arg13[%c0_25, %c0_26, %c0_27] : memref<8x32x8xf32, #tpu.memory_space<vmem>>, vector<8x32x8xf32>
    tpu.vector_store %arg13[%c0_25, %c0_26, %c0_27], %33 {strides = array<i32>} : memref<8x32x8xf32, #tpu.memory_space<vmem>>, vector<8x32x8xf32>,
    %c0_28 = arith.constant 0 : index
    %c0_29 = arith.constant 0 : index
    %c0_30 = arith.constant 0 : index
    %35 = vector.load %arg11[%c0_28, %c0_29, %c0_30] : memref<8x32x1xf32, #tpu.memory_space<vmem>>, vector<8x32x1xf32>
    tpu.vector_store %arg11[%c0_28, %c0_29, %c0_30], %17 {strides = array<i32>} : memref<8x32x1xf32, #tpu.memory_space<vmem>>, vector<8x32x1xf32>,
    %c1_i32 = arith.constant 1 : i32
    %36 = arith.cmpi eq, %arg2, %c1_i32 : i32
    %37 = arith.extui %36 : i1 to i32
    %c0_i32_31 = arith.constant 0 : i32
    %38 = arith.cmpi ne, %37, %c0_i32_31 : i32
    scf.if %38 {
      %c0_32 = arith.constant 0 : index
      %c0_33 = arith.constant 0 : index
      %c0_34 = arith.constant 0 : index
      %39 = vector.load %arg12[%c0_32, %c0_33, %c0_34] : memref<8x32x1xf32, #tpu.memory_space<vmem>>, vector<8x32x1xf32>
      %40 = tpu.reciprocal %39 : vector<8x32x1xf32> -> vector<8x32x1xf32>
      %c0_35 = arith.constant 0 : index
      %c0_36 = arith.constant 0 : index
      %c0_37 = arith.constant 0 : index
      %41 = vector.load %arg13[%c0_35, %c0_36, %c0_37] : memref<8x32x8xf32, #tpu.memory_space<vmem>>, vector<8x32x8xf32>
      %42 = vector.broadcast %40 : vector<8x32x1xf32> to vector<8x32x8xf32>
      %43 = arith.mulf %41, %42 : vector<8x32x8xf32>
      %44 = vector.extract_strided_slice %43 {offsets = [0, 0, 0], sizes = [1, 32, 8], strides = [1, 1, 1]} : vector<8x32x8xf32> to vector<1x32x8xf32>
      %45 = vector.shape_cast %44 : vector<1x32x8xf32> to vector<32x8xf32>
      %c0_38 = arith.constant 0 : index
      %c0_39 = arith.constant 0 : index
      %46 = vector.load %arg14[%c0_38, %c0_39] : memref<32x64xf32, #tpu.memory_space<vmem>>, vector<32x8xf32>
      tpu.vector_store %arg14[%c0_38, %c0_39], %45 {strides = array<i32>} : memref<32x64xf32, #tpu.memory_space<vmem>>, vector<32x8xf32>,
      %47 = vector.extract_strided_slice %43 {offsets = [1, 0, 0], sizes = [1, 32, 8], strides = [1, 1, 1]} : vector<8x32x8xf32> to vector<1x32x8xf32>
      %48 = vector.shape_cast %47 : vector<1x32x8xf32> to vector<32x8xf32>
      %c0_40 = arith.constant 0 : index
      %c8 = arith.constant 8 : index
      %49 = vector.load %arg14[%c0_40, %c8] : memref<32x64xf32, #tpu.memory_space<vmem>>, vector<32x8xf32>
      tpu.vector_store %arg14[%c0_40, %c8], %48 {strides = array<i32>} : memref<32x64xf32, #tpu.memory_space<vmem>>, vector<32x8xf32>,
      %50 = vector.extract_strided_slice %43 {offsets = [2, 0, 0], sizes = [1, 32, 8], strides = [1, 1, 1]} : vector<8x32x8xf32> to vector<1x32x8xf32>
      %51 = vector.shape_cast %50 : vector<1x32x8xf32> to vector<32x8xf32>
      %c0_41 = arith.constant 0 : index
      %c16 = arith.constant 16 : index
      %52 = vector.load %arg14[%c0_41, %c16] : memref<32x64xf32, #tpu.memory_space<vmem>>, vector<32x8xf32>
      tpu.vector_store %arg14[%c0_41, %c16], %51 {strides = array<i32>} : memref<32x64xf32, #tpu.memory_space<vmem>>, vector<32x8xf32>,
      %53 = vector.extract_strided_slice %43 {offsets = [3, 0, 0], sizes = [1, 32, 8], strides = [1, 1, 1]} : vector<8x32x8xf32> to vector<1x32x8xf32>
      %54 = vector.shape_cast %53 : vector<1x32x8xf32> to vector<32x8xf32>
      %c0_42 = arith.constant 0 : index
      %c24 = arith.constant 24 : index
      %55 = vector.load %arg14[%c0_42, %c24] : memref<32x64xf32, #tpu.memory_space<vmem>>, vector<32x8xf32>
      tpu.vector_store %arg14[%c0_42, %c24], %54 {strides = array<i32>} : memref<32x64xf32, #tpu.memory_space<vmem>>, vector<32x8xf32>,
      %56 = vector.extract_strided_slice %43 {offsets = [4, 0, 0], sizes = [1, 32, 8], strides = [1, 1, 1]} : vector<8x32x8xf32> to vector<1x32x8xf32>
      %57 = vector.shape_cast %56 : vector<1x32x8xf32> to vector<32x8xf32>
      %c0_43 = arith.constant 0 : index
      %c32 = arith.constant 32 : index
      %58 = vector.load %arg14[%c0_43, %c32] : memref<32x64xf32, #tpu.memory_space<vmem>>, vector<32x8xf32>
      tpu.vector_store %arg14[%c0_43, %c32], %57 {strides = array<i32>} : memref<32x64xf32, #tpu.memory_space<vmem>>, vector<32x8xf32>,
      %59 = vector.extract_strided_slice %43 {offsets = [5, 0, 0], sizes = [1, 32, 8], strides = [1, 1, 1]} : vector<8x32x8xf32> to vector<1x32x8xf32>
      %60 = vector.shape_cast %59 : vector<1x32x8xf32> to vector<32x8xf32>
      %c0_44 = arith.constant 0 : index
      %c40 = arith.constant 40 : index
      %61 = vector.load %arg14[%c0_44, %c40] : memref<32x64xf32, #tpu.memory_space<vmem>>, vector<32x8xf32>
      tpu.vector_store %arg14[%c0_44, %c40], %60 {strides = array<i32>} : memref<32x64xf32, #tpu.memory_space<vmem>>, vector<32x8xf32>,
      %62 = vector.extract_strided_slice %43 {offsets = [6, 0, 0], sizes = [1, 32, 8], strides = [1, 1, 1]} : vector<8x32x8xf32> to vector<1x32x8xf32>
      %63 = vector.shape_cast %62 : vector<1x32x8xf32> to vector<32x8xf32>
      %c0_45 = arith.constant 0 : index
      %c48 = arith.constant 48 : index
      %64 = vector.load %arg14[%c0_45, %c48] : memref<32x64xf32, #tpu.memory_space<vmem>>, vector<32x8xf32>
      tpu.vector_store %arg14[%c0_45, %c48], %63 {strides = array<i32>} : memref<32x64xf32, #tpu.memory_space<vmem>>, vector<32x8xf32>,
      %65 = vector.extract_strided_slice %43 {offsets = [7, 0, 0], sizes = [1, 32, 8], strides = [1, 1, 1]} : vector<8x32x8xf32> to vector<1x32x8xf32>
      %66 = vector.shape_cast %65 : vector<1x32x8xf32> to vector<32x8xf32>
      %c0_46 = arith.constant 0 : index
      %c56 = arith.constant 56 : index
      %67 = vector.load %arg14[%c0_46, %c56] : memref<32x64xf32, #tpu.memory_space<vmem>>, vector<32x8xf32>
      tpu.vector_store %arg14[%c0_46, %c56], %66 {strides = array<i32>} : memref<32x64xf32, #tpu.memory_space<vmem>>, vector<32x8xf32>,
      %c0_47 = arith.constant 0 : index
      %c0_48 = arith.constant 0 : index
      %68 = vector.load %arg14[%c0_47, %c0_48] : memref<32x64xf32, #tpu.memory_space<vmem>>, vector<32x64xf32>
      %c0_49 = arith.constant 0 : index
      %c0_50 = arith.constant 0 : index
      %69 = vector.load %arg7[%c0_49, %c0_50] : memref<64x64xf32, #tpu.memory_space<vmem>>, vector<64x64xf32>
      %cst_51 = arith.constant dense<0.000000e+00> : vector<32x64xf32>
      %70 = tpu.matmul %68, %69, %cst_51 {dimension_numbers = #tpu.dot_dimension_numbers<[1], [0], [0], [1], [0, 0, 1, 1], [], []>} : vector<32x64xf32>, vector<64x64xf32>, vector<32x64xf32> -> vector<32x64xf32>
      %c0_52 = arith.constant 0 : index
      %c0_53 = arith.constant 0 : index
      %71 = vector.load %arg8[%c0_52, %c0_53] : memref<1x64xf32, #tpu.memory_space<vmem>>, vector<1x64xf32>
      %72 = vector.broadcast %71 : vector<1x64xf32> to vector<32x64xf32>
      %73 = arith.addf %70, %72 : vector<32x64xf32>
      %c0_54 = arith.constant 0 : index
      %c0_55 = arith.constant 0 : index
      %c0_56 = arith.constant 0 : index
      %74 = vector.load %arg9[%c0_54, %c0_55, %c0_56] : memref<1x32x64xf32, #tpu.memory_space<vmem>>, vector<1x32x64xf32>
      %75 = vector.shape_cast %74 : vector<1x32x64xf32> to vector<32x64xf32>
      %76 = vector.shape_cast %73 : vector<32x64xf32> to vector<1x32x64xf32>
      tpu.vector_store %arg9[%c0_54, %c0_55, %c0_56], %76 {strides = array<i32>} : memref<1x32x64xf32, #tpu.memory_space<vmem>>, vector<1x32x64xf32>,
    } else {
    }
    return
  }
  func.func @transform_0(%arg0: i32, %arg1: i32, %arg2: i32) -> (i32, i32, i32) {
    %c0_i32 = arith.constant 0 : i32
    %c0_i32_0 = arith.constant 0 : i32
    return %arg0, %arg1, %c0_i32 : i32, i32, i32
  }
  func.func @transform_1(%arg0: i32, %arg1: i32, %arg2: i32) -> (i32, i32, i32) {
    %c0_i32 = arith.constant 0 : i32
    %c0_i32_0 = arith.constant 0 : i32
    return %arg0, %arg2, %c0_i32 : i32, i32, i32
  }
  func.func @transform_2(%arg0: i32, %arg1: i32, %arg2: i32) -> (i32, i32, i32) {
    %c0_i32 = arith.constant 0 : i32
    %c0_i32_0 = arith.constant 0 : i32
    %c0_i32_1 = arith.constant 0 : i32
    %c0_i32_2 = arith.constant 0 : i32
    return %c0_i32, %c0_i32_0, %c0_i32_1 : i32, i32, i32
  }
  func.func @transform_3(%arg0: i32, %arg1: i32, %arg2: i32) -> (i32, i32, i32) {
    %c0_i32 = arith.constant 0 : i32
    %c0_i32_0 = arith.constant 0 : i32
    %c0_i32_1 = arith.constant 0 : i32
    %c0_i32_2 = arith.constant 0 : i32
    return %c0_i32, %c0_i32_0, %c0_i32_1 : i32, i32, i32
  }
  func.func @transform_4(%arg0: i32, %arg1: i32, %arg2: i32) -> (i32, i32) {
    %c0_i32 = arith.constant 0 : i32
    %c0_i32_0 = arith.constant 0 : i32
    %c0_i32_1 = arith.constant 0 : i32
    return %c0_i32, %c0_i32_0 : i32, i32
  }
  func.func @transform_5(%arg0: i32, %arg1: i32, %arg2: i32) -> (i32, i32) {
    %c0_i32 = arith.constant 0 : i32
    %c0_i32_0 = arith.constant 0 : i32
    %c0_i32_1 = arith.constant 0 : i32
    return %c0_i32, %c0_i32_0 : i32, i32
  }
  func.func @transform_6(%arg0: i32, %arg1: i32, %arg2: i32) -> (i32, i32, i32) {
    %c0_i32 = arith.constant 0 : i32
    %c0_i32_0 = arith.constant 0 : i32
    return %arg0, %arg1, %c0_i32 : i32, i32, i32
  }
}

</mosaic_0001>

<llo_original>
// kernel: tpu_custom_call.1
$region0: #{tpu_custom_call.1}
  #allocation0 [shape = 'u32[]', space=smem, size = 0x4, offset = 0x4, fixed_abs, tag = 'smem constant byte address 0x4 - core index']
  #allocation1 [shape = 'u32[72,128]{1,0:T(1,128)}', space=vmem, size = 0x9000, scoped, tag = 'internal scratch']
  #allocation2 [shape = 'f32[8,32,8]{2,1,0:T(8,128)}', space=vmem, size = 0x20000, scoped, tag = 'scratch operand']
  #allocation3 [shape = 'f32[8,32,1]{2,1,0:T(8,128)}', space=vmem, size = 0x20000, scoped, tag = 'scratch operand']
  #allocation4 [shape = 'f32[8,32,1]{2,1,0:T(8,128)}', space=vmem, size = 0x20000, scoped, tag = 'scratch operand']
  #allocation5 [shape = 'f32[8,32,8]{2,1,0:T(8,128)}', space=vmem, size = 0x20000, scoped, tag = 'scratch operand']
  #allocation6 [shape = 'f32[32,64]{1,0:T(8,128)}', space=vmem, size = 0x4000, scoped, tag = 'scratch operand']
  %s0 = inlined_call_operand.vmem [shape: f32[2,64,64], index: 0, kind: input, shape index: {}]
  %s1 = inlined_call_operand.vmem [shape: f32[2,64,64], index: 1, kind: input, shape index: {}]
  %s2 = inlined_call_operand.vmem [shape: f32[8,64,8], index: 2, kind: input, shape index: {}]
  %s3 = inlined_call_operand.vmem [shape: f32[8,64,16], index: 3, kind: input, shape index: {}]
  %s4 = inlined_call_operand.vmem [shape: f32[64,64], index: 4, kind: input, shape index: {}]
  %s5 = inlined_call_operand.vmem [shape: f32[1,64], index: 5, kind: input, shape index: {}]
  %s6 = inlined_call_operand.hbm [shape: f32[2,64,64], index: 6, kind: output, shape index: {}]
  %s7 = sld [smem:[#allocation0]]
  $region65: #{tpu_custom_call.1} parent=0
    _
  %s9 = ssub.s32 1, %s7
  %s10 = scalar_select 0, %s9, %s7
  $region1: #{tpu_custom_call.1} parent=0
    #allocation7 [shape = 'u8[32768]{0}', space=vmem, size = 0x8000, scoped, tag = 'output window, operand 0']
    #allocation8 [shape = 's32[2]{0}', space=sflag, size = 0x8, scoped, tag = 'scoped memory for tpu_custom_call.1']
    %11 = vsyncpa [#allocation8], 0
    %s12 = scalar_lea.sflag [#allocation8], 1
    %13 = vsyncpa %s12, 0
    loop: start=0, step=1, limit=10
    $region2: #{tpu_custom_call.1} parent=1 // loop_pre_header
      _
    $region3: #{tpu_custom_call.1} parent=1 // loop_header
      %s15 = sphi 0, %s19
      %p16 = scmp.ge.s32.totalorder %s15, 10
      %s22 = sphi 0, %s41
      %s23 = sphi 0, %s37
      %s24 = sphi 0, %s33
      %s25 = sphi 0, %s22
      %s26 = sphi 0, %s23
      %s27 = sphi 0, %s24
      %s28 = sphi 0, %s25
      %s29 = sphi 0, %s26
      %s30 = sphi 0, %s27
      %s46 = sphi 0, %s48
      %s49 = sphi 0, %s46
      %s50 = sphi 0, %s49
      %s66 = sphi 0, %s50
      %s74 = sphi 0, %s76
      %s77 = sphi 0, %s74
      %s78 = sphi 0, %s77
      %s94 = sphi 0, %s78
      %s98 = sphi 0, %s98
      %s100 = sphi 0, %s98
      %s101 = sphi 0, %s100
      %s115 = sphi 0, %s101
      %s119 = sphi 0, %s119
      %s121 = sphi 0, %s119
      %s122 = sphi 0, %s121
      %s136 = sphi 0, %s122
      %s140 = sphi 0, %s140
      %s142 = sphi 0, %s140
      %s143 = sphi 0, %s142
      %s157 = sphi 0, %s143
      %s161 = sphi 0, %s161
      %s163 = sphi 0, %s161
      %s164 = sphi 0, %s163
      %s178 = sphi 0, %s164
      %s186 = sphi 0, %s188
      %s189 = sphi 0, %s186
      %s190 = sphi 0, %s189
      %s206 = sphi 0, %s190
    $region4: #{tpu_custom_call.1} parent=1 // loop_header_branch
      %18 = sbr.rel (%p16) target = $region8
    $region5: #{tpu_custom_call.1} parent=1 // loop_body
      %s20 = ssub.s32 %s15, 1
      %s21 = ssub.s32 %s15, 2
      %s31 = sadd.s32 1, %s24
      %p32 = scmp.ge.s32.totalorder %s31, 2
      %s33 = scalar_select %p32, 0, %s31
      %s34 = sadd.s32 1, %s23
      %s35 = scalar_select %p32, %s34, %s23
      %p36 = scmp.ge.s32.totalorder %s35, 2
      %s37 = scalar_select %p36, 0, %s35
      %s38 = sadd.s32 1, %s22
      %s39 = scalar_select %p36, %s38, %s22
      %p40 = scmp.ge.s32.totalorder %s39, 2
      %s41 = scalar_select %p40, 0, %s39
      %s42 = ssub.s32 %s22, %s41
      %s43 = ssub.s32 %s23, %s37
      %s44 = sor.u32 %s42, %s43
      %p45 = scmp.eq.s32.totalorder %s44, 0
      %s47 = sadd.s32 %s46, 1
      %s48 = scalar_select %p45, %s46, %s47
      %p51 = pneg %p45
      %p52 = scmp.eq.s32.totalorder %s15, 7
      %p53 = por %p51, %p52
      %p54 = scmp.ne.s32.totalorder %s46, %s49
      %p55 = scmp.eq.s32.totalorder %s15, 0
      %p56 = por %p54, %p55
      %p57 = scmp.ne.s32.totalorder %s46, %s49
      %p58 = scmp.eq.s32.totalorder %s20, 7
      %p59 = por %p57, %p58
      %p60 = scmp.ne.s32.totalorder %s49, %s50
      %p61 = scmp.eq.s32.totalorder %s20, 0
      %p62 = por %p60, %p61
      %p63 = scmp.ne.s32.totalorder %s49, %s50
      %p64 = scmp.eq.s32.totalorder %s21, 7
      %p65 = por %p63, %p64
      %p67 = scmp.ne.s32.totalorder %s50, %s66
      %p68 = scmp.eq.s32.totalorder %s21, 0
      %p69 = por %p67, %p68
      %s70 = ssub.s32 %s22, %s41
      %s71 = ssub.s32 %s24, %s33
      %s72 = sor.u32 %s70, %s71
      %p73 = scmp.eq.s32.totalorder %s72, 0
      %s75 = sadd.s32 %s74, 1
      %s76 = scalar_select %p73, %s74, %s75
      %p79 = pneg %p73
      %p80 = scmp.eq.s32.totalorder %s15, 7
      %p81 = por %p79, %p80
      %p82 = scmp.ne.s32.totalorder %s74, %s77
      %p83 = scmp.eq.s32.totalorder %s15, 0
      %p84 = por %p82, %p83
      %p85 = scmp.ne.s32.totalorder %s74, %s77
      %p86 = scmp.eq.s32.totalorder %s20, 7
      %p87 = por %p85, %p86
      %p88 = scmp.ne.s32.totalorder %s77, %s78
      %p89 = scmp.eq.s32.totalorder %s20, 0
      %p90 = por %p88, %p89
      %p91 = scmp.ne.s32.totalorder %s77, %s78
      %p92 = scmp.eq.s32.totalorder %s21, 7
      %p93 = por %p91, %p92
      %p95 = scmp.ne.s32.totalorder %s78, %s94
      %p96 = scmp.eq.s32.totalorder %s21, 0
      %p97 = por %p95, %p96
      %s99 = sadd.s32 %s98, 1
      %p102 = scmp.eq.s32.totalorder %s15, 7
      %p103 = scmp.ne.s32.totalorder %s98, %s100
      %p104 = scmp.eq.s32.totalorder %s15, 0
      %p105 = por %p103, %p104
      %p106 = scmp.ne.s32.totalorder %s98, %s100
      %p107 = scmp.eq.s32.totalorder %s20, 7
      %p108 = por %p106, %p107
      %p109 = scmp.ne.s32.totalorder %s100, %s101
      %p110 = scmp.eq.s32.totalorder %s20, 0
      %p111 = por %p109, %p110
      %p112 = scmp.ne.s32.totalorder %s100, %s101
      %p113 = scmp.eq.s32.totalorder %s21, 7
      %p114 = por %p112, %p113
      %p116 = scmp.ne.s32.totalorder %s101, %s115
      %p117 = scmp.eq.s32.totalorder %s21, 0
      %p118 = por %p116, %p117
      %s120 = sadd.s32 %s119, 1
      %p123 = scmp.eq.s32.totalorder %s15, 7
      %p124 = scmp.ne.s32.totalorder %s119, %s121
      %p125 = scmp.eq.s32.totalorder %s15, 0
      %p126 = por %p124, %p125
      %p127 = scmp.ne.s32.totalorder %s119, %s121
      %p128 = scmp.eq.s32.totalorder %s20, 7
      %p129 = por %p127, %p128
      %p130 = scmp.ne.s32.totalorder %s121, %s122
      %p131 = scmp.eq.s32.totalorder %s20, 0
      %p132 = por %p130, %p131
      %p133 = scmp.ne.s32.totalorder %s121, %s122
      %p134 = scmp.eq.s32.totalorder %s21, 7
      %p135 = por %p133, %p134
      %p137 = scmp.ne.s32.totalorder %s122, %s136
      %p138 = scmp.eq.s32.totalorder %s21, 0
      %p139 = por %p137, %p138
      %s141 = sadd.s32 %s140, 1
      %p144 = scmp.eq.s32.totalorder %s15, 7
      %p145 = scmp.ne.s32.totalorder %s140, %s142
      %p146 = scmp.eq.s32.totalorder %s15, 0
      %p147 = por %p145, %p146
      %p148 = scmp.ne.s32.totalorder %s140, %s142
      %p149 = scmp.eq.s32.totalorder %s20, 7
      %p150 = por %p148, %p149
      %p151 = scmp.ne.s32.totalorder %s142, %s143
      %p152 = scmp.eq.s32.totalorder %s20, 0
      %p153 = por %p151, %p152
      %p154 = scmp.ne.s32.totalorder %s142, %s143
      %p155 = scmp.eq.s32.totalorder %s21, 7
      %p156 = por %p154, %p155
      %p158 = scmp.ne.s32.totalorder %s143, %s157
      %p159 = scmp.eq.s32.totalorder %s21, 0
      %p160 = por %p158, %p159
      %s162 = sadd.s32 %s161, 1
      %p165 = scmp.eq.s32.totalorder %s15, 7
      %p166 = scmp.ne.s32.totalorder %s161, %s163
      %p167 = scmp.eq.s32.totalorder %s15, 0
      %p168 = por %p166, %p167
      %p169 = scmp.ne.s32.totalorder %s161, %s163
      %p170 = scmp.eq.s32.totalorder %s20, 7
      %p171 = por %p169, %p170
      %p172 = scmp.ne.s32.totalorder %s163, %s164
      %p173 = scmp.eq.s32.totalorder %s20, 0
      %p174 = por %p172, %p173
      %p175 = scmp.ne.s32.totalorder %s163, %s164
      %p176 = scmp.eq.s32.totalorder %s21, 7
      %p177 = por %p175, %p176
      %p179 = scmp.ne.s32.totalorder %s164, %s178
      %p180 = scmp.eq.s32.totalorder %s21, 0
      %p181 = por %p179, %p180
      %s182 = ssub.s32 %s22, %s41
      %s183 = ssub.s32 %s23, %s37
      %s184 = sor.u32 %s182, %s183
      %p185 = scmp.eq.s32.totalorder %s184, 0
      %s187 = sadd.s32 %s186, 1
      %s188 = scalar_select %p185, %s186, %s187
      %p191 = pneg %p185
      %p192 = scmp.eq.s32.totalorder %s15, 7
      %p193 = por %p191, %p192
      %p194 = scmp.ne.s32.totalorder %s186, %s189
      %p195 = scmp.eq.s32.totalorder %s15, 0
      %p196 = por %p194, %p195
      %p197 = scmp.ne.s32.totalorder %s186, %s189
      %p198 = scmp.eq.s32.totalorder %s20, 7
      %p199 = por %p197, %p198
      %p200 = scmp.ne.s32.totalorder %s189, %s190
      %p201 = scmp.eq.s32.totalorder %s20, 0
      %p202 = por %p200, %p201
      %p203 = scmp.ne.s32.totalorder %s189, %s190
      %p204 = scmp.eq.s32.totalorder %s21, 7
      %p205 = por %p203, %p204
      %p207 = scmp.ne.s32.totalorder %s190, %s206
      %p208 = scmp.eq.s32.totalorder %s21, 0
      %p209 = por %p207, %p208
      %p210 = scmp.le.s32.totalorder 1, %s15
      %p211 = scmp.lt.s32.totalorder %s15, 9
      %p212 = pnand %p210, %p211
      %p213 = pneg %p212
      // Predicated region
      $region9: #{tpu_custom_call.1} parent=5 // pred_check
        _
      $region10: #{tpu_custom_call.1} parent=5 // pred_check_branch
        %215 = sbr.rel (%p212) target = $region12
      $region11: #{tpu_custom_call.1} parent=5 // pred_region
        %s216 = ssub.s32 %s15, 1
        // Predicated region
        $region13: #{tpu_custom_call.1} parent=11 // pred_check
          %p217 = pneg %p111
        $region14: #{tpu_custom_call.1} parent=11 // pred_check_branch
          %219 = sbr.rel (%p217) target = $region16
        $region15: #{tpu_custom_call.1} parent=11 // pred_region
          _
        $region16: #{tpu_custom_call.1} parent=11 // pred_fallthru
          _
        // Predicated region
        $region17: #{tpu_custom_call.1} parent=11 // pred_check
          %p220 = pneg %p132
        $region18: #{tpu_custom_call.1} parent=11 // pred_check_branch
          %222 = sbr.rel (%p220) target = $region20
        $region19: #{tpu_custom_call.1} parent=11 // pred_region
          _
        $region20: #{tpu_custom_call.1} parent=11 // pred_fallthru
          _
        // Predicated region
        $region21: #{tpu_custom_call.1} parent=11 // pred_check
          %p223 = pneg %p153
        $region22: #{tpu_custom_call.1} parent=11 // pred_check_branch
          %225 = sbr.rel (%p223) target = $region24
        $region23: #{tpu_custom_call.1} parent=11 // pred_region
          _
        $region24: #{tpu_custom_call.1} parent=11 // pred_fallthru
          _
        // Predicated region
        $region25: #{tpu_custom_call.1} parent=11 // pred_check
          %p226 = pneg %p174
        $region26: #{tpu_custom_call.1} parent=11 // pred_check_branch
          %228 = sbr.rel (%p226) target = $region28
        $region27: #{tpu_custom_call.1} parent=11 // pred_region
          _
        $region28: #{tpu_custom_call.1} parent=11 // pred_fallthru
          _
      $region12: #{tpu_custom_call.1} parent=5 // pred_fallthru
        _
      %p229 = scmp.lt.s32.totalorder %s15, 8
      // Predicated region
      $region29: #{tpu_custom_call.1} parent=5 // pred_check
        %p230 = pneg %p229
      $region30: #{tpu_custom_call.1} parent=5 // pred_check_branch
        %232 = sbr.rel (%p230) target = $region32
      $region31: #{tpu_custom_call.1} parent=5 // pred_region
        // Predicated region
        $region33: #{tpu_custom_call.1} parent=31 // pred_check
          %p233 = pneg %p56
        $region34: #{tpu_custom_call.1} parent=31 // pred_check_branch
          %235 = sbr.rel (%p233) target = $region36
        $region35: #{tpu_custom_call.1} parent=31 // pred_region
          %s236 = smul.u32 4, %s23
          %p237 = scmp.lt.s32.totalorder %s22, 1
          %s238 = scalar_select %p237, %s22, 1
          %p239 = scmp.lt.s32.totalorder %s236, 7
          %s240 = scalar_select %p239, %s236, 7
          %s241 = smul.addr %s238, 8
          %s242 = sadd.s32 %s240, %s241
          %s243 = smul.addr %s242, 8
          %s244 = scalar_lea.vmem %s0, %s243
          %s245 = smul.u32 4, %s23
        $region36: #{tpu_custom_call.1} parent=31 // pred_fallthru
          _
        // Predicated region
        $region37: #{tpu_custom_call.1} parent=31 // pred_check
          %p246 = pneg %p84
        $region38: #{tpu_custom_call.1} parent=31 // pred_check_branch
          %248 = sbr.rel (%p246) target = $region40
        $region39: #{tpu_custom_call.1} parent=31 // pred_region
          %s249 = smul.u32 4, %s24
          %p250 = scmp.lt.s32.totalorder %s22, 1
          %s251 = scalar_select %p250, %s22, 1
          %p252 = scmp.lt.s32.totalorder %s249, 7
          %s253 = scalar_select %p252, %s249, 7
          %s254 = smul.addr %s251, 8
          %s255 = sadd.s32 %s253, %s254
          %s256 = smul.addr %s255, 8
          %s257 = scalar_lea.vmem %s1, %s256
          %s258 = smul.u32 4, %s24
        $region40: #{tpu_custom_call.1} parent=31 // pred_fallthru
          _
      $region32: #{tpu_custom_call.1} parent=5 // pred_fallthru
        _
      %p259 = scmp.le.s32.totalorder 1, %s15
      %p260 = scmp.lt.s32.totalorder %s15, 9
      %p261 = pnand %p259, %p260
      %p262 = pneg %p261
      // Predicated region
      $region41: #{tpu_custom_call.1} parent=5 // pred_check
        _
      $region42: #{tpu_custom_call.1} parent=5 // pred_check_branch
        %264 = sbr.rel (%p261) target = $region44
      $region43: #{tpu_custom_call.1} parent=5 // pred_region
        %s265 = ssub.s32 %s15, 1
        %s266 = smul.u32 4, %s26
        %p267 = scmp.lt.s32.totalorder %s25, 1
        %s268 = scalar_select %p267, %s25, 1
        %p269 = scmp.lt.s32.totalorder %s266, 7
        %s270 = scalar_select %p269, %s266, 7
        %s271 = smul.addr %s268, 8
        %s272 = sadd.s32 %s270, %s271
        %s273 = smul.addr %s272, 8
        %s274 = scalar_lea.vmem %s0, %s273
        %p275 = pneg %p62
        %p276 = pneg %p59
        %s277 = smul.u32 4, %s27
        %p278 = scmp.lt.s32.totalorder %s25, 1
        %s279 = scalar_select %p278, %s25, 1
        %p280 = scmp.lt.s32.totalorder %s277, 7
        %s281 = scalar_select %p280, %s277, 7
        %s282 = smul.addr %s279, 8
        %s283 = sadd.s32 %s281, %s282
        %s284 = smul.addr %s283, 8
        %s285 = scalar_lea.vmem %s1, %s284
        %p286 = pneg %p90
        %p287 = pneg %p87
        %p288 = pneg %p111
        %p289 = pneg %p108
        %p290 = pneg %p132
        %p291 = pneg %p129
        %p292 = pneg %p153
        %p293 = pneg %p150
        %p294 = pneg %p174
        %p295 = pneg %p171
        %p296 = pneg %p202
        %p297 = pneg %p199
        %s298 = sand.u32 %s189, 1
        %s299 = scalar_lea.sflag [#allocation8], %s298
        %s300 = sand.u32 %s189, 1
        %s301 = smul.addr %s300, 32
        %s302 = scalar_lea.vmem [#allocation7], %s301
        %s303 = smul.u32 4, %s26
        %p304 = scmp.lt.s32.totalorder %s25, 1
        %s305 = scalar_select %p304, %s25, 1
        %p306 = scmp.lt.s32.totalorder %s303, 7
        %s307 = scalar_select %p306, %s303, 7
        %s308 = smul.addr %s305, 8
        %s309 = sadd.s32 %s307, %s308
        %s310 = smul.addr %s309, 8
        %s311 = scalar_lea.vmem %s0, %s310
        %s312 = smul.u32 4, %s26
        %s313 = smul.u32 4, %s27
        %p314 = scmp.lt.s32.totalorder %s25, 1
        %s315 = scalar_select %p314, %s25, 1
        %p316 = scmp.lt.s32.totalorder %s313, 7
        %s317 = scalar_select %p316, %s313, 7
        %s318 = smul.addr %s315, 8
        %s319 = sadd.s32 %s317, %s318
        %s320 = smul.addr %s319, 8
        %s321 = scalar_lea.vmem %s1, %s320
        %s322 = smul.u32 4, %s27
        %s323 = smul.u32 4, %s26
        %p324 = scmp.eq.s32.totalorder %s27, 0
        // Predicated region
        $region45: #{tpu_custom_call.1} parent=43 // pred_check
          %p325 = pneg %p324
        $region46: #{tpu_custom_call.1} parent=43 // pred_check_branch
          %327 = sbr.rel (%p325) target = $region48
        $region47: #{tpu_custom_call.1} parent=43 // pred_region
          %vm328 = vcmask 7168
          %329 = vst.msk [vmem:[#allocation3] sm:$0xff] %vm328, -inf
          %330 = vst.msk [vmem:[#allocation3 + $0x8] sm:$0xff] %vm328, -inf
          %331 = vst.msk [vmem:[#allocation3 + $0x10] sm:$0xff] %vm328, -inf
          %332 = vst.msk [vmem:[#allocation3 + $0x18] sm:$0xff] %vm328, -inf
          %333 = vst.msk [vmem:[#allocation3 + $0x20] sm:$0xff] %vm328, -inf
          %334 = vst.msk [vmem:[#allocation3 + $0x28] sm:$0xff] %vm328, -inf
          %335 = vst.msk [vmem:[#allocation3 + $0x30] sm:$0xff] %vm328, -inf
          %336 = vst.msk [vmem:[#allocation3 + $0x38] sm:$0xff] %vm328, -inf
          %337 = vst.msk [vmem:[#allocation3 + $0x40] sm:$0xff] %vm328, -inf
          %338 = vst.msk [vmem:[#allocation3 + $0x48] sm:$0xff] %vm328, -inf
          %339 = vst.msk [vmem:[#allocation3 + $0x50] sm:$0xff] %vm328, -inf
          %340 = vst.msk [vmem:[#allocation3 + $0x58] sm:$0xff] %vm328, -inf
          %341 = vst.msk [vmem:[#allocation3 + $0x60] sm:$0xff] %vm328, -inf
          %342 = vst.msk [vmem:[#allocation3 + $0x68] sm:$0xff] %vm328, -inf
          %343 = vst.msk [vmem:[#allocation3 + $0x70] sm:$0xff] %vm328, -inf
          %344 = vst.msk [vmem:[#allocation3 + $0x78] sm:$0xff] %vm328, -inf
          %345 = vst.msk [vmem:[#allocation3 + $0x80] sm:$0xff] %vm328, -inf
          %346 = vst.msk [vmem:[#allocation3 + $0x88] sm:$0xff] %vm328, -inf
          %347 = vst.msk [vmem:[#allocation3 + $0x90] sm:$0xff] %vm328, -inf
          %348 = vst.msk [vmem:[#allocation3 + $0x98] sm:$0xff] %vm328, -inf
          %349 = vst.msk [vmem:[#allocation3 + $0xa0] sm:$0xff] %vm328, -inf
          %350 = vst.msk [vmem:[#allocation3 + $0xa8] sm:$0xff] %vm328, -inf
          %351 = vst.msk [vmem:[#allocation3 + $0xb0] sm:$0xff] %vm328, -inf
          %352 = vst.msk [vmem:[#allocation3 + $0xb8] sm:$0xff] %vm328, -inf
          %353 = vst.msk [vmem:[#allocation3 + $0xc0] sm:$0xff] %vm328, -inf
          %354 = vst.msk [vmem:[#allocation3 + $0xc8] sm:$0xff] %vm328, -inf
          %355 = vst.msk [vmem:[#allocation3 + $0xd0] sm:$0xff] %vm328, -inf
          %356 = vst.msk [vmem:[#allocation3 + $0xd8] sm:$0xff] %vm328, -inf
          %357 = vst.msk [vmem:[#allocation3 + $0xe0] sm:$0xff] %vm328, -inf
          %358 = vst.msk [vmem:[#allocation3 + $0xe8] sm:$0xff] %vm328, -inf
          %359 = vst.msk [vmem:[#allocation3 + $0xf0] sm:$0xff] %vm328, -inf
          %360 = vst.msk [vmem:[#allocation3 + $0xf8] sm:$0xff] %vm328, -inf
          %361 = vst.msk [vmem:[#allocation4] sm:$0xff] %vm328, 0.0
          %362 = vst.msk [vmem:[#allocation4 + $0x8] sm:$0xff] %vm328, 0.0
          %363 = vst.msk [vmem:[#allocation4 + $0x10] sm:$0xff] %vm328, 0.0
          %364 = vst.msk [vmem:[#allocation4 + $0x18] sm:$0xff] %vm328, 0.0
          %365 = vst.msk [vmem:[#allocation4 + $0x20] sm:$0xff] %vm328, 0.0
          %366 = vst.msk [vmem:[#allocation4 + $0x28] sm:$0xff] %vm328, 0.0
          %367 = vst.msk [vmem:[#allocation4 + $0x30] sm:$0xff] %vm328, 0.0
          %368 = vst.msk [vmem:[#allocation4 + $0x38] sm:$0xff] %vm328, 0.0
          %369 = vst.msk [vmem:[#allocation4 + $0x40] sm:$0xff] %vm328, 0.0
          %370 = vst.msk [vmem:[#allocation4 + $0x48] sm:$0xff] %vm328, 0.0
          %371 = vst.msk [vmem:[#allocation4 + $0x50] sm:$0xff] %vm328, 0.0
          %372 = vst.msk [vmem:[#allocation4 + $0x58] sm:$0xff] %vm328, 0.0
          %373 = vst.msk [vmem:[#allocation4 + $0x60] sm:$0xff] %vm328, 0.0
          %374 = vst.msk [vmem:[#allocation4 + $0x68] sm:$0xff] %vm328, 0.0
          %375 = vst.msk [vmem:[#allocation4 + $0x70] sm:$0xff] %vm328, 0.0
          %376 = vst.msk [vmem:[#allocation4 + $0x78] sm:$0xff] %vm328, 0.0
          %377 = vst.msk [vmem:[#allocation4 + $0x80] sm:$0xff] %vm328, 0.0
          %378 = vst.msk [vmem:[#allocation4 + $0x88] sm:$0xff] %vm328, 0.0
          %379 = vst.msk [vmem:[#allocation4 + $0x90] sm:$0xff] %vm328, 0.0
          %380 = vst.msk [vmem:[#allocation4 + $0x98] sm:$0xff] %vm328, 0.0
          %381 = vst.msk [vmem:[#allocation4 + $0xa0] sm:$0xff] %vm328, 0.0
          %382 = vst.msk [vmem:[#allocation4 + $0xa8] sm:$0xff] %vm328, 0.0
          %383 = vst.msk [vmem:[#allocation4 + $0xb0] sm:$0xff] %vm328, 0.0
          %384 = vst.msk [vmem:[#allocation4 + $0xb8] sm:$0xff] %vm328, 0.0
          %385 = vst.msk [vmem:[#allocation4 + $0xc0] sm:$0xff] %vm328, 0.0
          %386 = vst.msk [vmem:[#allocation4 + $0xc8] sm:$0xff] %vm328, 0.0
          %387 = vst.msk [vmem:[#allocation4 + $0xd0] sm:$0xff] %vm328, 0.0
          %388 = vst.msk [vmem:[#allocation4 + $0xd8] sm:$0xff] %vm328, 0.0
          %389 = vst.msk [vmem:[#allocation4 + $0xe0] sm:$0xff] %vm328, 0.0
          %390 = vst.msk [vmem:[#allocation4 + $0xe8] sm:$0xff] %vm328, 0.0
          %391 = vst.msk [vmem:[#allocation4 + $0xf0] sm:$0xff] %vm328, 0.0
          %392 = vst.msk [vmem:[#allocation4 + $0xf8] sm:$0xff] %vm328, 0.0
          %vm393 = vcmask 64512
          %394 = vst.msk [vmem:[#allocation5] sm:$0xff] %vm393, 0.0
          %395 = vst.msk [vmem:[#allocation5 + $0x8] sm:$0xff] %vm393, 0.0
          %396 = vst.msk [vmem:[#allocation5 + $0x10] sm:$0xff] %vm393, 0.0
          %397 = vst.msk [vmem:[#allocation5 + $0x18] sm:$0xff] %vm393, 0.0
          %398 = vst.msk [vmem:[#allocation5 + $0x20] sm:$0xff] %vm393, 0.0
          %399 = vst.msk [vmem:[#allocation5 + $0x28] sm:$0xff] %vm393, 0.0
          %400 = vst.msk [vmem:[#allocation5 + $0x30] sm:$0xff] %vm393, 0.0
          %401 = vst.msk [vmem:[#allocation5 + $0x38] sm:$0xff] %vm393, 0.0
          %402 = vst.msk [vmem:[#allocation5 + $0x40] sm:$0xff] %vm393, 0.0
          %403 = vst.msk [vmem:[#allocation5 + $0x48] sm:$0xff] %vm393, 0.0
          %404 = vst.msk [vmem:[#allocation5 + $0x50] sm:$0xff] %vm393, 0.0
          %405 = vst.msk [vmem:[#allocation5 + $0x58] sm:$0xff] %vm393, 0.0
          %406 = vst.msk [vmem:[#allocation5 + $0x60] sm:$0xff] %vm393, 0.0
          %407 = vst.msk [vmem:[#allocation5 + $0x68] sm:$0xff] %vm393, 0.0
          %408 = vst.msk [vmem:[#allocation5 + $0x70] sm:$0xff] %vm393, 0.0
          %409 = vst.msk [vmem:[#allocation5 + $0x78] sm:$0xff] %vm393, 0.0
          %410 = vst.msk [vmem:[#allocation5 + $0x80] sm:$0xff] %vm393, 0.0
          %411 = vst.msk [vmem:[#allocation5 + $0x88] sm:$0xff] %vm393, 0.0
          %412 = vst.msk [vmem:[#allocation5 + $0x90] sm:$0xff] %vm393, 0.0
          %413 = vst.msk [vmem:[#allocation5 + $0x98] sm:$0xff] %vm393, 0.0
          %414 = vst.msk [vmem:[#allocation5 + $0xa0] sm:$0xff] %vm393, 0.0
          %415 = vst.msk [vmem:[#allocation5 + $0xa8] sm:$0xff] %vm393, 0.0
          %416 = vst.msk [vmem:[#allocation5 + $0xb0] sm:$0xff] %vm393, 0.0
          %417 = vst.msk [vmem:[#allocation5 + $0xb8] sm:$0xff] %vm393, 0.0
          %418 = vst.msk [vmem:[#allocation5 + $0xc0] sm:$0xff] %vm393, 0.0
          %419 = vst.msk [vmem:[#allocation5 + $0xc8] sm:$0xff] %vm393, 0.0
          %420 = vst.msk [vmem:[#allocation5 + $0xd0] sm:$0xff] %vm393, 0.0
          %421 = vst.msk [vmem:[#allocation5 + $0xd8] sm:$0xff] %vm393, 0.0
          %422 = vst.msk [vmem:[#allocation5 + $0xe0] sm:$0xff] %vm393, 0.0
          %423 = vst.msk [vmem:[#allocation5 + $0xe8] sm:$0xff] %vm393, 0.0
          %424 = vst.msk [vmem:[#allocation5 + $0xf0] sm:$0xff] %vm393, 0.0
          %425 = vst.msk [vmem:[#allocation5 + $0xf8] sm:$0xff] %vm393, 0.0
          %v426 = vld [vmem:[%s311] sm:$0xff]
          %v427 = vld [vmem:[%s311 + $0x8] sm:$0xff]
          %v428 = vld [vmem:[%s311 + $0x10] sm:$0xff]
          %v429 = vld [vmem:[%s311 + $0x18] sm:$0xff]
          %v430 = vld [vmem:[%s2] sm:$0xff]
          %v431 = vld [vmem:[%s2 + $0x8] sm:$0xff]
          %v432 = vld [vmem:[%s2 + $0x10] sm:$0xff]
          %v433 = vld [vmem:[%s2 + $0x18] sm:$0xff]
          %v434 = vld [vmem:[%s2 + $0x20] sm:$0xff]
          %v435 = vld [vmem:[%s2 + $0x28] sm:$0xff]
          %v436 = vld [vmem:[%s2 + $0x30] sm:$0xff]
          %v437 = vld [vmem:[%s2 + $0x38] sm:$0xff]
          %v438 = vld [vmem:[%s2 + $0x40] sm:$0xff]
          %v439 = vld [vmem:[%s2 + $0x48] sm:$0xff]
          %v440 = vld [vmem:[%s2 + $0x50] sm:$0xff]
          %v441 = vld [vmem:[%s2 + $0x58] sm:$0xff]
          %v442 = vld [vmem:[%s2 + $0x60] sm:$0xff]
          %v443 = vld [vmem:[%s2 + $0x68] sm:$0xff]
          %v444 = vld [vmem:[%s2 + $0x70] sm:$0xff]
          %v445 = vld [vmem:[%s2 + $0x78] sm:$0xff]
          %v446 = vld [vmem:[%s2 + $0x80] sm:$0xff]
          %v447 = vld [vmem:[%s2 + $0x88] sm:$0xff]
          %v448 = vld [vmem:[%s2 + $0x90] sm:$0xff]
          %v449 = vld [vmem:[%s2 + $0x98] sm:$0xff]
          %v450 = vld [vmem:[%s2 + $0xa0] sm:$0xff]
          %v451 = vld [vmem:[%s2 + $0xa8] sm:$0xff]
          %v452 = vld [vmem:[%s2 + $0xb0] sm:$0xff]
          %v453 = vld [vmem:[%s2 + $0xb8] sm:$0xff]
          %v454 = vld [vmem:[%s2 + $0xc0] sm:$0xff]
          %v455 = vld [vmem:[%s2 + $0xc8] sm:$0xff]
          %v456 = vld [vmem:[%s2 + $0xd0] sm:$0xff]
          %v457 = vld [vmem:[%s2 + $0xd8] sm:$0xff]
          %v458 = vld [vmem:[%s2 + $0xe0] sm:$0xff]
          %v459 = vld [vmem:[%s2 + $0xe8] sm:$0xff]
          %v460 = vld [vmem:[%s2 + $0xf0] sm:$0xff]
          %v461 = vld [vmem:[%s2 + $0xf8] sm:$0xff]
          %v462 = vld [vmem:[%s2 + $0x100] sm:$0xff]
          %v463 = vld [vmem:[%s2 + $0x108] sm:$0xff]
          %v464 = vld [vmem:[%s2 + $0x110] sm:$0xff]
          %v465 = vld [vmem:[%s2 + $0x118] sm:$0xff]
          %v466 = vld [vmem:[%s2 + $0x120] sm:$0xff]
          %v467 = vld [vmem:[%s2 + $0x128] sm:$0xff]
          %v468 = vld [vmem:[%s2 + $0x130] sm:$0xff]
          %v469 = vld [vmem:[%s2 + $0x138] sm:$0xff]
          %v470 = vld [vmem:[%s2 + $0x140] sm:$0xff]
          %v471 = vld [vmem:[%s2 + $0x148] sm:$0xff]
          %v472 = vld [vmem:[%s2 + $0x150] sm:$0xff]
          %v473 = vld [vmem:[%s2 + $0x158] sm:$0xff]
          %v474 = vld [vmem:[%s2 + $0x160] sm:$0xff]
          %v475 = vld [vmem:[%s2 + $0x168] sm:$0xff]
          %v476 = vld [vmem:[%s2 + $0x170] sm:$0xff]
          %v477 = vld [vmem:[%s2 + $0x178] sm:$0xff]
          %v478 = vld [vmem:[%s2 + $0x180] sm:$0xff]
          %v479 = vld [vmem:[%s2 + $0x188] sm:$0xff]
          %v480 = vld [vmem:[%s2 + $0x190] sm:$0xff]
          %v481 = vld [vmem:[%s2 + $0x198] sm:$0xff]
          %v482 = vld [vmem:[%s2 + $0x1a0] sm:$0xff]
          %v483 = vld [vmem:[%s2 + $0x1a8] sm:$0xff]
          %v484 = vld [vmem:[%s2 + $0x1b0] sm:$0xff]
          %v485 = vld [vmem:[%s2 + $0x1b8] sm:$0xff]
          %v486 = vld [vmem:[%s2 + $0x1c0] sm:$0xff]
          %v487 = vld [vmem:[%s2 + $0x1c8] sm:$0xff]
          %v488 = vld [vmem:[%s2 + $0x1d0] sm:$0xff]
          %v489 = vld [vmem:[%s2 + $0x1d8] sm:$0xff]
          %v490 = vld [vmem:[%s2 + $0x1e0] sm:$0xff]
          %v491 = vld [vmem:[%s2 + $0x1e8] sm:$0xff]
          %v492 = vld [vmem:[%s2 + $0x1f0] sm:$0xff]
          %v493 = vld [vmem:[%s2 + $0x1f8] sm:$0xff]
          %vm494 = vcmask 523264
          %v496 = vsel %vm494, %v426, 0
          %v499 = vsel %vm494, %v427, 0
          %v502 = vsel %vm494, %v428, 0
          %v505 = vsel %vm494, %v429, 0
          %507 = vmatpush.msra.mxu0 0.0
          %508 = vmatpush.msra.mxu0 0.0
          %509 = vmatpush.msra.mxu0 0.0
          %510 = vmatpush.msra.mxu0 0.0
          %511 = vmatpush.msra.mxu0 0.0
          %512 = vmatpush.msra.mxu0 0.0
          %513 = vmatpush.msra.mxu0 0.0
          %514 = vmatpush.msra.mxu0 0.0
          %515 = vmatpush.msra.mxu0 %v437
          %516 = vmatpush.msra.mxu0 %v436
          %517 = vmatpush.msra.mxu0 %v435
          %518 = vmatpush.msra.mxu0 %v434
          %519 = vmatpush.msra.mxu0 %v433
          %520 = vmatpush.msra.mxu0 %v432
          %521 = vmatpush.msra.mxu0 %v431
          %522 = vmatpush.msra.mxu0 %v430
          %523 = vmatmul.f32.gmra.mxu0 %v496
          %v524 = vpop.f32.mrf.mxu0
          %v525 = vadd.f32 0.0, %v524
          %526 = vmatmul.f32.gmra.mxu0 %v499
          %v527 = vpop.f32.mrf.mxu0
          %v528 = vadd.f32 0.0, %v527
          %529 = vmatmul.f32.gmra.mxu0 %v502
          %v530 = vpop.f32.mrf.mxu0
          %v531 = vadd.f32 0.0, %v530
          %532 = vmatmul.f32.gmra.mxu0 %v505
          %v533 = vpop.f32.mrf.mxu0
          %v534 = vadd.f32 0.0, %v533
          %535 = vdwg.mxu0
          %536 = vmatpush.msra.mxu0 0.0
          %537 = vmatpush.msra.mxu0 0.0
          %538 = vmatpush.msra.mxu0 0.0
          %539 = vmatpush.msra.mxu0 0.0
          %540 = vmatpush.msra.mxu0 0.0
          %541 = vmatpush.msra.mxu0 0.0
          %542 = vmatpush.msra.mxu0 0.0
          %543 = vmatpush.msra.mxu0 0.0
          %544 = vmatpush.msra.mxu0 %v445
          %545 = vmatpush.msra.mxu0 %v444
          %546 = vmatpush.msra.mxu0 %v443
          %547 = vmatpush.msra.mxu0 %v442
          %548 = vmatpush.msra.mxu0 %v441
          %549 = vmatpush.msra.mxu0 %v440
          %550 = vmatpush.msra.mxu0 %v439
          %551 = vmatpush.msra.mxu0 %v438
          %552 = vmatmul.f32.gmra.mxu0 %v496
          %v553 = vpop.f32.mrf.mxu0
          %v554 = vadd.f32 0.0, %v553
          %555 = vmatmul.f32.gmra.mxu0 %v499
          %v556 = vpop.f32.mrf.mxu0
          %v557 = vadd.f32 0.0, %v556
          %558 = vmatmul.f32.gmra.mxu0 %v502
          %v559 = vpop.f32.mrf.mxu0
          %v560 = vadd.f32 0.0, %v559
          %561 = vmatmul.f32.gmra.mxu0 %v505
          %v562 = vpop.f32.mrf.mxu0
          %v563 = vadd.f32 0.0, %v562
          %564 = vdwg.mxu0
          %565 = vmatpush.msra.mxu0 0.0
          %566 = vmatpush.msra.mxu0 0.0
          %567 = vmatpush.msra.mxu0 0.0
          %568 = vmatpush.msra.mxu0 0.0
          %569 = vmatpush.msra.mxu0 0.0
          %570 = vmatpush.msra.mxu0 0.0
          %571 = vmatpush.msra.mxu0 0.0
          %572 = vmatpush.msra.mxu0 0.0
          %573 = vmatpush.msra.mxu0 %v453
          %574 = vmatpush.msra.mxu0 %v452
          %575 = vmatpush.msra.mxu0 %v451
          %576 = vmatpush.msra.mxu0 %v450
          %577 = vmatpush.msra.mxu0 %v449
          %578 = vmatpush.msra.mxu0 %v448
          %579 = vmatpush.msra.mxu0 %v447
          %580 = vmatpush.msra.mxu0 %v446
          %581 = vmatmul.f32.gmra.mxu0 %v496
          %v582 = vpop.f32.mrf.mxu0
          %v583 = vadd.f32 0.0, %v582
          %584 = vmatmul.f32.gmra.mxu0 %v499
          %v585 = vpop.f32.mrf.mxu0
          %v586 = vadd.f32 0.0, %v585
          %587 = vmatmul.f32.gmra.mxu0 %v502
          %v588 = vpop.f32.mrf.mxu0
          %v589 = vadd.f32 0.0, %v588
          %590 = vmatmul.f32.gmra.mxu0 %v505
          %v591 = vpop.f32.mrf.mxu0
          %v592 = vadd.f32 0.0, %v591
          %593 = vdwg.mxu0
          %594 = vmatpush.msra.mxu0 0.0
          %595 = vmatpush.msra.mxu0 0.0
          %596 = vmatpush.msra.mxu0 0.0
          %597 = vmatpush.msra.mxu0 0.0
          %598 = vmatpush.msra.mxu0 0.0
          %599 = vmatpush.msra.mxu0 0.0
          %600 = vmatpush.msra.mxu0 0.0
          %601 = vmatpush.msra.mxu0 0.0
          %602 = vmatpush.msra.mxu0 %v461
          %603 = vmatpush.msra.mxu0 %v460
          %604 = vmatpush.msra.mxu0 %v459
          %605 = vmatpush.msra.mxu0 %v458
          %606 = vmatpush.msra.mxu0 %v457
          %607 = vmatpush.msra.mxu0 %v456
          %608 = vmatpush.msra.mxu0 %v455
          %609 = vmatpush.msra.mxu0 %v454
          %610 = vmatmul.f32.gmra.mxu0 %v496
          %v611 = vpop.f32.mrf.mxu0
          %v612 = vadd.f32 0.0, %v611
          %613 = vmatmul.f32.gmra.mxu0 %v499
          %v614 = vpop.f32.mrf.mxu0
          %v615 = vadd.f32 0.0, %v614
          %616 = vmatmul.f32.gmra.mxu0 %v502
          %v617 = vpop.f32.mrf.mxu0
          %v618 = vadd.f32 0.0, %v617
          %619 = vmatmul.f32.gmra.mxu0 %v505
          %v620 = vpop.f32.mrf.mxu0
          %v621 = vadd.f32 0.0, %v620
          %622 = vdwg.mxu0
          %623 = vmatpush.msra.mxu0 0.0
          %624 = vmatpush.msra.mxu0 0.0
          %625 = vmatpush.msra.mxu0 0.0
          %626 = vmatpush.msra.mxu0 0.0
          %627 = vmatpush.msra.mxu0 0.0
          %628 = vmatpush.msra.mxu0 0.0
          %629 = vmatpush.msra.mxu0 0.0
          %630 = vmatpush.msra.mxu0 0.0
          %631 = vmatpush.msra.mxu0 %v469
          %632 = vmatpush.msra.mxu0 %v468
          %633 = vmatpush.msra.mxu0 %v467
          %634 = vmatpush.msra.mxu0 %v466
          %635 = vmatpush.msra.mxu0 %v465
          %636 = vmatpush.msra.mxu0 %v464
          %637 = vmatpush.msra.mxu0 %v463
          %638 = vmatpush.msra.mxu0 %v462
          %639 = vmatmul.f32.gmra.mxu0 %v496
          %v640 = vpop.f32.mrf.mxu0
          %v641 = vadd.f32 0.0, %v640
          %642 = vmatmul.f32.gmra.mxu0 %v499
          %v643 = vpop.f32.mrf.mxu0
          %v644 = vadd.f32 0.0, %v643
          %645 = vmatmul.f32.gmra.mxu0 %v502
          %v646 = vpop.f32.mrf.mxu0
          %v647 = vadd.f32 0.0, %v646
          %648 = vmatmul.f32.gmra.mxu0 %v505
          %v649 = vpop.f32.mrf.mxu0
          %v650 = vadd.f32 0.0, %v649
          %651 = vdwg.mxu0
          %652 = vmatpush.msra.mxu0 0.0
          %653 = vmatpush.msra.mxu0 0.0
          %654 = vmatpush.msra.mxu0 0.0
          %655 = vmatpush.msra.mxu0 0.0
          %656 = vmatpush.msra.mxu0 0.0
          %657 = vmatpush.msra.mxu0 0.0
          %658 = vmatpush.msra.mxu0 0.0
          %659 = vmatpush.msra.mxu0 0.0
          %660 = vmatpush.msra.mxu0 %v477
          %661 = vmatpush.msra.mxu0 %v476
          %662 = vmatpush.msra.mxu0 %v475
          %663 = vmatpush.msra.mxu0 %v474
          %664 = vmatpush.msra.mxu0 %v473
          %665 = vmatpush.msra.mxu0 %v472
          %666 = vmatpush.msra.mxu0 %v471
          %667 = vmatpush.msra.mxu0 %v470
          %668 = vmatmul.f32.gmra.mxu0 %v496
          %v669 = vpop.f32.mrf.mxu0
          %v670 = vadd.f32 0.0, %v669
          %671 = vmatmul.f32.gmra.mxu0 %v499
          %v672 = vpop.f32.mrf.mxu0
          %v673 = vadd.f32 0.0, %v672
          %674 = vmatmul.f32.gmra.mxu0 %v502
          %v675 = vpop.f32.mrf.mxu0
          %v676 = vadd.f32 0.0, %v675
          %677 = vmatmul.f32.gmra.mxu0 %v505
          %v678 = vpop.f32.mrf.mxu0
          %v679 = vadd.f32 0.0, %v678
          %680 = vdwg.mxu0
          %681 = vmatpush.msra.mxu0 0.0
          %682 = vmatpush.msra.mxu0 0.0
          %683 = vmatpush.msra.mxu0 0.0
          %684 = vmatpush.msra.mxu0 0.0
          %685 = vmatpush.msra.mxu0 0.0
          %686 = vmatpush.msra.mxu0 0.0
          %687 = vmatpush.msra.mxu0 0.0
          %688 = vmatpush.msra.mxu0 0.0
          %689 = vmatpush.msra.mxu0 %v485
          %690 = vmatpush.msra.mxu0 %v484
          %691 = vmatpush.msra.mxu0 %v483
          %692 = vmatpush.msra.mxu0 %v482
          %693 = vmatpush.msra.mxu0 %v481
          %694 = vmatpush.msra.mxu0 %v480
          %695 = vmatpush.msra.mxu0 %v479
          %696 = vmatpush.msra.mxu0 %v478
          %697 = vmatmul.f32.gmra.mxu0 %v496
          %v698 = vpop.f32.mrf.mxu0
          %v699 = vadd.f32 0.0, %v698
          %700 = vmatmul.f32.gmra.mxu0 %v499
          %v701 = vpop.f32.mrf.mxu0
          %v702 = vadd.f32 0.0, %v701
          %703 = vmatmul.f32.gmra.mxu0 %v502
          %v704 = vpop.f32.mrf.mxu0
          %v705 = vadd.f32 0.0, %v704
          %706 = vmatmul.f32.gmra.mxu0 %v505
          %v707 = vpop.f32.mrf.mxu0
          %v708 = vadd.f32 0.0, %v707
          %709 = vdwg.mxu0
          %710 = vmatpush.msra.mxu0 0.0
          %711 = vmatpush.msra.mxu0 0.0
          %712 = vmatpush.msra.mxu0 0.0
          %713 = vmatpush.msra.mxu0 0.0
          %714 = vmatpush.msra.mxu0 0.0
          %715 = vmatpush.msra.mxu0 0.0
          %716 = vmatpush.msra.mxu0 0.0
          %717 = vmatpush.msra.mxu0 0.0
          %718 = vmatpush.msra.mxu0 %v493
          %719 = vmatpush.msra.mxu0 %v492
          %720 = vmatpush.msra.mxu0 %v491
          %721 = vmatpush.msra.mxu0 %v490
          %722 = vmatpush.msra.mxu0 %v489
          %723 = vmatpush.msra.mxu0 %v488
          %724 = vmatpush.msra.mxu0 %v487
          %725 = vmatpush.msra.mxu0 %v486
          %726 = vmatmul.f32.gmra.mxu0 %v496
          %v727 = vpop.f32.mrf.mxu0
          %v728 = vadd.f32 0.0, %v727
          %729 = vmatmul.f32.gmra.mxu0 %v499
          %v730 = vpop.f32.mrf.mxu0
          %v731 = vadd.f32 0.0, %v730
          %732 = vmatmul.f32.gmra.mxu0 %v502
          %v733 = vpop.f32.mrf.mxu0
          %v734 = vadd.f32 0.0, %v733
          %735 = vmatmul.f32.gmra.mxu0 %v505
          %v736 = vpop.f32.mrf.mxu0
          %v737 = vadd.f32 0.0, %v736
          %738 = vdwg.mxu0
          %739 = vst.msk [vmem:[#allocation2] sm:$0xff] %vm393, %v525
          %740 = vst.msk [vmem:[#allocation2 + $0x8] sm:$0xff] %vm393, %v528
          %741 = vst.msk [vmem:[#allocation2 + $0x10] sm:$0xff] %vm393, %v531
          %742 = vst.msk [vmem:[#allocation2 + $0x18] sm:$0xff] %vm393, %v534
          %743 = vst.msk [vmem:[#allocation2 + $0x20] sm:$0xff] %vm393, %v554
          %744 = vst.msk [vmem:[#allocation2 + $0x28] sm:$0xff] %vm393, %v557
          %745 = vst.msk [vmem:[#allocation2 + $0x30] sm:$0xff] %vm393, %v560
          %746 = vst.msk [vmem:[#allocation2 + $0x38] sm:$0xff] %vm393, %v563
          %747 = vst.msk [vmem:[#allocation2 + $0x40] sm:$0xff] %vm393, %v583
          %748 = vst.msk [vmem:[#allocation2 + $0x48] sm:$0xff] %vm393, %v586
          %749 = vst.msk [vmem:[#allocation2 + $0x50] sm:$0xff] %vm393, %v589
          %750 = vst.msk [vmem:[#allocation2 + $0x58] sm:$0xff] %vm393, %v592
          %751 = vst.msk [vmem:[#allocation2 + $0x60] sm:$0xff] %vm393, %v612
          %752 = vst.msk [vmem:[#allocation2 + $0x68] sm:$0xff] %vm393, %v615
          %753 = vst.msk [vmem:[#allocation2 + $0x70] sm:$0xff] %vm393, %v618
          %754 = vst.msk [vmem:[#allocation2 + $0x78] sm:$0xff] %vm393, %v621
          %755 = vst.msk [vmem:[#allocation2 + $0x80] sm:$0xff] %vm393, %v641
          %756 = vst.msk [vmem:[#allocation2 + $0x88] sm:$0xff] %vm393, %v644
          %757 = vst.msk [vmem:[#allocation2 + $0x90] sm:$0xff] %vm393, %v647
          %758 = vst.msk [vmem:[#allocation2 + $0x98] sm:$0xff] %vm393, %v650
          %759 = vst.msk [vmem:[#allocation2 + $0xa0] sm:$0xff] %vm393, %v670
          %760 = vst.msk [vmem:[#allocation2 + $0xa8] sm:$0xff] %vm393, %v673
          %761 = vst.msk [vmem:[#allocation2 + $0xb0] sm:$0xff] %vm393, %v676
          %762 = vst.msk [vmem:[#allocation2 + $0xb8] sm:$0xff] %vm393, %v679
          %763 = vst.msk [vmem:[#allocation2 + $0xc0] sm:$0xff] %vm393, %v699
          %764 = vst.msk [vmem:[#allocation2 + $0xc8] sm:$0xff] %vm393, %v702
          %765 = vst.msk [vmem:[#allocation2 + $0xd0] sm:$0xff] %vm393, %v705
          %766 = vst.msk [vmem:[#allocation2 + $0xd8] sm:$0xff] %vm393, %v708
          %767 = vst.msk [vmem:[#allocation2 + $0xe0] sm:$0xff] %vm393, %v728
          %768 = vst.msk [vmem:[#allocation2 + $0xe8] sm:$0xff] %vm393, %v731
          %769 = vst.msk [vmem:[#allocation2 + $0xf0] sm:$0xff] %vm393, %v734
          %770 = vst.msk [vmem:[#allocation2 + $0xf8] sm:$0xff] %vm393, %v737
        $region48: #{tpu_custom_call.1} parent=43 // pred_fallthru
          _
        %v771 = vld [vmem:[%s321] sm:$0xff]
        %v772 = vld [vmem:[%s321 + $0x8] sm:$0xff]
        %v773 = vld [vmem:[%s321 + $0x10] sm:$0xff]
        %v774 = vld [vmem:[%s321 + $0x18] sm:$0xff]
        %v775 = vld [vmem:[%s3] sm:$0xff]
        %v776 = vld [vmem:[%s3 + $0x8] sm:$0xff]
        %v777 = vld [vmem:[%s3 + $0x10] sm:$0xff]
        %v778 = vld [vmem:[%s3 + $0x18] sm:$0xff]
        %v779 = vld [vmem:[%s3 + $0x20] sm:$0xff]
        %v780 = vld [vmem:[%s3 + $0x28] sm:$0xff]
        %v781 = vld [vmem:[%s3 + $0x30] sm:$0xff]
        %v782 = vld [vmem:[%s3 + $0x38] sm:$0xff]
        %v783 = vld [vmem:[%s3 + $0x40] sm:$0xff]
        %v784 = vld [vmem:[%s3 + $0x48] sm:$0xff]
        %v785 = vld [vmem:[%s3 + $0x50] sm:$0xff]
        %v786 = vld [vmem:[%s3 + $0x58] sm:$0xff]
        %v787 = vld [vmem:[%s3 + $0x60] sm:$0xff]
        %v788 = vld [vmem:[%s3 + $0x68] sm:$0xff]
        %v789 = vld [vmem:[%s3 + $0x70] sm:$0xff]
        %v790 = vld [vmem:[%s3 + $0x78] sm:$0xff]
        %v791 = vld [vmem:[%s3 + $0x80] sm:$0xff]
        %v792 = vld [vmem:[%s3 + $0x88] sm:$0xff]
        %v793 = vld [vmem:[%s3 + $0x90] sm:$0xff]
        %v794 = vld [vmem:[%s3 + $0x98] sm:$0xff]
        %v795 = vld [vmem:[%s3 + $0xa0] sm:$0xff]
        %v796 = vld [vmem:[%s3 + $0xa8] sm:$0xff]
        %v797 = vld [vmem:[%s3 + $0xb0] sm:$0xff]
        %v798 = vld [vmem:[%s3 + $0xb8] sm:$0xff]
        %v799 = vld [vmem:[%s3 + $0xc0] sm:$0xff]
        %v800 = vld [vmem:[%s3 + $0xc8] sm:$0xff]
        %v801 = vld [vmem:[%s3 + $0xd0] sm:$0xff]
        %v802 = vld [vmem:[%s3 + $0xd8] sm:$0xff]
        %v803 = vld [vmem:[%s3 + $0xe0] sm:$0xff]
        %v804 = vld [vmem:[%s3 + $0xe8] sm:$0xff]
        %v805 = vld [vmem:[%s3 + $0xf0] sm:$0xff]
        %v806 = vld [vmem:[%s3 + $0xf8] sm:$0xff]
        %v807 = vld [vmem:[%s3 + $0x100] sm:$0xff]
        %v808 = vld [vmem:[%s3 + $0x108] sm:$0xff]
        %v809 = vld [vmem:[%s3 + $0x110] sm:$0xff]
        %v810 = vld [vmem:[%s3 + $0x118] sm:$0xff]
        %v811 = vld [vmem:[%s3 + $0x120] sm:$0xff]
        %v812 = vld [vmem:[%s3 + $0x128] sm:$0xff]
        %v813 = vld [vmem:[%s3 + $0x130] sm:$0xff]
        %v814 = vld [vmem:[%s3 + $0x138] sm:$0xff]
        %v815 = vld [vmem:[%s3 + $0x140] sm:$0xff]
        %v816 = vld [vmem:[%s3 + $0x148] sm:$0xff]
        %v817 = vld [vmem:[%s3 + $0x150] sm:$0xff]
        %v818 = vld [vmem:[%s3 + $0x158] sm:$0xff]
        %v819 = vld [vmem:[%s3 + $0x160] sm:$0xff]
        %v820 = vld [vmem:[%s3 + $0x168] sm:$0xff]
        %v821 = vld [vmem:[%s3 + $0x170] sm:$0xff]
        %v822 = vld [vmem:[%s3 + $0x178] sm:$0xff]
        %v823 = vld [vmem:[%s3 + $0x180] sm:$0xff]
        %v824 = vld [vmem:[%s3 + $0x188] sm:$0xff]
        %v825 = vld [vmem:[%s3 + $0x190] sm:$0xff]
        %v826 = vld [vmem:[%s3 + $0x198] sm:$0xff]
        %v827 = vld [vmem:[%s3 + $0x1a0] sm:$0xff]
        %v828 = vld [vmem:[%s3 + $0x1a8] sm:$0xff]
        %v829 = vld [vmem:[%s3 + $0x1b0] sm:$0xff]
        %v830 = vld [vmem:[%s3 + $0x1b8] sm:$0xff]
        %v831 = vld [vmem:[%s3 + $0x1c0] sm:$0xff]
        %v832 = vld [vmem:[%s3 + $0x1c8] sm:$0xff]
        %v833 = vld [vmem:[%s3 + $0x1d0] sm:$0xff]
        %v834 = vld [vmem:[%s3 + $0x1d8] sm:$0xff]
        %v835 = vld [vmem:[%s3 + $0x1e0] sm:$0xff]
        %v836 = vld [vmem:[%s3 + $0x1e8] sm:$0xff]
        %v837 = vld [vmem:[%s3 + $0x1f0] sm:$0xff]
        %v838 = vld [vmem:[%s3 + $0x1f8] sm:$0xff]
        %vm839 = vcmask 523264
        %v841 = vsel %vm839, %v771, 0
        %v844 = vsel %vm839, %v772, 0
        %v847 = vsel %vm839, %v773, 0
        %v850 = vsel %vm839, %v774, 0
        %852 = vmatpush.msra.mxu0 0.0
        %853 = vmatpush.msra.mxu0 0.0
        %854 = vmatpush.msra.mxu0 0.0
        %855 = vmatpush.msra.mxu0 0.0
        %856 = vmatpush.msra.mxu0 0.0
        %857 = vmatpush.msra.mxu0 0.0
        %858 = vmatpush.msra.mxu0 0.0
        %859 = vmatpush.msra.mxu0 0.0
        %860 = vmatpush.msra.mxu0 %v782
        %861 = vmatpush.msra.mxu0 %v781
        %862 = vmatpush.msra.mxu0 %v780
        %863 = vmatpush.msra.mxu0 %v779
        %864 = vmatpush.msra.mxu0 %v778
        %865 = vmatpush.msra.mxu0 %v777
        %866 = vmatpush.msra.mxu0 %v776
        %867 = vmatpush.msra.mxu0 %v775
        %868 = vmatmul.f32.gmra.mxu0 %v841
        %v869 = vpop.f32.mrf.mxu0
        %v870 = vadd.f32 0.0, %v869
        %871 = vmatmul.f32.gmra.mxu0 %v844
        %v872 = vpop.f32.mrf.mxu0
        %v873 = vadd.f32 0.0, %v872
        %874 = vmatmul.f32.gmra.mxu0 %v847
        %v875 = vpop.f32.mrf.mxu0
        %v876 = vadd.f32 0.0, %v875
        %877 = vmatmul.f32.gmra.mxu0 %v850
        %v878 = vpop.f32.mrf.mxu0
        %v879 = vadd.f32 0.0, %v878
        %880 = vdwg.mxu0
        %881 = vmatpush.msra.mxu0 0.0
        %882 = vmatpush.msra.mxu0 0.0
        %883 = vmatpush.msra.mxu0 0.0
        %884 = vmatpush.msra.mxu0 0.0
        %885 = vmatpush.msra.mxu0 0.0
        %886 = vmatpush.msra.mxu0 0.0
        %887 = vmatpush.msra.mxu0 0.0
        %888 = vmatpush.msra.mxu0 0.0
        %889 = vmatpush.msra.mxu0 %v790
        %890 = vmatpush.msra.mxu0 %v789
        %891 = vmatpush.msra.mxu0 %v788
        %892 = vmatpush.msra.mxu0 %v787
        %893 = vmatpush.msra.mxu0 %v786
        %894 = vmatpush.msra.mxu0 %v785
        %895 = vmatpush.msra.mxu0 %v784
        %896 = vmatpush.msra.mxu0 %v783
        %897 = vmatmul.f32.gmra.mxu0 %v841
        %v898 = vpop.f32.mrf.mxu0
        %v899 = vadd.f32 0.0, %v898
        %900 = vmatmul.f32.gmra.mxu0 %v844
        %v901 = vpop.f32.mrf.mxu0
        %v902 = vadd.f32 0.0, %v901
        %903 = vmatmul.f32.gmra.mxu0 %v847
        %v904 = vpop.f32.mrf.mxu0
        %v905 = vadd.f32 0.0, %v904
        %906 = vmatmul.f32.gmra.mxu0 %v850
        %v907 = vpop.f32.mrf.mxu0
        %v908 = vadd.f32 0.0, %v907
        %909 = vdwg.mxu0
        %910 = vmatpush.msra.mxu0 0.0
        %911 = vmatpush.msra.mxu0 0.0
        %912 = vmatpush.msra.mxu0 0.0
        %913 = vmatpush.msra.mxu0 0.0
        %914 = vmatpush.msra.mxu0 0.0
        %915 = vmatpush.msra.mxu0 0.0
        %916 = vmatpush.msra.mxu0 0.0
        %917 = vmatpush.msra.mxu0 0.0
        %918 = vmatpush.msra.mxu0 %v798
        %919 = vmatpush.msra.mxu0 %v797
        %920 = vmatpush.msra.mxu0 %v796
        %921 = vmatpush.msra.mxu0 %v795
        %922 = vmatpush.msra.mxu0 %v794
        %923 = vmatpush.msra.mxu0 %v793
        %924 = vmatpush.msra.mxu0 %v792
        %925 = vmatpush.msra.mxu0 %v791
        %926 = vmatmul.f32.gmra.mxu0 %v841
        %v927 = vpop.f32.mrf.mxu0
        %v928 = vadd.f32 0.0, %v927
        %929 = vmatmul.f32.gmra.mxu0 %v844
        %v930 = vpop.f32.mrf.mxu0
        %v931 = vadd.f32 0.0, %v930
        %932 = vmatmul.f32.gmra.mxu0 %v847
        %v933 = vpop.f32.mrf.mxu0
        %v934 = vadd.f32 0.0, %v933
        %935 = vmatmul.f32.gmra.mxu0 %v850
        %v936 = vpop.f32.mrf.mxu0
        %v937 = vadd.f32 0.0, %v936
        %938 = vdwg.mxu0
        %939 = vmatpush.msra.mxu0 0.0
        %940 = vmatpush.msra.mxu0 0.0
        %941 = vmatpush.msra.mxu0 0.0
        %942 = vmatpush.msra.mxu0 0.0
        %943 = vmatpush.msra.mxu0 0.0
        %944 = vmatpush.msra.mxu0 0.0
        %945 = vmatpush.msra.mxu0 0.0
        %946 = vmatpush.msra.mxu0 0.0
        %947 = vmatpush.msra.mxu0 %v806
        %948 = vmatpush.msra.mxu0 %v805
        %949 = vmatpush.msra.mxu0 %v804
        %950 = vmatpush.msra.mxu0 %v803
        %951 = vmatpush.msra.mxu0 %v802
        %952 = vmatpush.msra.mxu0 %v801
        %953 = vmatpush.msra.mxu0 %v800
        %954 = vmatpush.msra.mxu0 %v799
        %955 = vmatmul.f32.gmra.mxu0 %v841
        %v956 = vpop.f32.mrf.mxu0
        %v957 = vadd.f32 0.0, %v956
        %958 = vmatmul.f32.gmra.mxu0 %v844
        %v959 = vpop.f32.mrf.mxu0
        %v960 = vadd.f32 0.0, %v959
        %961 = vmatmul.f32.gmra.mxu0 %v847
        %v962 = vpop.f32.mrf.mxu0
        %v963 = vadd.f32 0.0, %v962
        %964 = vmatmul.f32.gmra.mxu0 %v850
        %v965 = vpop.f32.mrf.mxu0
        %v966 = vadd.f32 0.0, %v965
        %967 = vdwg.mxu0
        %968 = vmatpush.msra.mxu0 0.0
        %969 = vmatpush.msra.mxu0 0.0
        %970 = vmatpush.msra.mxu0 0.0
        %971 = vmatpush.msra.mxu0 0.0
        %972 = vmatpush.msra.mxu0 0.0
        %973 = vmatpush.msra.mxu0 0.0
        %974 = vmatpush.msra.mxu0 0.0
        %975 = vmatpush.msra.mxu0 0.0
        %976 = vmatpush.msra.mxu0 %v814
        %977 = vmatpush.msra.mxu0 %v813
        %978 = vmatpush.msra.mxu0 %v812
        %979 = vmatpush.msra.mxu0 %v811
        %980 = vmatpush.msra.mxu0 %v810
        %981 = vmatpush.msra.mxu0 %v809
        %982 = vmatpush.msra.mxu0 %v808
        %983 = vmatpush.msra.mxu0 %v807
        %984 = vmatmul.f32.gmra.mxu0 %v841
        %v985 = vpop.f32.mrf.mxu0
        %v986 = vadd.f32 0.0, %v985
        %987 = vmatmul.f32.gmra.mxu0 %v844
        %v988 = vpop.f32.mrf.mxu0
        %v989 = vadd.f32 0.0, %v988
        %990 = vmatmul.f32.gmra.mxu0 %v847
        %v991 = vpop.f32.mrf.mxu0
        %v992 = vadd.f32 0.0, %v991
        %993 = vmatmul.f32.gmra.mxu0 %v850
        %v994 = vpop.f32.mrf.mxu0
        %v995 = vadd.f32 0.0, %v994
        %996 = vdwg.mxu0
        %997 = vmatpush.msra.mxu0 0.0
        %998 = vmatpush.msra.mxu0 0.0
        %999 = vmatpush.msra.mxu0 0.0
        %1000 = vmatpush.msra.mxu0 0.0
        %1001 = vmatpush.msra.mxu0 0.0
        %1002 = vmatpush.msra.mxu0 0.0
        %1003 = vmatpush.msra.mxu0 0.0
        %1004 = vmatpush.msra.mxu0 0.0
        %1005 = vmatpush.msra.mxu0 %v822
        %1006 = vmatpush.msra.mxu0 %v821
        %1007 = vmatpush.msra.mxu0 %v820
        %1008 = vmatpush.msra.mxu0 %v819
        %1009 = vmatpush.msra.mxu0 %v818
        %1010 = vmatpush.msra.mxu0 %v817
        %1011 = vmatpush.msra.mxu0 %v816
        %1012 = vmatpush.msra.mxu0 %v815
        %1013 = vmatmul.f32.gmra.mxu0 %v841
        %v1014 = vpop.f32.mrf.mxu0
        %v1015 = vadd.f32 0.0, %v1014
        %1016 = vmatmul.f32.gmra.mxu0 %v844
        %v1017 = vpop.f32.mrf.mxu0
        %v1018 = vadd.f32 0.0, %v1017
        %1019 = vmatmul.f32.gmra.mxu0 %v847
        %v1020 = vpop.f32.mrf.mxu0
        %v1021 = vadd.f32 0.0, %v1020
        %1022 = vmatmul.f32.gmra.mxu0 %v850
        %v1023 = vpop.f32.mrf.mxu0
        %v1024 = vadd.f32 0.0, %v1023
        %1025 = vdwg.mxu0
        %1026 = vmatpush.msra.mxu0 0.0
        %1027 = vmatpush.msra.mxu0 0.0
        %1028 = vmatpush.msra.mxu0 0.0
        %1029 = vmatpush.msra.mxu0 0.0
        %1030 = vmatpush.msra.mxu0 0.0
        %1031 = vmatpush.msra.mxu0 0.0
        %1032 = vmatpush.msra.mxu0 0.0
        %1033 = vmatpush.msra.mxu0 0.0
        %1034 = vmatpush.msra.mxu0 %v830
        %1035 = vmatpush.msra.mxu0 %v829
        %1036 = vmatpush.msra.mxu0 %v828
        %1037 = vmatpush.msra.mxu0 %v827
        %1038 = vmatpush.msra.mxu0 %v826
        %1039 = vmatpush.msra.mxu0 %v825
        %1040 = vmatpush.msra.mxu0 %v824
        %1041 = vmatpush.msra.mxu0 %v823
        %1042 = vmatmul.f32.gmra.mxu0 %v841
        %v1043 = vpop.f32.mrf.mxu0
        %v1044 = vadd.f32 0.0, %v1043
        %1045 = vmatmul.f32.gmra.mxu0 %v844
        %v1046 = vpop.f32.mrf.mxu0
        %v1047 = vadd.f32 0.0, %v1046
        %1048 = vmatmul.f32.gmra.mxu0 %v847
        %v1049 = vpop.f32.mrf.mxu0
        %v1050 = vadd.f32 0.0, %v1049
        %1051 = vmatmul.f32.gmra.mxu0 %v850
        %v1052 = vpop.f32.mrf.mxu0
        %v1053 = vadd.f32 0.0, %v1052
        %1054 = vdwg.mxu0
        %1055 = vmatpush.msra.mxu0 0.0
        %1056 = vmatpush.msra.mxu0 0.0
        %1057 = vmatpush.msra.mxu0 0.0
        %1058 = vmatpush.msra.mxu0 0.0
        %1059 = vmatpush.msra.mxu0 0.0
        %1060 = vmatpush.msra.mxu0 0.0
        %1061 = vmatpush.msra.mxu0 0.0
        %1062 = vmatpush.msra.mxu0 0.0
        %1063 = vmatpush.msra.mxu0 %v838
        %1064 = vmatpush.msra.mxu0 %v837
        %1065 = vmatpush.msra.mxu0 %v836
        %1066 = vmatpush.msra.mxu0 %v835
        %1067 = vmatpush.msra.mxu0 %v834
        %1068 = vmatpush.msra.mxu0 %v833
        %1069 = vmatpush.msra.mxu0 %v832
        %1070 = vmatpush.msra.mxu0 %v831
        %1071 = vmatmul.f32.gmra.mxu0 %v841
        %v1072 = vpop.f32.mrf.mxu0
        %v1073 = vadd.f32 0.0, %v1072
        %1074 = vmatmul.f32.gmra.mxu0 %v844
        %v1075 = vpop.f32.mrf.mxu0
        %v1076 = vadd.f32 0.0, %v1075
        %1077 = vmatmul.f32.gmra.mxu0 %v847
        %v1078 = vpop.f32.mrf.mxu0
        %v1079 = vadd.f32 0.0, %v1078
        %1080 = vmatmul.f32.gmra.mxu0 %v850
        %v1081 = vpop.f32.mrf.mxu0
        %v1082 = vadd.f32 0.0, %v1081
        %1083 = vdwg.mxu0
        %v1084 = vld [vmem:[#allocation2] sm:$0xff]
        %v1085 = vld [vmem:[#allocation2 + $0x8] sm:$0xff]
        %v1086 = vld [vmem:[#allocation2 + $0x10] sm:$0xff]
        %v1087 = vld [vmem:[#allocation2 + $0x18] sm:$0xff]
        %v1088 = vld [vmem:[#allocation2 + $0x20] sm:$0xff]
        %v1089 = vld [vmem:[#allocation2 + $0x28] sm:$0xff]
        %v1090 = vld [vmem:[#allocation2 + $0x30] sm:$0xff]
        %v1091 = vld [vmem:[#allocation2 + $0x38] sm:$0xff]
        %v1092 = vld [vmem:[#allocation2 + $0x40] sm:$0xff]
        %v1093 = vld [vmem:[#allocation2 + $0x48] sm:$0xff]
        %v1094 = vld [vmem:[#allocation2 + $0x50] sm:$0xff]
        %v1095 = vld [vmem:[#allocation2 + $0x58] sm:$0xff]
        %v1096 = vld [vmem:[#allocation2 + $0x60] sm:$0xff]
        %v1097 = vld [vmem:[#allocation2 + $0x68] sm:$0xff]
        %v1098 = vld [vmem:[#allocation2 + $0x70] sm:$0xff]
        %v1099 = vld [vmem:[#allocation2 + $0x78] sm:$0xff]
        %v1100 = vld [vmem:[#allocation2 + $0x80] sm:$0xff]
        %v1101 = vld [vmem:[#allocation2 + $0x88] sm:$0xff]
        %v1102 = vld [vmem:[#allocation2 + $0x90] sm:$0xff]
        %v1103 = vld [vmem:[#allocation2 + $0x98] sm:$0xff]
        %v1104 = vld [vmem:[#allocation2 + $0xa0] sm:$0xff]
        %v1105 = vld [vmem:[#allocation2 + $0xa8] sm:$0xff]
        %v1106 = vld [vmem:[#allocation2 + $0xb0] sm:$0xff]
        %v1107 = vld [vmem:[#allocation2 + $0xb8] sm:$0xff]
        %v1108 = vld [vmem:[#allocation2 + $0xc0] sm:$0xff]
        %v1109 = vld [vmem:[#allocation2 + $0xc8] sm:$0xff]
        %v1110 = vld [vmem:[#allocation2 + $0xd0] sm:$0xff]
        %v1111 = vld [vmem:[#allocation2 + $0xd8] sm:$0xff]
        %v1112 = vld [vmem:[#allocation2 + $0xe0] sm:$0xff]
        %v1113 = vld [vmem:[#allocation2 + $0xe8] sm:$0xff]
        %v1114 = vld [vmem:[#allocation2 + $0xf0] sm:$0xff]
        %v1115 = vld [vmem:[#allocation2 + $0xf8] sm:$0xff]
        %vm1116 = vcmask 64512
        %v1118 = vsel %vm1116, %v1084, 0
        %v1121 = vsel %vm1116, %v1085, 0
        %v1124 = vsel %vm1116, %v1086, 0
        %v1127 = vsel %vm1116, %v1087, 0
        %v1130 = vsel %vm1116, %v870, 0
        %v1133 = vsel %vm1116, %v873, 0
        %v1136 = vsel %vm1116, %v876, 0
        %v1139 = vsel %vm1116, %v879, 0
        %1141 = vmatpush.xpose.msra.mxu0 0.0
        %1142 = vmatpush.xpose.msra.mxu0 0.0
        %1143 = vmatpush.xpose.msra.mxu0 0.0
        %1144 = vmatpush.xpose.msra.mxu0 0.0
        %1145 = vmatpush.xpose.msra.mxu0 0.0
        %1146 = vmatpush.xpose.msra.mxu0 0.0
        %1147 = vmatpush.xpose.msra.mxu0 0.0
        %1148 = vmatpush.xpose.msra.mxu0 0.0
        %1149 = vmatpush.xpose.msra.mxu0 0.0
        %1150 = vmatpush.xpose.msra.mxu0 0.0
        %1151 = vmatpush.xpose.msra.mxu0 0.0
        %1152 = vmatpush.xpose.msra.mxu0 0.0
        %1153 = vmatpush.xpose.msra.mxu0 %v1139
        %1154 = vmatpush.xpose.msra.mxu0 %v1136
        %1155 = vmatpush.xpose.msra.mxu0 %v1133
        %1156 = vmatpush.xpose.msra.mxu0 %v1130
        %1157 = vmatmul.f32.gmra.mxu0 %v1118
        %v1158 = vpop.f32.mrf.mxu0
        %v1159 = vadd.f32 0.0, %v1158
        %1160 = vmatmul.f32.gmra.mxu0 %v1121
        %v1161 = vpop.f32.mrf.mxu0
        %v1162 = vadd.f32 0.0, %v1161
        %1163 = vmatmul.f32.gmra.mxu0 %v1124
        %v1164 = vpop.f32.mrf.mxu0
        %v1165 = vadd.f32 0.0, %v1164
        %1166 = vmatmul.f32.gmra.mxu0 %v1127
        %v1167 = vpop.f32.mrf.mxu0
        %v1168 = vadd.f32 0.0, %v1167
        %1169 = vdwg.mxu0
        %v1171 = vsel %vm1116, %v1088, 0
        %v1174 = vsel %vm1116, %v1089, 0
        %v1177 = vsel %vm1116, %v1090, 0
        %v1180 = vsel %vm1116, %v1091, 0
        %v1183 = vsel %vm1116, %v899, 0
        %v1186 = vsel %vm1116, %v902, 0
        %v1189 = vsel %vm1116, %v905, 0
        %v1192 = vsel %vm1116, %v908, 0
        %1194 = vmatpush.xpose.msra.mxu0 0.0
        %1195 = vmatpush.xpose.msra.mxu0 0.0
        %1196 = vmatpush.xpose.msra.mxu0 0.0
        %1197 = vmatpush.xpose.msra.mxu0 0.0
        %1198 = vmatpush.xpose.msra.mxu0 0.0
        %1199 = vmatpush.xpose.msra.mxu0 0.0
        %1200 = vmatpush.xpose.msra.mxu0 0.0
        %1201 = vmatpush.xpose.msra.mxu0 0.0
        %1202 = vmatpush.xpose.msra.mxu0 0.0
        %1203 = vmatpush.xpose.msra.mxu0 0.0
        %1204 = vmatpush.xpose.msra.mxu0 0.0
        %1205 = vmatpush.xpose.msra.mxu0 0.0
        %1206 = vmatpush.xpose.msra.mxu0 %v1192
        %1207 = vmatpush.xpose.msra.mxu0 %v1189
        %1208 = vmatpush.xpose.msra.mxu0 %v1186
        %1209 = vmatpush.xpose.msra.mxu0 %v1183
        %1210 = vmatmul.f32.gmra.mxu0 %v1171
        %v1211 = vpop.f32.mrf.mxu0
        %v1212 = vadd.f32 0.0, %v1211
        %1213 = vmatmul.f32.gmra.mxu0 %v1174
        %v1214 = vpop.f32.mrf.mxu0
        %v1215 = vadd.f32 0.0, %v1214
        %1216 = vmatmul.f32.gmra.mxu0 %v1177
        %v1217 = vpop.f32.mrf.mxu0
        %v1218 = vadd.f32 0.0, %v1217
        %1219 = vmatmul.f32.gmra.mxu0 %v1180
        %v1220 = vpop.f32.mrf.mxu0
        %v1221 = vadd.f32 0.0, %v1220
        %1222 = vdwg.mxu0
        %v1224 = vsel %vm1116, %v1092, 0
        %v1227 = vsel %vm1116, %v1093, 0
        %v1230 = vsel %vm1116, %v1094, 0
        %v1233 = vsel %vm1116, %v1095, 0
        %v1236 = vsel %vm1116, %v928, 0
        %v1239 = vsel %vm1116, %v931, 0
        %v1242 = vsel %vm1116, %v934, 0
        %v1245 = vsel %vm1116, %v937, 0
        %1247 = vmatpush.xpose.msra.mxu0 0.0
        %1248 = vmatpush.xpose.msra.mxu0 0.0
        %1249 = vmatpush.xpose.msra.mxu0 0.0
        %1250 = vmatpush.xpose.msra.mxu0 0.0
        %1251 = vmatpush.xpose.msra.mxu0 0.0
        %1252 = vmatpush.xpose.msra.mxu0 0.0
        %1253 = vmatpush.xpose.msra.mxu0 0.0
        %1254 = vmatpush.xpose.msra.mxu0 0.0
        %1255 = vmatpush.xpose.msra.mxu0 0.0
        %1256 = vmatpush.xpose.msra.mxu0 0.0
        %1257 = vmatpush.xpose.msra.mxu0 0.0
        %1258 = vmatpush.xpose.msra.mxu0 0.0
        %1259 = vmatpush.xpose.msra.mxu0 %v1245
        %1260 = vmatpush.xpose.msra.mxu0 %v1242
        %1261 = vmatpush.xpose.msra.mxu0 %v1239
        %1262 = vmatpush.xpose.msra.mxu0 %v1236
        %1263 = vmatmul.f32.gmra.mxu0 %v1224
        %v1264 = vpop.f32.mrf.mxu0
        %v1265 = vadd.f32 0.0, %v1264
        %1266 = vmatmul.f32.gmra.mxu0 %v1227
        %v1267 = vpop.f32.mrf.mxu0
        %v1268 = vadd.f32 0.0, %v1267
        %1269 = vmatmul.f32.gmra.mxu0 %v1230
        %v1270 = vpop.f32.mrf.mxu0
        %v1271 = vadd.f32 0.0, %v1270
        %1272 = vmatmul.f32.gmra.mxu0 %v1233
        %v1273 = vpop.f32.mrf.mxu0
        %v1274 = vadd.f32 0.0, %v1273
        %1275 = vdwg.mxu0
        %v1277 = vsel %vm1116, %v1096, 0
        %v1280 = vsel %vm1116, %v1097, 0
        %v1283 = vsel %vm1116, %v1098, 0
        %v1286 = vsel %vm1116, %v1099, 0
        %v1289 = vsel %vm1116, %v957, 0
        %v1292 = vsel %vm1116, %v960, 0
        %v1295 = vsel %vm1116, %v963, 0
        %v1298 = vsel %vm1116, %v966, 0
        %1300 = vmatpush.xpose.msra.mxu0 0.0
        %1301 = vmatpush.xpose.msra.mxu0 0.0
        %1302 = vmatpush.xpose.msra.mxu0 0.0
        %1303 = vmatpush.xpose.msra.mxu0 0.0
        %1304 = vmatpush.xpose.msra.mxu0 0.0
        %1305 = vmatpush.xpose.msra.mxu0 0.0
        %1306 = vmatpush.xpose.msra.mxu0 0.0
        %1307 = vmatpush.xpose.msra.mxu0 0.0
        %1308 = vmatpush.xpose.msra.mxu0 0.0
        %1309 = vmatpush.xpose.msra.mxu0 0.0
        %1310 = vmatpush.xpose.msra.mxu0 0.0
        %1311 = vmatpush.xpose.msra.mxu0 0.0
        %1312 = vmatpush.xpose.msra.mxu0 %v1298
        %1313 = vmatpush.xpose.msra.mxu0 %v1295
        %1314 = vmatpush.xpose.msra.mxu0 %v1292
        %1315 = vmatpush.xpose.msra.mxu0 %v1289
        %1316 = vmatmul.f32.gmra.mxu0 %v1277
        %v1317 = vpop.f32.mrf.mxu0
        %v1318 = vadd.f32 0.0, %v1317
        %1319 = vmatmul.f32.gmra.mxu0 %v1280
        %v1320 = vpop.f32.mrf.mxu0
        %v1321 = vadd.f32 0.0, %v1320
        %1322 = vmatmul.f32.gmra.mxu0 %v1283
        %v1323 = vpop.f32.mrf.mxu0
        %v1324 = vadd.f32 0.0, %v1323
        %1325 = vmatmul.f32.gmra.mxu0 %v1286
        %v1326 = vpop.f32.mrf.mxu0
        %v1327 = vadd.f32 0.0, %v1326
        %1328 = vdwg.mxu0
        %v1330 = vsel %vm1116, %v1100, 0
        %v1333 = vsel %vm1116, %v1101, 0
        %v1336 = vsel %vm1116, %v1102, 0
        %v1339 = vsel %vm1116, %v1103, 0
        %v1342 = vsel %vm1116, %v986, 0
        %v1345 = vsel %vm1116, %v989, 0
        %v1348 = vsel %vm1116, %v992, 0
        %v1351 = vsel %vm1116, %v995, 0
        %1353 = vmatpush.xpose.msra.mxu0 0.0
        %1354 = vmatpush.xpose.msra.mxu0 0.0
        %1355 = vmatpush.xpose.msra.mxu0 0.0
        %1356 = vmatpush.xpose.msra.mxu0 0.0
        %1357 = vmatpush.xpose.msra.mxu0 0.0
        %1358 = vmatpush.xpose.msra.mxu0 0.0
        %1359 = vmatpush.xpose.msra.mxu0 0.0
        %1360 = vmatpush.xpose.msra.mxu0 0.0
        %1361 = vmatpush.xpose.msra.mxu0 0.0
        %1362 = vmatpush.xpose.msra.mxu0 0.0
        %1363 = vmatpush.xpose.msra.mxu0 0.0
        %1364 = vmatpush.xpose.msra.mxu0 0.0
        %1365 = vmatpush.xpose.msra.mxu0 %v1351
        %1366 = vmatpush.xpose.msra.mxu0 %v1348
        %1367 = vmatpush.xpose.msra.mxu0 %v1345
        %1368 = vmatpush.xpose.msra.mxu0 %v1342
        %1369 = vmatmul.f32.gmra.mxu0 %v1330
        %v1370 = vpop.f32.mrf.mxu0
        %v1371 = vadd.f32 0.0, %v1370
        %1372 = vmatmul.f32.gmra.mxu0 %v1333
        %v1373 = vpop.f32.mrf.mxu0
        %v1374 = vadd.f32 0.0, %v1373
        %1375 = vmatmul.f32.gmra.mxu0 %v1336
        %v1376 = vpop.f32.mrf.mxu0
        %v1377 = vadd.f32 0.0, %v1376
        %1378 = vmatmul.f32.gmra.mxu0 %v1339
        %v1379 = vpop.f32.mrf.mxu0
        %v1380 = vadd.f32 0.0, %v1379
        %1381 = vdwg.mxu0
        %v1383 = vsel %vm1116, %v1104, 0
        %v1386 = vsel %vm1116, %v1105, 0
        %v1389 = vsel %vm1116, %v1106, 0
        %v1392 = vsel %vm1116, %v1107, 0
        %v1395 = vsel %vm1116, %v1015, 0
        %v1398 = vsel %vm1116, %v1018, 0
        %v1401 = vsel %vm1116, %v1021, 0
        %v1404 = vsel %vm1116, %v1024, 0
        %1406 = vmatpush.xpose.msra.mxu0 0.0
        %1407 = vmatpush.xpose.msra.mxu0 0.0
        %1408 = vmatpush.xpose.msra.mxu0 0.0
        %1409 = vmatpush.xpose.msra.mxu0 0.0
        %1410 = vmatpush.xpose.msra.mxu0 0.0
        %1411 = vmatpush.xpose.msra.mxu0 0.0
        %1412 = vmatpush.xpose.msra.mxu0 0.0
        %1413 = vmatpush.xpose.msra.mxu0 0.0
        %1414 = vmatpush.xpose.msra.mxu0 0.0
        %1415 = vmatpush.xpose.msra.mxu0 0.0
        %1416 = vmatpush.xpose.msra.mxu0 0.0
        %1417 = vmatpush.xpose.msra.mxu0 0.0
        %1418 = vmatpush.xpose.msra.mxu0 %v1404
        %1419 = vmatpush.xpose.msra.mxu0 %v1401
        %1420 = vmatpush.xpose.msra.mxu0 %v1398
        %1421 = vmatpush.xpose.msra.mxu0 %v1395
        %1422 = vmatmul.f32.gmra.mxu0 %v1383
        %v1423 = vpop.f32.mrf.mxu0
        %v1424 = vadd.f32 0.0, %v1423
        %1425 = vmatmul.f32.gmra.mxu0 %v1386
        %v1426 = vpop.f32.mrf.mxu0
        %v1427 = vadd.f32 0.0, %v1426
        %1428 = vmatmul.f32.gmra.mxu0 %v1389
        %v1429 = vpop.f32.mrf.mxu0
        %v1430 = vadd.f32 0.0, %v1429
        %1431 = vmatmul.f32.gmra.mxu0 %v1392
        %v1432 = vpop.f32.mrf.mxu0
        %v1433 = vadd.f32 0.0, %v1432
        %1434 = vdwg.mxu0
        %v1436 = vsel %vm1116, %v1108, 0
        %v1439 = vsel %vm1116, %v1109, 0
        %v1442 = vsel %vm1116, %v1110, 0
        %v1445 = vsel %vm1116, %v1111, 0
        %v1448 = vsel %vm1116, %v1044, 0
        %v1451 = vsel %vm1116, %v1047, 0
        %v1454 = vsel %vm1116, %v1050, 0
        %v1457 = vsel %vm1116, %v1053, 0
        %1459 = vmatpush.xpose.msra.mxu0 0.0
        %1460 = vmatpush.xpose.msra.mxu0 0.0
        %1461 = vmatpush.xpose.msra.mxu0 0.0
        %1462 = vmatpush.xpose.msra.mxu0 0.0
        %1463 = vmatpush.xpose.msra.mxu0 0.0
        %1464 = vmatpush.xpose.msra.mxu0 0.0
        %1465 = vmatpush.xpose.msra.mxu0 0.0
        %1466 = vmatpush.xpose.msra.mxu0 0.0
        %1467 = vmatpush.xpose.msra.mxu0 0.0
        %1468 = vmatpush.xpose.msra.mxu0 0.0
        %1469 = vmatpush.xpose.msra.mxu0 0.0
        %1470 = vmatpush.xpose.msra.mxu0 0.0
        %1471 = vmatpush.xpose.msra.mxu0 %v1457
        %1472 = vmatpush.xpose.msra.mxu0 %v1454
        %1473 = vmatpush.xpose.msra.mxu0 %v1451
        %1474 = vmatpush.xpose.msra.mxu0 %v1448
        %1475 = vmatmul.f32.gmra.mxu0 %v1436
        %v1476 = vpop.f32.mrf.mxu0
        %v1477 = vadd.f32 0.0, %v1476
        %1478 = vmatmul.f32.gmra.mxu0 %v1439
        %v1479 = vpop.f32.mrf.mxu0
        %v1480 = vadd.f32 0.0, %v1479
        %1481 = vmatmul.f32.gmra.mxu0 %v1442
        %v1482 = vpop.f32.mrf.mxu0
        %v1483 = vadd.f32 0.0, %v1482
        %1484 = vmatmul.f32.gmra.mxu0 %v1445
        %v1485 = vpop.f32.mrf.mxu0
        %v1486 = vadd.f32 0.0, %v1485
        %1487 = vdwg.mxu0
        %v1489 = vsel %vm1116, %v1112, 0
        %v1492 = vsel %vm1116, %v1113, 0
        %v1495 = vsel %vm1116, %v1114, 0
        %v1498 = vsel %vm1116, %v1115, 0
        %v1501 = vsel %vm1116, %v1073, 0
        %v1504 = vsel %vm1116, %v1076, 0
        %v1507 = vsel %vm1116, %v1079, 0
        %v1510 = vsel %vm1116, %v1082, 0
        %1512 = vmatpush.xpose.msra.mxu0 0.0
        %1513 = vmatpush.xpose.msra.mxu0 0.0
        %1514 = vmatpush.xpose.msra.mxu0 0.0
        %1515 = vmatpush.xpose.msra.mxu0 0.0
        %1516 = vmatpush.xpose.msra.mxu0 0.0
        %1517 = vmatpush.xpose.msra.mxu0 0.0
        %1518 = vmatpush.xpose.msra.mxu0 0.0
        %1519 = vmatpush.xpose.msra.mxu0 0.0
        %1520 = vmatpush.xpose.msra.mxu0 0.0
        %1521 = vmatpush.xpose.msra.mxu0 0.0
        %1522 = vmatpush.xpose.msra.mxu0 0.0
        %1523 = vmatpush.xpose.msra.mxu0 0.0
        %1524 = vmatpush.xpose.msra.mxu0 %v1510
        %1525 = vmatpush.xpose.msra.mxu0 %v1507
        %1526 = vmatpush.xpose.msra.mxu0 %v1504
        %1527 = vmatpush.xpose.msra.mxu0 %v1501
        %1528 = vmatmul.f32.gmra.mxu0 %v1489
        %v1529 = vpop.f32.mrf.mxu0
        %v1530 = vadd.f32 0.0, %v1529
        %1531 = vmatmul.f32.gmra.mxu0 %v1492
        %v1532 = vpop.f32.mrf.mxu0
        %v1533 = vadd.f32 0.0, %v1532
        %1534 = vmatmul.f32.gmra.mxu0 %v1495
        %v1535 = vpop.f32.mrf.mxu0
        %v1536 = vadd.f32 0.0, %v1535
        %1537 = vmatmul.f32.gmra.mxu0 %v1498
        %v1538 = vpop.f32.mrf.mxu0
        %v1539 = vadd.f32 0.0, %v1538
        %1540 = vdwg.mxu0
        %v1541 = vld [vmem:[#allocation3] sm:$0xff]
        %v1542 = vld [vmem:[#allocation3 + $0x8] sm:$0xff]
        %v1543 = vld [vmem:[#allocation3 + $0x10] sm:$0xff]
        %v1544 = vld [vmem:[#allocation3 + $0x18] sm:$0xff]
        %v1545 = vld [vmem:[#allocation3 + $0x20] sm:$0xff]
        %v1546 = vld [vmem:[#allocation3 + $0x28] sm:$0xff]
        %v1547 = vld [vmem:[#allocation3 + $0x30] sm:$0xff]
        %v1548 = vld [vmem:[#allocation3 + $0x38] sm:$0xff]
        %v1549 = vld [vmem:[#allocation3 + $0x40] sm:$0xff]
        %v1550 = vld [vmem:[#allocation3 + $0x48] sm:$0xff]
        %v1551 = vld [vmem:[#allocation3 + $0x50] sm:$0xff]
        %v1552 = vld [vmem:[#allocation3 + $0x58] sm:$0xff]
        %v1553 = vld [vmem:[#allocation3 + $0x60] sm:$0xff]
        %v1554 = vld [vmem:[#allocation3 + $0x68] sm:$0xff]
        %v1555 = vld [vmem:[#allocation3 + $0x70] sm:$0xff]
        %v1556 = vld [vmem:[#allocation3 + $0x78] sm:$0xff]
        %v1557 = vld [vmem:[#allocation3 + $0x80] sm:$0xff]
        %v1558 = vld [vmem:[#allocation3 + $0x88] sm:$0xff]
        %v1559 = vld [vmem:[#allocation3 + $0x90] sm:$0xff]
        %v1560 = vld [vmem:[#allocation3 + $0x98] sm:$0xff]
        %v1561 = vld [vmem:[#allocation3 + $0xa0] sm:$0xff]
        %v1562 = vld [vmem:[#allocation3 + $0xa8] sm:$0xff]
        %v1563 = vld [vmem:[#allocation3 + $0xb0] sm:$0xff]
        %v1564 = vld [vmem:[#allocation3 + $0xb8] sm:$0xff]
        %v1565 = vld [vmem:[#allocation3 + $0xc0] sm:$0xff]
        %v1566 = vld [vmem:[#allocation3 + $0xc8] sm:$0xff]
        %v1567 = vld [vmem:[#allocation3 + $0xd0] sm:$0xff]
        %v1568 = vld [vmem:[#allocation3 + $0xd8] sm:$0xff]
        %v1569 = vld [vmem:[#allocation3 + $0xe0] sm:$0xff]
        %v1570 = vld [vmem:[#allocation3 + $0xe8] sm:$0xff]
        %v1571 = vld [vmem:[#allocation3 + $0xf0] sm:$0xff]
        %v1572 = vld [vmem:[#allocation3 + $0xf8] sm:$0xff]
        %vm1573 = vcmask 261120
        %v1574 = vsel %vm1573, %v1159, -inf
        %1575 = vmax.xlane.f32.xlu0 %v1574
        %v1576 = vpop.xlane.xlu0 %1575
        %v1577 = vsel %vm1573, %v1162, -inf
        %1578 = vmax.xlane.f32.xlu0 %v1577
        %v1579 = vpop.xlane.xlu0 %1578
        %v1580 = vsel %vm1573, %v1165, -inf
        %1581 = vmax.xlane.f32.xlu0 %v1580
        %v1582 = vpop.xlane.xlu0 %1581
        %v1583 = vsel %vm1573, %v1168, -inf
        %1584 = vmax.xlane.f32.xlu0 %v1583
        %v1585 = vpop.xlane.xlu0 %1584
        %v1586 = vsel %vm1573, %v1212, -inf
        %1587 = vmax.xlane.f32.xlu0 %v1586
        %v1588 = vpop.xlane.xlu0 %1587
        %v1589 = vsel %vm1573, %v1215, -inf
        %1590 = vmax.xlane.f32.xlu0 %v1589
        %v1591 = vpop.xlane.xlu0 %1590
        %v1592 = vsel %vm1573, %v1218, -inf
        %1593 = vmax.xlane.f32.xlu0 %v1592
        %v1594 = vpop.xlane.xlu0 %1593
        %v1595 = vsel %vm1573, %v1221, -inf
        %1596 = vmax.xlane.f32.xlu0 %v1595
        %v1597 = vpop.xlane.xlu0 %1596
        %v1598 = vsel %vm1573, %v1265, -inf
        %1599 = vmax.xlane.f32.xlu0 %v1598
        %v1600 = vpop.xlane.xlu0 %1599
        %v1601 = vsel %vm1573, %v1268, -inf
        %1602 = vmax.xlane.f32.xlu0 %v1601
        %v1603 = vpop.xlane.xlu0 %1602
        %v1604 = vsel %vm1573, %v1271, -inf
        %1605 = vmax.xlane.f32.xlu0 %v1604
        %v1606 = vpop.xlane.xlu0 %1605
        %v1607 = vsel %vm1573, %v1274, -inf
        %1608 = vmax.xlane.f32.xlu0 %v1607
        %v1609 = vpop.xlane.xlu0 %1608
        %v1610 = vsel %vm1573, %v1318, -inf
        %1611 = vmax.xlane.f32.xlu0 %v1610
        %v1612 = vpop.xlane.xlu0 %1611
        %v1613 = vsel %vm1573, %v1321, -inf
        %1614 = vmax.xlane.f32.xlu0 %v1613
        %v1615 = vpop.xlane.xlu0 %1614
        %v1616 = vsel %vm1573, %v1324, -inf
        %1617 = vmax.xlane.f32.xlu0 %v1616
        %v1618 = vpop.xlane.xlu0 %1617
        %v1619 = vsel %vm1573, %v1327, -inf
        %1620 = vmax.xlane.f32.xlu0 %v1619
        %v1621 = vpop.xlane.xlu0 %1620
        %v1622 = vsel %vm1573, %v1371, -inf
        %1623 = vmax.xlane.f32.xlu0 %v1622
        %v1624 = vpop.xlane.xlu0 %1623
        %v1625 = vsel %vm1573, %v1374, -inf
        %1626 = vmax.xlane.f32.xlu0 %v1625
        %v1627 = vpop.xlane.xlu0 %1626
        %v1628 = vsel %vm1573, %v1377, -inf
        %1629 = vmax.xlane.f32.xlu0 %v1628
        %v1630 = vpop.xlane.xlu0 %1629
        %v1631 = vsel %vm1573, %v1380, -inf
        %1632 = vmax.xlane.f32.xlu0 %v1631
        %v1633 = vpop.xlane.xlu0 %1632
        %v1634 = vsel %vm1573, %v1424, -inf
        %1635 = vmax.xlane.f32.xlu0 %v1634
        %v1636 = vpop.xlane.xlu0 %1635
        %v1637 = vsel %vm1573, %v1427, -inf
        %1638 = vmax.xlane.f32.xlu0 %v1637
        %v1639 = vpop.xlane.xlu0 %1638
        %v1640 = vsel %vm1573, %v1430, -inf
        %1641 = vmax.xlane.f32.xlu0 %v1640
        %v1642 = vpop.xlane.xlu0 %1641
        %v1643 = vsel %vm1573, %v1433, -inf
        %1644 = vmax.xlane.f32.xlu0 %v1643
        %v1645 = vpop.xlane.xlu0 %1644
        %v1646 = vsel %vm1573, %v1477, -inf
        %1647 = vmax.xlane.f32.xlu0 %v1646
        %v1648 = vpop.xlane.xlu0 %1647
        %v1649 = vsel %vm1573, %v1480, -inf
        %1650 = vmax.xlane.f32.xlu0 %v1649
        %v1651 = vpop.xlane.xlu0 %1650
        %v1652 = vsel %vm1573, %v1483, -inf
        %1653 = vmax.xlane.f32.xlu0 %v1652
        %v1654 = vpop.xlane.xlu0 %1653
        %v1655 = vsel %vm1573, %v1486, -inf
        %1656 = vmax.xlane.f32.xlu0 %v1655
        %v1657 = vpop.xlane.xlu0 %1656
        %v1658 = vsel %vm1573, %v1530, -inf
        %1659 = vmax.xlane.f32.xlu0 %v1658
        %v1660 = vpop.xlane.xlu0 %1659
        %v1661 = vsel %vm1573, %v1533, -inf
        %1662 = vmax.xlane.f32.xlu0 %v1661
        %v1663 = vpop.xlane.xlu0 %1662
        %v1664 = vsel %vm1573, %v1536, -inf
        %1665 = vmax.xlane.f32.xlu0 %v1664
        %v1666 = vpop.xlane.xlu0 %1665
        %v1667 = vsel %vm1573, %v1539, -inf
        %1668 = vmax.xlane.f32.xlu0 %v1667
        %v1669 = vpop.xlane.xlu0 %1668
        %v1670 = vmax.f32 %v1541, %v1576
        %v1671 = vmax.f32 %v1542, %v1579
        %v1672 = vmax.f32 %v1543, %v1582
        %v1673 = vmax.f32 %v1544, %v1585
        %v1674 = vmax.f32 %v1545, %v1588
        %v1675 = vmax.f32 %v1546, %v1591
        %v1676 = vmax.f32 %v1547, %v1594
        %v1677 = vmax.f32 %v1548, %v1597
        %v1678 = vmax.f32 %v1549, %v1600
        %v1679 = vmax.f32 %v1550, %v1603
        %v1680 = vmax.f32 %v1551, %v1606
        %v1681 = vmax.f32 %v1552, %v1609
        %v1682 = vmax.f32 %v1553, %v1612
        %v1683 = vmax.f32 %v1554, %v1615
        %v1684 = vmax.f32 %v1555, %v1618
        %v1685 = vmax.f32 %v1556, %v1621
        %v1686 = vmax.f32 %v1557, %v1624
        %v1687 = vmax.f32 %v1558, %v1627
        %v1688 = vmax.f32 %v1559, %v1630
        %v1689 = vmax.f32 %v1560, %v1633
        %v1690 = vmax.f32 %v1561, %v1636
        %v1691 = vmax.f32 %v1562, %v1639
        %v1692 = vmax.f32 %v1563, %v1642
        %v1693 = vmax.f32 %v1564, %v1645
        %v1694 = vmax.f32 %v1565, %v1648
        %v1695 = vmax.f32 %v1566, %v1651
        %v1696 = vmax.f32 %v1567, %v1654
        %v1697 = vmax.f32 %v1568, %v1657
        %v1698 = vmax.f32 %v1569, %v1660
        %v1699 = vmax.f32 %v1570, %v1663
        %v1700 = vmax.f32 %v1571, %v1666
        %v1701 = vmax.f32 %v1572, %v1669
        %v1702 = vsub.f32 %v1541, %v1670
        %v1703 = vsub.f32 %v1542, %v1671
        %v1704 = vsub.f32 %v1543, %v1672
        %v1705 = vsub.f32 %v1544, %v1673
        %v1706 = vsub.f32 %v1545, %v1674
        %v1707 = vsub.f32 %v1546, %v1675
        %v1708 = vsub.f32 %v1547, %v1676
        %v1709 = vsub.f32 %v1548, %v1677
        %v1710 = vsub.f32 %v1549, %v1678
        %v1711 = vsub.f32 %v1550, %v1679
        %v1712 = vsub.f32 %v1551, %v1680
        %v1713 = vsub.f32 %v1552, %v1681
        %v1714 = vsub.f32 %v1553, %v1682
        %v1715 = vsub.f32 %v1554, %v1683
        %v1716 = vsub.f32 %v1555, %v1684
        %v1717 = vsub.f32 %v1556, %v1685
        %v1718 = vsub.f32 %v1557, %v1686
        %v1719 = vsub.f32 %v1558, %v1687
        %v1720 = vsub.f32 %v1559, %v1688
        %v1721 = vsub.f32 %v1560, %v1689
        %v1722 = vsub.f32 %v1561, %v1690
        %v1723 = vsub.f32 %v1562, %v1691
        %v1724 = vsub.f32 %v1563, %v1692
        %v1725 = vsub.f32 %v1564, %v1693
        %v1726 = vsub.f32 %v1565, %v1694
        %v1727 = vsub.f32 %v1566, %v1695
        %v1728 = vsub.f32 %v1567, %v1696
        %v1729 = vsub.f32 %v1568, %v1697
        %v1730 = vsub.f32 %v1569, %v1698
        %v1731 = vsub.f32 %v1570, %v1699
        %v1732 = vsub.f32 %v1571, %v1700
        %v1733 = vsub.f32 %v1572, %v1701
        %v1734 = vmul.f32 %v1702, 1.442695
        %v1735 = vpow.pop %v1734
        %v1736 = vmul.f32 %v1703, 1.442695
        %v1737 = vpow.pop %v1736
        %v1738 = vmul.f32 %v1704, 1.442695
        %v1739 = vpow.pop %v1738
        %v1740 = vmul.f32 %v1705, 1.442695
        %v1741 = vpow.pop %v1740
        %v1742 = vmul.f32 %v1706, 1.442695
        %v1743 = vpow.pop %v1742
        %v1744 = vmul.f32 %v1707, 1.442695
        %v1745 = vpow.pop %v1744
        %v1746 = vmul.f32 %v1708, 1.442695
        %v1747 = vpow.pop %v1746
        %v1748 = vmul.f32 %v1709, 1.442695
        %v1749 = vpow.pop %v1748
        %v1750 = vmul.f32 %v1710, 1.442695
        %v1751 = vpow.pop %v1750
        %v1752 = vmul.f32 %v1711, 1.442695
        %v1753 = vpow.pop %v1752
        %v1754 = vmul.f32 %v1712, 1.442695
        %v1755 = vpow.pop %v1754
        %v1756 = vmul.f32 %v1713, 1.442695
        %v1757 = vpow.pop %v1756
        %v1758 = vmul.f32 %v1714, 1.442695
        %v1759 = vpow.pop %v1758
        %v1760 = vmul.f32 %v1715, 1.442695
        %v1761 = vpow.pop %v1760
        %v1762 = vmul.f32 %v1716, 1.442695
        %v1763 = vpow.pop %v1762
        %v1764 = vmul.f32 %v1717, 1.442695
        %v1765 = vpow.pop %v1764
        %v1766 = vmul.f32 %v1718, 1.442695
        %v1767 = vpow.pop %v1766
        %v1768 = vmul.f32 %v1719, 1.442695
        %v1769 = vpow.pop %v1768
        %v1770 = vmul.f32 %v1720, 1.442695
        %v1771 = vpow.pop %v1770
        %v1772 = vmul.f32 %v1721, 1.442695
        %v1773 = vpow.pop %v1772
        %v1774 = vmul.f32 %v1722, 1.442695
        %v1775 = vpow.pop %v1774
        %v1776 = vmul.f32 %v1723, 1.442695
        %v1777 = vpow.pop %v1776
        %v1778 = vmul.f32 %v1724, 1.442695
        %v1779 = vpow.pop %v1778
        %v1780 = vmul.f32 %v1725, 1.442695
        %v1781 = vpow.pop %v1780
        %v1782 = vmul.f32 %v1726, 1.442695
        %v1783 = vpow.pop %v1782
        %v1784 = vmul.f32 %v1727, 1.442695
        %v1785 = vpow.pop %v1784
        %v1786 = vmul.f32 %v1728, 1.442695
        %v1787 = vpow.pop %v1786
        %v1788 = vmul.f32 %v1729, 1.442695
        %v1789 = vpow.pop %v1788
        %v1790 = vmul.f32 %v1730, 1.442695
        %v1791 = vpow.pop %v1790
        %v1792 = vmul.f32 %v1731, 1.442695
        %v1793 = vpow.pop %v1792
        %v1794 = vmul.f32 %v1732, 1.442695
        %v1795 = vpow.pop %v1794
        %v1796 = vmul.f32 %v1733, 1.442695
        %v1797 = vpow.pop %v1796
        %1799 = vset.pattern.permute.xlu0 0
        %1800 = vperm.xlu0 %1799, %v1670
        %v1801 = vpop.permute.xlu0 %1800
        %1804 = vset.pattern.permute.xlu0 0
        %1805 = vperm.xlu0 %1804, %v1671
        %v1806 = vpop.permute.xlu0 %1805
        %1809 = vset.pattern.permute.xlu0 0
        %1810 = vperm.xlu0 %1809, %v1672
        %v1811 = vpop.permute.xlu0 %1810
        %1814 = vset.pattern.permute.xlu0 0
        %1815 = vperm.xlu0 %1814, %v1673
        %v1816 = vpop.permute.xlu0 %1815
        %1819 = vset.pattern.permute.xlu0 0
        %1820 = vperm.xlu0 %1819, %v1674
        %v1821 = vpop.permute.xlu0 %1820
        %1824 = vset.pattern.permute.xlu0 0
        %1825 = vperm.xlu0 %1824, %v1675
        %v1826 = vpop.permute.xlu0 %1825
        %1829 = vset.pattern.permute.xlu0 0
        %1830 = vperm.xlu0 %1829, %v1676
        %v1831 = vpop.permute.xlu0 %1830
        %1834 = vset.pattern.permute.xlu0 0
        %1835 = vperm.xlu0 %1834, %v1677
        %v1836 = vpop.permute.xlu0 %1835
        %1839 = vset.pattern.permute.xlu0 0
        %1840 = vperm.xlu0 %1839, %v1678
        %v1841 = vpop.permute.xlu0 %1840
        %1844 = vset.pattern.permute.xlu0 0
        %1845 = vperm.xlu0 %1844, %v1679
        %v1846 = vpop.permute.xlu0 %1845
        %1849 = vset.pattern.permute.xlu0 0
        %1850 = vperm.xlu0 %1849, %v1680
        %v1851 = vpop.permute.xlu0 %1850
        %1854 = vset.pattern.permute.xlu0 0
        %1855 = vperm.xlu0 %1854, %v1681
        %v1856 = vpop.permute.xlu0 %1855
        %1859 = vset.pattern.permute.xlu0 0
        %1860 = vperm.xlu0 %1859, %v1682
        %v1861 = vpop.permute.xlu0 %1860
        %1864 = vset.pattern.permute.xlu0 0
        %1865 = vperm.xlu0 %1864, %v1683
        %v1866 = vpop.permute.xlu0 %1865
        %1869 = vset.pattern.permute.xlu0 0
        %1870 = vperm.xlu0 %1869, %v1684
        %v1871 = vpop.permute.xlu0 %1870
        %1874 = vset.pattern.permute.xlu0 0
        %1875 = vperm.xlu0 %1874, %v1685
        %v1876 = vpop.permute.xlu0 %1875
        %1879 = vset.pattern.permute.xlu0 0
        %1880 = vperm.xlu0 %1879, %v1686
        %v1881 = vpop.permute.xlu0 %1880
        %1884 = vset.pattern.permute.xlu0 0
        %1885 = vperm.xlu0 %1884, %v1687
        %v1886 = vpop.permute.xlu0 %1885
        %1889 = vset.pattern.permute.xlu0 0
        %1890 = vperm.xlu0 %1889, %v1688
        %v1891 = vpop.permute.xlu0 %1890
        %1894 = vset.pattern.permute.xlu0 0
        %1895 = vperm.xlu0 %1894, %v1689
        %v1896 = vpop.permute.xlu0 %1895
        %1899 = vset.pattern.permute.xlu0 0
        %1900 = vperm.xlu0 %1899, %v1690
        %v1901 = vpop.permute.xlu0 %1900
        %1904 = vset.pattern.permute.xlu0 0
        %1905 = vperm.xlu0 %1904, %v1691
        %v1906 = vpop.permute.xlu0 %1905
        %1909 = vset.pattern.permute.xlu0 0
        %1910 = vperm.xlu0 %1909, %v1692
        %v1911 = vpop.permute.xlu0 %1910
        %1914 = vset.pattern.permute.xlu0 0
        %1915 = vperm.xlu0 %1914, %v1693
        %v1916 = vpop.permute.xlu0 %1915
        %1919 = vset.pattern.permute.xlu0 0
        %1920 = vperm.xlu0 %1919, %v1694
        %v1921 = vpop.permute.xlu0 %1920
        %1924 = vset.pattern.permute.xlu0 0
        %1925 = vperm.xlu0 %1924, %v1695
        %v1926 = vpop.permute.xlu0 %1925
        %1929 = vset.pattern.permute.xlu0 0
        %1930 = vperm.xlu0 %1929, %v1696
        %v1931 = vpop.permute.xlu0 %1930
        %1934 = vset.pattern.permute.xlu0 0
        %1935 = vperm.xlu0 %1934, %v1697
        %v1936 = vpop.permute.xlu0 %1935
        %1939 = vset.pattern.permute.xlu0 0
        %1940 = vperm.xlu0 %1939, %v1698
        %v1941 = vpop.permute.xlu0 %1940
        %1944 = vset.pattern.permute.xlu0 0
        %1945 = vperm.xlu0 %1944, %v1699
        %v1946 = vpop.permute.xlu0 %1945
        %1949 = vset.pattern.permute.xlu0 0
        %1950 = vperm.xlu0 %1949, %v1700
        %v1951 = vpop.permute.xlu0 %1950
        %1954 = vset.pattern.permute.xlu0 0
        %1955 = vperm.xlu0 %1954, %v1701
        %v1956 = vpop.permute.xlu0 %1955
        %v1958 = vsub.f32 %v1159, %v1801
        %v1959 = vsub.f32 %v1162, %v1806
        %v1960 = vsub.f32 %v1165, %v1811
        %v1961 = vsub.f32 %v1168, %v1816
        %v1962 = vsub.f32 %v1212, %v1821
        %v1963 = vsub.f32 %v1215, %v1826
        %v1964 = vsub.f32 %v1218, %v1831
        %v1965 = vsub.f32 %v1221, %v1836
        %v1966 = vsub.f32 %v1265, %v1841
        %v1967 = vsub.f32 %v1268, %v1846
        %v1968 = vsub.f32 %v1271, %v1851
        %v1969 = vsub.f32 %v1274, %v1856
        %v1970 = vsub.f32 %v1318, %v1861
        %v1971 = vsub.f32 %v1321, %v1866
        %v1972 = vsub.f32 %v1324, %v1871
        %v1973 = vsub.f32 %v1327, %v1876
        %v1974 = vsub.f32 %v1371, %v1881
        %v1975 = vsub.f32 %v1374, %v1886
        %v1976 = vsub.f32 %v1377, %v1891
        %v1977 = vsub.f32 %v1380, %v1896
        %v1978 = vsub.f32 %v1424, %v1901
        %v1979 = vsub.f32 %v1427, %v1906
        %v1980 = vsub.f32 %v1430, %v1911
        %v1981 = vsub.f32 %v1433, %v1916
        %v1982 = vsub.f32 %v1477, %v1921
        %v1983 = vsub.f32 %v1480, %v1926
        %v1984 = vsub.f32 %v1483, %v1931
        %v1985 = vsub.f32 %v1486, %v1936
        %v1986 = vsub.f32 %v1530, %v1941
        %v1987 = vsub.f32 %v1533, %v1946
        %v1988 = vsub.f32 %v1536, %v1951
        %v1989 = vsub.f32 %v1539, %v1956
        %v1990 = vmul.f32 %v1958, 1.442695
        %v1991 = vpow.pop %v1990
        %v1992 = vmul.f32 %v1959, 1.442695
        %v1993 = vpow.pop %v1992
        %v1994 = vmul.f32 %v1960, 1.442695
        %v1995 = vpow.pop %v1994
        %v1996 = vmul.f32 %v1961, 1.442695
        %v1997 = vpow.pop %v1996
        %v1998 = vmul.f32 %v1962, 1.442695
        %v1999 = vpow.pop %v1998
        %v2000 = vmul.f32 %v1963, 1.442695
        %v2001 = vpow.pop %v2000
        %v2002 = vmul.f32 %v1964, 1.442695
        %v2003 = vpow.pop %v2002
        %v2004 = vmul.f32 %v1965, 1.442695
        %v2005 = vpow.pop %v2004
        %v2006 = vmul.f32 %v1966, 1.442695
        %v2007 = vpow.pop %v2006
        %v2008 = vmul.f32 %v1967, 1.442695
        %v2009 = vpow.pop %v2008
        %v2010 = vmul.f32 %v1968, 1.442695
        %v2011 = vpow.pop %v2010
        %v2012 = vmul.f32 %v1969, 1.442695
        %v2013 = vpow.pop %v2012
        %v2014 = vmul.f32 %v1970, 1.442695
        %v2015 = vpow.pop %v2014
        %v2016 = vmul.f32 %v1971, 1.442695
        %v2017 = vpow.pop %v2016
        %v2018 = vmul.f32 %v1972, 1.442695
        %v2019 = vpow.pop %v2018
        %v2020 = vmul.f32 %v1973, 1.442695
        %v2021 = vpow.pop %v2020
        %v2022 = vmul.f32 %v1974, 1.442695
        %v2023 = vpow.pop %v2022
        %v2024 = vmul.f32 %v1975, 1.442695
        %v2025 = vpow.pop %v2024
        %v2026 = vmul.f32 %v1976, 1.442695
        %v2027 = vpow.pop %v2026
        %v2028 = vmul.f32 %v1977, 1.442695
        %v2029 = vpow.pop %v2028
        %v2030 = vmul.f32 %v1978, 1.442695
        %v2031 = vpow.pop %v2030
        %v2032 = vmul.f32 %v1979, 1.442695
        %v2033 = vpow.pop %v2032
        %v2034 = vmul.f32 %v1980, 1.442695
        %v2035 = vpow.pop %v2034
        %v2036 = vmul.f32 %v1981, 1.442695
        %v2037 = vpow.pop %v2036
        %v2038 = vmul.f32 %v1982, 1.442695
        %v2039 = vpow.pop %v2038
        %v2040 = vmul.f32 %v1983, 1.442695
        %v2041 = vpow.pop %v2040
        %v2042 = vmul.f32 %v1984, 1.442695
        %v2043 = vpow.pop %v2042
        %v2044 = vmul.f32 %v1985, 1.442695
        %v2045 = vpow.pop %v2044
        %v2046 = vmul.f32 %v1986, 1.442695
        %v2047 = vpow.pop %v2046
        %v2048 = vmul.f32 %v1987, 1.442695
        %v2049 = vpow.pop %v2048
        %v2050 = vmul.f32 %v1988, 1.442695
        %v2051 = vpow.pop %v2050
        %v2052 = vmul.f32 %v1989, 1.442695
        %v2053 = vpow.pop %v2052
        %v2054 = vld [vmem:[#allocation4] sm:$0xff]
        %v2055 = vld [vmem:[#allocation4 + $0x8] sm:$0xff]
        %v2056 = vld [vmem:[#allocation4 + $0x10] sm:$0xff]
        %v2057 = vld [vmem:[#allocation4 + $0x18] sm:$0xff]
        %v2058 = vld [vmem:[#allocation4 + $0x20] sm:$0xff]
        %v2059 = vld [vmem:[#allocation4 + $0x28] sm:$0xff]
        %v2060 = vld [vmem:[#allocation4 + $0x30] sm:$0xff]
        %v2061 = vld [vmem:[#allocation4 + $0x38] sm:$0xff]
        %v2062 = vld [vmem:[#allocation4 + $0x40] sm:$0xff]
        %v2063 = vld [vmem:[#allocation4 + $0x48] sm:$0xff]
        %v2064 = vld [vmem:[#allocation4 + $0x50] sm:$0xff]
        %v2065 = vld [vmem:[#allocation4 + $0x58] sm:$0xff]
        %v2066 = vld [vmem:[#allocation4 + $0x60] sm:$0xff]
        %v2067 = vld [vmem:[#allocation4 + $0x68] sm:$0xff]
        %v2068 = vld [vmem:[#allocation4 + $0x70] sm:$0xff]
        %v2069 = vld [vmem:[#allocation4 + $0x78] sm:$0xff]
        %v2070 = vld [vmem:[#allocation4 + $0x80] sm:$0xff]
        %v2071 = vld [vmem:[#allocation4 + $0x88] sm:$0xff]
        %v2072 = vld [vmem:[#allocation4 + $0x90] sm:$0xff]
        %v2073 = vld [vmem:[#allocation4 + $0x98] sm:$0xff]
        %v2074 = vld [vmem:[#allocation4 + $0xa0] sm:$0xff]
        %v2075 = vld [vmem:[#allocation4 + $0xa8] sm:$0xff]
        %v2076 = vld [vmem:[#allocation4 + $0xb0] sm:$0xff]
        %v2077 = vld [vmem:[#allocation4 + $0xb8] sm:$0xff]
        %v2078 = vld [vmem:[#allocation4 + $0xc0] sm:$0xff]
        %v2079 = vld [vmem:[#allocation4 + $0xc8] sm:$0xff]
        %v2080 = vld [vmem:[#allocation4 + $0xd0] sm:$0xff]
        %v2081 = vld [vmem:[#allocation4 + $0xd8] sm:$0xff]
        %v2082 = vld [vmem:[#allocation4 + $0xe0] sm:$0xff]
        %v2083 = vld [vmem:[#allocation4 + $0xe8] sm:$0xff]
        %v2084 = vld [vmem:[#allocation4 + $0xf0] sm:$0xff]
        %v2085 = vld [vmem:[#allocation4 + $0xf8] sm:$0xff]
        %v2086 = vmul.f32 %v1735, %v2054
        %v2087 = vmul.f32 %v1737, %v2055
        %v2088 = vmul.f32 %v1739, %v2056
        %v2089 = vmul.f32 %v1741, %v2057
        %v2090 = vmul.f32 %v1743, %v2058
        %v2091 = vmul.f32 %v1745, %v2059
        %v2092 = vmul.f32 %v1747, %v2060
        %v2093 = vmul.f32 %v1749, %v2061
        %v2094 = vmul.f32 %v1751, %v2062
        %v2095 = vmul.f32 %v1753, %v2063
        %v2096 = vmul.f32 %v1755, %v2064
        %v2097 = vmul.f32 %v1757, %v2065
        %v2098 = vmul.f32 %v1759, %v2066
        %v2099 = vmul.f32 %v1761, %v2067
        %v2100 = vmul.f32 %v1763, %v2068
        %v2101 = vmul.f32 %v1765, %v2069
        %v2102 = vmul.f32 %v1767, %v2070
        %v2103 = vmul.f32 %v1769, %v2071
        %v2104 = vmul.f32 %v1771, %v2072
        %v2105 = vmul.f32 %v1773, %v2073
        %v2106 = vmul.f32 %v1775, %v2074
        %v2107 = vmul.f32 %v1777, %v2075
        %v2108 = vmul.f32 %v1779, %v2076
        %v2109 = vmul.f32 %v1781, %v2077
        %v2110 = vmul.f32 %v1783, %v2078
        %v2111 = vmul.f32 %v1785, %v2079
        %v2112 = vmul.f32 %v1787, %v2080
        %v2113 = vmul.f32 %v1789, %v2081
        %v2114 = vmul.f32 %v1791, %v2082
        %v2115 = vmul.f32 %v1793, %v2083
        %v2116 = vmul.f32 %v1795, %v2084
        %v2117 = vmul.f32 %v1797, %v2085
        %v2118 = vsel %vm1573, %v1991, 0.0
        %2119 = vadd.xlane.f32.xlu0 %v2118
        %v2120 = vpop.xlane.xlu0 %2119
        %v2121 = vsel %vm1573, %v1993, 0.0
        %2122 = vadd.xlane.f32.xlu0 %v2121
        %v2123 = vpop.xlane.xlu0 %2122
        %v2124 = vsel %vm1573, %v1995, 0.0
        %2125 = vadd.xlane.f32.xlu0 %v2124
        %v2126 = vpop.xlane.xlu0 %2125
        %v2127 = vsel %vm1573, %v1997, 0.0
        %2128 = vadd.xlane.f32.xlu0 %v2127
        %v2129 = vpop.xlane.xlu0 %2128
        %v2130 = vsel %vm1573, %v1999, 0.0
        %2131 = vadd.xlane.f32.xlu0 %v2130
        %v2132 = vpop.xlane.xlu0 %2131
        %v2133 = vsel %vm1573, %v2001, 0.0
        %2134 = vadd.xlane.f32.xlu0 %v2133
        %v2135 = vpop.xlane.xlu0 %2134
        %v2136 = vsel %vm1573, %v2003, 0.0
        %2137 = vadd.xlane.f32.xlu0 %v2136
        %v2138 = vpop.xlane.xlu0 %2137
        %v2139 = vsel %vm1573, %v2005, 0.0
        %2140 = vadd.xlane.f32.xlu0 %v2139
        %v2141 = vpop.xlane.xlu0 %2140
        %v2142 = vsel %vm1573, %v2007, 0.0
        %2143 = vadd.xlane.f32.xlu0 %v2142
        %v2144 = vpop.xlane.xlu0 %2143
        %v2145 = vsel %vm1573, %v2009, 0.0
        %2146 = vadd.xlane.f32.xlu0 %v2145
        %v2147 = vpop.xlane.xlu0 %2146
        %v2148 = vsel %vm1573, %v2011, 0.0
        %2149 = vadd.xlane.f32.xlu0 %v2148
        %v2150 = vpop.xlane.xlu0 %2149
        %v2151 = vsel %vm1573, %v2013, 0.0
        %2152 = vadd.xlane.f32.xlu0 %v2151
        %v2153 = vpop.xlane.xlu0 %2152
        %v2154 = vsel %vm1573, %v2015, 0.0
        %2155 = vadd.xlane.f32.xlu0 %v2154
        %v2156 = vpop.xlane.xlu0 %2155
        %v2157 = vsel %vm1573, %v2017, 0.0
        %2158 = vadd.xlane.f32.xlu0 %v2157
        %v2159 = vpop.xlane.xlu0 %2158
        %v2160 = vsel %vm1573, %v2019, 0.0
        %2161 = vadd.xlane.f32.xlu0 %v2160
        %v2162 = vpop.xlane.xlu0 %2161
        %v2163 = vsel %vm1573, %v2021, 0.0
        %2164 = vadd.xlane.f32.xlu0 %v2163
        %v2165 = vpop.xlane.xlu0 %2164
        %v2166 = vsel %vm1573, %v2023, 0.0
        %2167 = vadd.xlane.f32.xlu0 %v2166
        %v2168 = vpop.xlane.xlu0 %2167
        %v2169 = vsel %vm1573, %v2025, 0.0
        %2170 = vadd.xlane.f32.xlu0 %v2169
        %v2171 = vpop.xlane.xlu0 %2170
        %v2172 = vsel %vm1573, %v2027, 0.0
        %2173 = vadd.xlane.f32.xlu0 %v2172
        %v2174 = vpop.xlane.xlu0 %2173
        %v2175 = vsel %vm1573, %v2029, 0.0
        %2176 = vadd.xlane.f32.xlu0 %v2175
        %v2177 = vpop.xlane.xlu0 %2176
        %v2178 = vsel %vm1573, %v2031, 0.0
        %2179 = vadd.xlane.f32.xlu0 %v2178
        %v2180 = vpop.xlane.xlu0 %2179
        %v2181 = vsel %vm1573, %v2033, 0.0
        %2182 = vadd.xlane.f32.xlu0 %v2181
        %v2183 = vpop.xlane.xlu0 %2182
        %v2184 = vsel %vm1573, %v2035, 0.0
        %2185 = vadd.xlane.f32.xlu0 %v2184
        %v2186 = vpop.xlane.xlu0 %2185
        %v2187 = vsel %vm1573, %v2037, 0.0
        %2188 = vadd.xlane.f32.xlu0 %v2187
        %v2189 = vpop.xlane.xlu0 %2188
        %v2190 = vsel %vm1573, %v2039, 0.0
        %2191 = vadd.xlane.f32.xlu0 %v2190
        %v2192 = vpop.xlane.xlu0 %2191
        %v2193 = vsel %vm1573, %v2041, 0.0
        %2194 = vadd.xlane.f32.xlu0 %v2193
        %v2195 = vpop.xlane.xlu0 %2194
        %v2196 = vsel %vm1573, %v2043, 0.0
        %2197 = vadd.xlane.f32.xlu0 %v2196
        %v2198 = vpop.xlane.xlu0 %2197
        %v2199 = vsel %vm1573, %v2045, 0.0
        %2200 = vadd.xlane.f32.xlu0 %v2199
        %v2201 = vpop.xlane.xlu0 %2200
        %v2202 = vsel %vm1573, %v2047, 0.0
        %2203 = vadd.xlane.f32.xlu0 %v2202
        %v2204 = vpop.xlane.xlu0 %2203
        %v2205 = vsel %vm1573, %v2049, 0.0
        %2206 = vadd.xlane.f32.xlu0 %v2205
        %v2207 = vpop.xlane.xlu0 %2206
        %v2208 = vsel %vm1573, %v2051, 0.0
        %2209 = vadd.xlane.f32.xlu0 %v2208
        %v2210 = vpop.xlane.xlu0 %2209
        %v2211 = vsel %vm1573, %v2053, 0.0
        %2212 = vadd.xlane.f32.xlu0 %v2211
        %v2213 = vpop.xlane.xlu0 %2212
        %v2214 = vadd.f32 %v2086, %v2120
        %v2215 = vadd.f32 %v2087, %v2123
        %v2216 = vadd.f32 %v2088, %v2126
        %v2217 = vadd.f32 %v2089, %v2129
        %v2218 = vadd.f32 %v2090, %v2132
        %v2219 = vadd.f32 %v2091, %v2135
        %v2220 = vadd.f32 %v2092, %v2138
        %v2221 = vadd.f32 %v2093, %v2141
        %v2222 = vadd.f32 %v2094, %v2144
        %v2223 = vadd.f32 %v2095, %v2147
        %v2224 = vadd.f32 %v2096, %v2150
        %v2225 = vadd.f32 %v2097, %v2153
        %v2226 = vadd.f32 %v2098, %v2156
        %v2227 = vadd.f32 %v2099, %v2159
        %v2228 = vadd.f32 %v2100, %v2162
        %v2229 = vadd.f32 %v2101, %v2165
        %v2230 = vadd.f32 %v2102, %v2168
        %v2231 = vadd.f32 %v2103, %v2171
        %v2232 = vadd.f32 %v2104, %v2174
        %v2233 = vadd.f32 %v2105, %v2177
        %v2234 = vadd.f32 %v2106, %v2180
        %v2235 = vadd.f32 %v2107, %v2183
        %v2236 = vadd.f32 %v2108, %v2186
        %v2237 = vadd.f32 %v2109, %v2189
        %v2238 = vadd.f32 %v2110, %v2192
        %v2239 = vadd.f32 %v2111, %v2195
        %v2240 = vadd.f32 %v2112, %v2198
        %v2241 = vadd.f32 %v2113, %v2201
        %v2242 = vadd.f32 %v2114, %v2204
        %v2243 = vadd.f32 %v2115, %v2207
        %v2244 = vadd.f32 %v2116, %v2210
        %v2245 = vadd.f32 %v2117, %v2213
        %vm2246 = vcmask 7168
        %2247 = vst.msk [vmem:[#allocation4] sm:$0xff] %vm2246, %v2214
        %2248 = vst.msk [vmem:[#allocation4 + $0x8] sm:$0xff] %vm2246, %v2215
        %2249 = vst.msk [vmem:[#allocation4 + $0x10] sm:$0xff] %vm2246, %v2216
        %2250 = vst.msk [vmem:[#allocation4 + $0x18] sm:$0xff] %vm2246, %v2217
        %2251 = vst.msk [vmem:[#allocation4 + $0x20] sm:$0xff] %vm2246, %v2218
        %2252 = vst.msk [vmem:[#allocation4 + $0x28] sm:$0xff] %vm2246, %v2219
        %2253 = vst.msk [vmem:[#allocation4 + $0x30] sm:$0xff] %vm2246, %v2220
        %2254 = vst.msk [vmem:[#allocation4 + $0x38] sm:$0xff] %vm2246, %v2221
        %2255 = vst.msk [vmem:[#allocation4 + $0x40] sm:$0xff] %vm2246, %v2222
        %2256 = vst.msk [vmem:[#allocation4 + $0x48] sm:$0xff] %vm2246, %v2223
        %2257 = vst.msk [vmem:[#allocation4 + $0x50] sm:$0xff] %vm2246, %v2224
        %2258 = vst.msk [vmem:[#allocation4 + $0x58] sm:$0xff] %vm2246, %v2225
        %2259 = vst.msk [vmem:[#allocation4 + $0x60] sm:$0xff] %vm2246, %v2226
        %2260 = vst.msk [vmem:[#allocation4 + $0x68] sm:$0xff] %vm2246, %v2227
        %2261 = vst.msk [vmem:[#allocation4 + $0x70] sm:$0xff] %vm2246, %v2228
        %2262 = vst.msk [vmem:[#allocation4 + $0x78] sm:$0xff] %vm2246, %v2229
        %2263 = vst.msk [vmem:[#allocation4 + $0x80] sm:$0xff] %vm2246, %v2230
        %2264 = vst.msk [vmem:[#allocation4 + $0x88] sm:$0xff] %vm2246, %v2231
        %2265 = vst.msk [vmem:[#allocation4 + $0x90] sm:$0xff] %vm2246, %v2232
        %2266 = vst.msk [vmem:[#allocation4 + $0x98] sm:$0xff] %vm2246, %v2233
        %2267 = vst.msk [vmem:[#allocation4 + $0xa0] sm:$0xff] %vm2246, %v2234
        %2268 = vst.msk [vmem:[#allocation4 + $0xa8] sm:$0xff] %vm2246, %v2235
        %2269 = vst.msk [vmem:[#allocation4 + $0xb0] sm:$0xff] %vm2246, %v2236
        %2270 = vst.msk [vmem:[#allocation4 + $0xb8] sm:$0xff] %vm2246, %v2237
        %2271 = vst.msk [vmem:[#allocation4 + $0xc0] sm:$0xff] %vm2246, %v2238
        %2272 = vst.msk [vmem:[#allocation4 + $0xc8] sm:$0xff] %vm2246, %v2239
        %2273 = vst.msk [vmem:[#allocation4 + $0xd0] sm:$0xff] %vm2246, %v2240
        %2274 = vst.msk [vmem:[#allocation4 + $0xd8] sm:$0xff] %vm2246, %v2241
        %2275 = vst.msk [vmem:[#allocation4 + $0xe0] sm:$0xff] %vm2246, %v2242
        %2276 = vst.msk [vmem:[#allocation4 + $0xe8] sm:$0xff] %vm2246, %v2243
        %2277 = vst.msk [vmem:[#allocation4 + $0xf0] sm:$0xff] %vm2246, %v2244
        %2278 = vst.msk [vmem:[#allocation4 + $0xf8] sm:$0xff] %vm2246, %v2245
        %v2279 = vld [vmem:[#allocation5] sm:$0xff]
        %v2280 = vld [vmem:[#allocation5 + $0x8] sm:$0xff]
        %v2281 = vld [vmem:[#allocation5 + $0x10] sm:$0xff]
        %v2282 = vld [vmem:[#allocation5 + $0x18] sm:$0xff]
        %v2283 = vld [vmem:[#allocation5 + $0x20] sm:$0xff]
        %v2284 = vld [vmem:[#allocation5 + $0x28] sm:$0xff]
        %v2285 = vld [vmem:[#allocation5 + $0x30] sm:$0xff]
        %v2286 = vld [vmem:[#allocation5 + $0x38] sm:$0xff]
        %v2287 = vld [vmem:[#allocation5 + $0x40] sm:$0xff]
        %v2288 = vld [vmem:[#allocation5 + $0x48] sm:$0xff]
        %v2289 = vld [vmem:[#allocation5 + $0x50] sm:$0xff]
        %v2290 = vld [vmem:[#allocation5 + $0x58] sm:$0xff]
        %v2291 = vld [vmem:[#allocation5 + $0x60] sm:$0xff]
        %v2292 = vld [vmem:[#allocation5 + $0x68] sm:$0xff]
        %v2293 = vld [vmem:[#allocation5 + $0x70] sm:$0xff]
        %v2294 = vld [vmem:[#allocation5 + $0x78] sm:$0xff]
        %v2295 = vld [vmem:[#allocation5 + $0x80] sm:$0xff]
        %v2296 = vld [vmem:[#allocation5 + $0x88] sm:$0xff]
        %v2297 = vld [vmem:[#allocation5 + $0x90] sm:$0xff]
        %v2298 = vld [vmem:[#allocation5 + $0x98] sm:$0xff]
        %v2299 = vld [vmem:[#allocation5 + $0xa0] sm:$0xff]
        %v2300 = vld [vmem:[#allocation5 + $0xa8] sm:$0xff]
        %v2301 = vld [vmem:[#allocation5 + $0xb0] sm:$0xff]
        %v2302 = vld [vmem:[#allocation5 + $0xb8] sm:$0xff]
        %v2303 = vld [vmem:[#allocation5 + $0xc0] sm:$0xff]
        %v2304 = vld [vmem:[#allocation5 + $0xc8] sm:$0xff]
        %v2305 = vld [vmem:[#allocation5 + $0xd0] sm:$0xff]
        %v2306 = vld [vmem:[#allocation5 + $0xd8] sm:$0xff]
        %v2307 = vld [vmem:[#allocation5 + $0xe0] sm:$0xff]
        %v2308 = vld [vmem:[#allocation5 + $0xe8] sm:$0xff]
        %v2309 = vld [vmem:[#allocation5 + $0xf0] sm:$0xff]
        %v2310 = vld [vmem:[#allocation5 + $0xf8] sm:$0xff]
        %2312 = vset.pattern.permute.xlu0 0
        %2313 = vperm.xlu0 %2312, %v1735
        %v2314 = vpop.permute.xlu0 %2313
        %2317 = vset.pattern.permute.xlu0 0
        %2318 = vperm.xlu0 %2317, %v1737
        %v2319 = vpop.permute.xlu0 %2318
        %2322 = vset.pattern.permute.xlu0 0
        %2323 = vperm.xlu0 %2322, %v1739
        %v2324 = vpop.permute.xlu0 %2323
        %2327 = vset.pattern.permute.xlu0 0
        %2328 = vperm.xlu0 %2327, %v1741
        %v2329 = vpop.permute.xlu0 %2328
        %2332 = vset.pattern.permute.xlu0 0
        %2333 = vperm.xlu0 %2332, %v1743
        %v2334 = vpop.permute.xlu0 %2333
        %2337 = vset.pattern.permute.xlu0 0
        %2338 = vperm.xlu0 %2337, %v1745
        %v2339 = vpop.permute.xlu0 %2338
        %2342 = vset.pattern.permute.xlu0 0
        %2343 = vperm.xlu0 %2342, %v1747
        %v2344 = vpop.permute.xlu0 %2343
        %2347 = vset.pattern.permute.xlu0 0
        %2348 = vperm.xlu0 %2347, %v1749
        %v2349 = vpop.permute.xlu0 %2348
        %2352 = vset.pattern.permute.xlu0 0
        %2353 = vperm.xlu0 %2352, %v1751
        %v2354 = vpop.permute.xlu0 %2353
        %2357 = vset.pattern.permute.xlu0 0
        %2358 = vperm.xlu0 %2357, %v1753
        %v2359 = vpop.permute.xlu0 %2358
        %2362 = vset.pattern.permute.xlu0 0
        %2363 = vperm.xlu0 %2362, %v1755
        %v2364 = vpop.permute.xlu0 %2363
        %2367 = vset.pattern.permute.xlu0 0
        %2368 = vperm.xlu0 %2367, %v1757
        %v2369 = vpop.permute.xlu0 %2368
        %2372 = vset.pattern.permute.xlu0 0
        %2373 = vperm.xlu0 %2372, %v1759
        %v2374 = vpop.permute.xlu0 %2373
        %2377 = vset.pattern.permute.xlu0 0
        %2378 = vperm.xlu0 %2377, %v1761
        %v2379 = vpop.permute.xlu0 %2378
        %2382 = vset.pattern.permute.xlu0 0
        %2383 = vperm.xlu0 %2382, %v1763
        %v2384 = vpop.permute.xlu0 %2383
        %2387 = vset.pattern.permute.xlu0 0
        %2388 = vperm.xlu0 %2387, %v1765
        %v2389 = vpop.permute.xlu0 %2388
        %2392 = vset.pattern.permute.xlu0 0
        %2393 = vperm.xlu0 %2392, %v1767
        %v2394 = vpop.permute.xlu0 %2393
        %2397 = vset.pattern.permute.xlu0 0
        %2398 = vperm.xlu0 %2397, %v1769
        %v2399 = vpop.permute.xlu0 %2398
        %2402 = vset.pattern.permute.xlu0 0
        %2403 = vperm.xlu0 %2402, %v1771
        %v2404 = vpop.permute.xlu0 %2403
        %2407 = vset.pattern.permute.xlu0 0
        %2408 = vperm.xlu0 %2407, %v1773
        %v2409 = vpop.permute.xlu0 %2408
        %2412 = vset.pattern.permute.xlu0 0
        %2413 = vperm.xlu0 %2412, %v1775
        %v2414 = vpop.permute.xlu0 %2413
        %2417 = vset.pattern.permute.xlu0 0
        %2418 = vperm.xlu0 %2417, %v1777
        %v2419 = vpop.permute.xlu0 %2418
        %2422 = vset.pattern.permute.xlu0 0
        %2423 = vperm.xlu0 %2422, %v1779
        %v2424 = vpop.permute.xlu0 %2423
        %2427 = vset.pattern.permute.xlu0 0
        %2428 = vperm.xlu0 %2427, %v1781
        %v2429 = vpop.permute.xlu0 %2428
        %2432 = vset.pattern.permute.xlu0 0
        %2433 = vperm.xlu0 %2432, %v1783
        %v2434 = vpop.permute.xlu0 %2433
        %2437 = vset.pattern.permute.xlu0 0
        %2438 = vperm.xlu0 %2437, %v1785
        %v2439 = vpop.permute.xlu0 %2438
        %2442 = vset.pattern.permute.xlu0 0
        %2443 = vperm.xlu0 %2442, %v1787
        %v2444 = vpop.permute.xlu0 %2443
        %2447 = vset.pattern.permute.xlu0 0
        %2448 = vperm.xlu0 %2447, %v1789
        %v2449 = vpop.permute.xlu0 %2448
        %2452 = vset.pattern.permute.xlu0 0
        %2453 = vperm.xlu0 %2452, %v1791
        %v2454 = vpop.permute.xlu0 %2453
        %2457 = vset.pattern.permute.xlu0 0
        %2458 = vperm.xlu0 %2457, %v1793
        %v2459 = vpop.permute.xlu0 %2458
        %2462 = vset.pattern.permute.xlu0 0
        %2463 = vperm.xlu0 %2462, %v1795
        %v2464 = vpop.permute.xlu0 %2463
        %2467 = vset.pattern.permute.xlu0 0
        %2468 = vperm.xlu0 %2467, %v1797
        %v2469 = vpop.permute.xlu0 %2468
        %v2471 = vmul.f32 %v2314, %v2279
        %v2472 = vmul.f32 %v2319, %v2280
        %v2473 = vmul.f32 %v2324, %v2281
        %v2474 = vmul.f32 %v2329, %v2282
        %v2475 = vmul.f32 %v2334, %v2283
        %v2476 = vmul.f32 %v2339, %v2284
        %v2477 = vmul.f32 %v2344, %v2285
        %v2478 = vmul.f32 %v2349, %v2286
        %v2479 = vmul.f32 %v2354, %v2287
        %v2480 = vmul.f32 %v2359, %v2288
        %v2481 = vmul.f32 %v2364, %v2289
        %v2482 = vmul.f32 %v2369, %v2290
        %v2483 = vmul.f32 %v2374, %v2291
        %v2484 = vmul.f32 %v2379, %v2292
        %v2485 = vmul.f32 %v2384, %v2293
        %v2486 = vmul.f32 %v2389, %v2294
        %v2487 = vmul.f32 %v2394, %v2295
        %v2488 = vmul.f32 %v2399, %v2296
        %v2489 = vmul.f32 %v2404, %v2297
        %v2490 = vmul.f32 %v2409, %v2298
        %v2491 = vmul.f32 %v2414, %v2299
        %v2492 = vmul.f32 %v2419, %v2300
        %v2493 = vmul.f32 %v2424, %v2301
        %v2494 = vmul.f32 %v2429, %v2302
        %v2495 = vmul.f32 %v2434, %v2303
        %v2496 = vmul.f32 %v2439, %v2304
        %v2497 = vmul.f32 %v2444, %v2305
        %v2498 = vmul.f32 %v2449, %v2306
        %v2499 = vmul.f32 %v2454, %v2307
        %v2500 = vmul.f32 %v2459, %v2308
        %v2501 = vmul.f32 %v2464, %v2309
        %v2502 = vmul.f32 %v2469, %v2310
        %2503 = vrot.lane.b32.xlu0 %v870, 120
        %v2504 = vpop.permute.xlu0 %2503
        %2505 = vrot.lane.b32.xlu0 %v873, 120
        %v2506 = vpop.permute.xlu0 %2505
        %2507 = vrot.lane.b32.xlu0 %v876, 120
        %v2508 = vpop.permute.xlu0 %2507
        %2509 = vrot.lane.b32.xlu0 %v879, 120
        %v2510 = vpop.permute.xlu0 %2509
        %v2516 = vsel %vm1573, %v1991, 0
        %v2519 = vsel %vm1573, %v1993, 0
        %v2522 = vsel %vm1573, %v1995, 0
        %v2525 = vsel %vm1573, %v1997, 0
        %2527 = vmatpush.msra.mxu0 0.0
        %2528 = vmatpush.msra.mxu0 0.0
        %2529 = vmatpush.msra.mxu0 0.0
        %2530 = vmatpush.msra.mxu0 0.0
        %2531 = vmatpush.msra.mxu0 0.0
        %2532 = vmatpush.msra.mxu0 0.0
        %2533 = vmatpush.msra.mxu0 0.0
        %2534 = vmatpush.msra.mxu0 0.0
        %2535 = vmatpush.msra.mxu0 0.0
        %2536 = vmatpush.msra.mxu0 0.0
        %2537 = vmatpush.msra.mxu0 0.0
        %2538 = vmatpush.msra.mxu0 0.0
        %2539 = vmatpush.msra.mxu0 %v2510
        %2540 = vmatpush.msra.mxu0 %v2508
        %2541 = vmatpush.msra.mxu0 %v2506
        %2542 = vmatpush.msra.mxu0 %v2504
        %2543 = vmatmul.f32.gmra.mxu0 %v2516
        %v2544 = vpop.f32.mrf.mxu0
        %v2545 = vadd.f32 0.0, %v2544
        %2546 = vmatmul.f32.gmra.mxu0 %v2519
        %v2547 = vpop.f32.mrf.mxu0
        %v2548 = vadd.f32 0.0, %v2547
        %2549 = vmatmul.f32.gmra.mxu0 %v2522
        %v2550 = vpop.f32.mrf.mxu0
        %v2551 = vadd.f32 0.0, %v2550
        %2552 = vmatmul.f32.gmra.mxu0 %v2525
        %v2553 = vpop.f32.mrf.mxu0
        %v2554 = vadd.f32 0.0, %v2553
        %2555 = vdwg.mxu0
        %2556 = vrot.lane.b32.xlu0 %v899, 120
        %v2557 = vpop.permute.xlu0 %2556
        %2558 = vrot.lane.b32.xlu0 %v902, 120
        %v2559 = vpop.permute.xlu0 %2558
        %2560 = vrot.lane.b32.xlu0 %v905, 120
        %v2561 = vpop.permute.xlu0 %2560
        %2562 = vrot.lane.b32.xlu0 %v908, 120
        %v2563 = vpop.permute.xlu0 %2562
        %v2569 = vsel %vm1573, %v1999, 0
        %v2572 = vsel %vm1573, %v2001, 0
        %v2575 = vsel %vm1573, %v2003, 0
        %v2578 = vsel %vm1573, %v2005, 0
        %2580 = vmatpush.msra.mxu0 0.0
        %2581 = vmatpush.msra.mxu0 0.0
        %2582 = vmatpush.msra.mxu0 0.0
        %2583 = vmatpush.msra.mxu0 0.0
        %2584 = vmatpush.msra.mxu0 0.0
        %2585 = vmatpush.msra.mxu0 0.0
        %2586 = vmatpush.msra.mxu0 0.0
        %2587 = vmatpush.msra.mxu0 0.0
        %2588 = vmatpush.msra.mxu0 0.0
        %2589 = vmatpush.msra.mxu0 0.0
        %2590 = vmatpush.msra.mxu0 0.0
        %2591 = vmatpush.msra.mxu0 0.0
        %2592 = vmatpush.msra.mxu0 %v2563
        %2593 = vmatpush.msra.mxu0 %v2561
        %2594 = vmatpush.msra.mxu0 %v2559
        %2595 = vmatpush.msra.mxu0 %v2557
        %2596 = vmatmul.f32.gmra.mxu0 %v2569
        %v2597 = vpop.f32.mrf.mxu0
        %v2598 = vadd.f32 0.0, %v2597
        %2599 = vmatmul.f32.gmra.mxu0 %v2572
        %v2600 = vpop.f32.mrf.mxu0
        %v2601 = vadd.f32 0.0, %v2600
        %2602 = vmatmul.f32.gmra.mxu0 %v2575
        %v2603 = vpop.f32.mrf.mxu0
        %v2604 = vadd.f32 0.0, %v2603
        %2605 = vmatmul.f32.gmra.mxu0 %v2578
        %v2606 = vpop.f32.mrf.mxu0
        %v2607 = vadd.f32 0.0, %v2606
        %2608 = vdwg.mxu0
        %2609 = vrot.lane.b32.xlu0 %v928, 120
        %v2610 = vpop.permute.xlu0 %2609
        %2611 = vrot.lane.b32.xlu0 %v931, 120
        %v2612 = vpop.permute.xlu0 %2611
        %2613 = vrot.lane.b32.xlu0 %v934, 120
        %v2614 = vpop.permute.xlu0 %2613
        %2615 = vrot.lane.b32.xlu0 %v937, 120
        %v2616 = vpop.permute.xlu0 %2615
        %v2622 = vsel %vm1573, %v2007, 0
        %v2625 = vsel %vm1573, %v2009, 0
        %v2628 = vsel %vm1573, %v2011, 0
        %v2631 = vsel %vm1573, %v2013, 0
        %2633 = vmatpush.msra.mxu0 0.0
        %2634 = vmatpush.msra.mxu0 0.0
        %2635 = vmatpush.msra.mxu0 0.0
        %2636 = vmatpush.msra.mxu0 0.0
        %2637 = vmatpush.msra.mxu0 0.0
        %2638 = vmatpush.msra.mxu0 0.0
        %2639 = vmatpush.msra.mxu0 0.0
        %2640 = vmatpush.msra.mxu0 0.0
        %2641 = vmatpush.msra.mxu0 0.0
        %2642 = vmatpush.msra.mxu0 0.0
        %2643 = vmatpush.msra.mxu0 0.0
        %2644 = vmatpush.msra.mxu0 0.0
        %2645 = vmatpush.msra.mxu0 %v2616
        %2646 = vmatpush.msra.mxu0 %v2614
        %2647 = vmatpush.msra.mxu0 %v2612
        %2648 = vmatpush.msra.mxu0 %v2610
        %2649 = vmatmul.f32.gmra.mxu0 %v2622
        %v2650 = vpop.f32.mrf.mxu0
        %v2651 = vadd.f32 0.0, %v2650
        %2652 = vmatmul.f32.gmra.mxu0 %v2625
        %v2653 = vpop.f32.mrf.mxu0
        %v2654 = vadd.f32 0.0, %v2653
        %2655 = vmatmul.f32.gmra.mxu0 %v2628
        %v2656 = vpop.f32.mrf.mxu0
        %v2657 = vadd.f32 0.0, %v2656
        %2658 = vmatmul.f32.gmra.mxu0 %v2631
        %v2659 = vpop.f32.mrf.mxu0
        %v2660 = vadd.f32 0.0, %v2659
        %2661 = vdwg.mxu0
        %2662 = vrot.lane.b32.xlu0 %v957, 120
        %v2663 = vpop.permute.xlu0 %2662
        %2664 = vrot.lane.b32.xlu0 %v960, 120
        %v2665 = vpop.permute.xlu0 %2664
        %2666 = vrot.lane.b32.xlu0 %v963, 120
        %v2667 = vpop.permute.xlu0 %2666
        %2668 = vrot.lane.b32.xlu0 %v966, 120
        %v2669 = vpop.permute.xlu0 %2668
        %v2675 = vsel %vm1573, %v2015, 0
        %v2678 = vsel %vm1573, %v2017, 0
        %v2681 = vsel %vm1573, %v2019, 0
        %v2684 = vsel %vm1573, %v2021, 0
        %2686 = vmatpush.msra.mxu0 0.0
        %2687 = vmatpush.msra.mxu0 0.0
        %2688 = vmatpush.msra.mxu0 0.0
        %2689 = vmatpush.msra.mxu0 0.0
        %2690 = vmatpush.msra.mxu0 0.0
        %2691 = vmatpush.msra.mxu0 0.0
        %2692 = vmatpush.msra.mxu0 0.0
        %2693 = vmatpush.msra.mxu0 0.0
        %2694 = vmatpush.msra.mxu0 0.0
        %2695 = vmatpush.msra.mxu0 0.0
        %2696 = vmatpush.msra.mxu0 0.0
        %2697 = vmatpush.msra.mxu0 0.0
        %2698 = vmatpush.msra.mxu0 %v2669
        %2699 = vmatpush.msra.mxu0 %v2667
        %2700 = vmatpush.msra.mxu0 %v2665
        %2701 = vmatpush.msra.mxu0 %v2663
        %2702 = vmatmul.f32.gmra.mxu0 %v2675
        %v2703 = vpop.f32.mrf.mxu0
        %v2704 = vadd.f32 0.0, %v2703
        %2705 = vmatmul.f32.gmra.mxu0 %v2678
        %v2706 = vpop.f32.mrf.mxu0
        %v2707 = vadd.f32 0.0, %v2706
        %2708 = vmatmul.f32.gmra.mxu0 %v2681
        %v2709 = vpop.f32.mrf.mxu0
        %v2710 = vadd.f32 0.0, %v2709
        %2711 = vmatmul.f32.gmra.mxu0 %v2684
        %v2712 = vpop.f32.mrf.mxu0
        %v2713 = vadd.f32 0.0, %v2712
        %2714 = vdwg.mxu0
        %2715 = vrot.lane.b32.xlu0 %v986, 120
        %v2716 = vpop.permute.xlu0 %2715
        %2717 = vrot.lane.b32.xlu0 %v989, 120
        %v2718 = vpop.permute.xlu0 %2717
        %2719 = vrot.lane.b32.xlu0 %v992, 120
        %v2720 = vpop.permute.xlu0 %2719
        %2721 = vrot.lane.b32.xlu0 %v995, 120
        %v2722 = vpop.permute.xlu0 %2721
        %v2728 = vsel %vm1573, %v2023, 0
        %v2731 = vsel %vm1573, %v2025, 0
        %v2734 = vsel %vm1573, %v2027, 0
        %v2737 = vsel %vm1573, %v2029, 0
        %2739 = vmatpush.msra.mxu0 0.0
        %2740 = vmatpush.msra.mxu0 0.0
        %2741 = vmatpush.msra.mxu0 0.0
        %2742 = vmatpush.msra.mxu0 0.0
        %2743 = vmatpush.msra.mxu0 0.0
        %2744 = vmatpush.msra.mxu0 0.0
        %2745 = vmatpush.msra.mxu0 0.0
        %2746 = vmatpush.msra.mxu0 0.0
        %2747 = vmatpush.msra.mxu0 0.0
        %2748 = vmatpush.msra.mxu0 0.0
        %2749 = vmatpush.msra.mxu0 0.0
        %2750 = vmatpush.msra.mxu0 0.0
        %2751 = vmatpush.msra.mxu0 %v2722
        %2752 = vmatpush.msra.mxu0 %v2720
        %2753 = vmatpush.msra.mxu0 %v2718
        %2754 = vmatpush.msra.mxu0 %v2716
        %2755 = vmatmul.f32.gmra.mxu0 %v2728
        %v2756 = vpop.f32.mrf.mxu0
        %v2757 = vadd.f32 0.0, %v2756
        %2758 = vmatmul.f32.gmra.mxu0 %v2731
        %v2759 = vpop.f32.mrf.mxu0
        %v2760 = vadd.f32 0.0, %v2759
        %2761 = vmatmul.f32.gmra.mxu0 %v2734
        %v2762 = vpop.f32.mrf.mxu0
        %v2763 = vadd.f32 0.0, %v2762
        %2764 = vmatmul.f32.gmra.mxu0 %v2737
        %v2765 = vpop.f32.mrf.mxu0
        %v2766 = vadd.f32 0.0, %v2765
        %2767 = vdwg.mxu0
        %2768 = vrot.lane.b32.xlu0 %v1015, 120
        %v2769 = vpop.permute.xlu0 %2768
        %2770 = vrot.lane.b32.xlu0 %v1018, 120
        %v2771 = vpop.permute.xlu0 %2770
        %2772 = vrot.lane.b32.xlu0 %v1021, 120
        %v2773 = vpop.permute.xlu0 %2772
        %2774 = vrot.lane.b32.xlu0 %v1024, 120
        %v2775 = vpop.permute.xlu0 %2774
        %v2781 = vsel %vm1573, %v2031, 0
        %v2784 = vsel %vm1573, %v2033, 0
        %v2787 = vsel %vm1573, %v2035, 0
        %v2790 = vsel %vm1573, %v2037, 0
        %2792 = vmatpush.msra.mxu0 0.0
        %2793 = vmatpush.msra.mxu0 0.0
        %2794 = vmatpush.msra.mxu0 0.0
        %2795 = vmatpush.msra.mxu0 0.0
        %2796 = vmatpush.msra.mxu0 0.0
        %2797 = vmatpush.msra.mxu0 0.0
        %2798 = vmatpush.msra.mxu0 0.0
        %2799 = vmatpush.msra.mxu0 0.0
        %2800 = vmatpush.msra.mxu0 0.0
        %2801 = vmatpush.msra.mxu0 0.0
        %2802 = vmatpush.msra.mxu0 0.0
        %2803 = vmatpush.msra.mxu0 0.0
        %2804 = vmatpush.msra.mxu0 %v2775
        %2805 = vmatpush.msra.mxu0 %v2773
        %2806 = vmatpush.msra.mxu0 %v2771
        %2807 = vmatpush.msra.mxu0 %v2769
        %2808 = vmatmul.f32.gmra.mxu0 %v2781
        %v2809 = vpop.f32.mrf.mxu0
        %v2810 = vadd.f32 0.0, %v2809
        %2811 = vmatmul.f32.gmra.mxu0 %v2784
        %v2812 = vpop.f32.mrf.mxu0
        %v2813 = vadd.f32 0.0, %v2812
        %2814 = vmatmul.f32.gmra.mxu0 %v2787
        %v2815 = vpop.f32.mrf.mxu0
        %v2816 = vadd.f32 0.0, %v2815
        %2817 = vmatmul.f32.gmra.mxu0 %v2790
        %v2818 = vpop.f32.mrf.mxu0
        %v2819 = vadd.f32 0.0, %v2818
        %2820 = vdwg.mxu0
        %2821 = vrot.lane.b32.xlu0 %v1044, 120
        %v2822 = vpop.permute.xlu0 %2821
        %2823 = vrot.lane.b32.xlu0 %v1047, 120
        %v2824 = vpop.permute.xlu0 %2823
        %2825 = vrot.lane.b32.xlu0 %v1050, 120
        %v2826 = vpop.permute.xlu0 %2825
        %2827 = vrot.lane.b32.xlu0 %v1053, 120
        %v2828 = vpop.permute.xlu0 %2827
        %v2834 = vsel %vm1573, %v2039, 0
        %v2837 = vsel %vm1573, %v2041, 0
        %v2840 = vsel %vm1573, %v2043, 0
        %v2843 = vsel %vm1573, %v2045, 0
        %2845 = vmatpush.msra.mxu0 0.0
        %2846 = vmatpush.msra.mxu0 0.0
        %2847 = vmatpush.msra.mxu0 0.0
        %2848 = vmatpush.msra.mxu0 0.0
        %2849 = vmatpush.msra.mxu0 0.0
        %2850 = vmatpush.msra.mxu0 0.0
        %2851 = vmatpush.msra.mxu0 0.0
        %2852 = vmatpush.msra.mxu0 0.0
        %2853 = vmatpush.msra.mxu0 0.0
        %2854 = vmatpush.msra.mxu0 0.0
        %2855 = vmatpush.msra.mxu0 0.0
        %2856 = vmatpush.msra.mxu0 0.0
        %2857 = vmatpush.msra.mxu0 %v2828
        %2858 = vmatpush.msra.mxu0 %v2826
        %2859 = vmatpush.msra.mxu0 %v2824
        %2860 = vmatpush.msra.mxu0 %v2822
        %2861 = vmatmul.f32.gmra.mxu0 %v2834
        %v2862 = vpop.f32.mrf.mxu0
        %v2863 = vadd.f32 0.0, %v2862
        %2864 = vmatmul.f32.gmra.mxu0 %v2837
        %v2865 = vpop.f32.mrf.mxu0
        %v2866 = vadd.f32 0.0, %v2865
        %2867 = vmatmul.f32.gmra.mxu0 %v2840
        %v2868 = vpop.f32.mrf.mxu0
        %v2869 = vadd.f32 0.0, %v2868
        %2870 = vmatmul.f32.gmra.mxu0 %v2843
        %v2871 = vpop.f32.mrf.mxu0
        %v2872 = vadd.f32 0.0, %v2871
        %2873 = vdwg.mxu0
        %2874 = vrot.lane.b32.xlu0 %v1073, 120
        %v2875 = vpop.permute.xlu0 %2874
        %2876 = vrot.lane.b32.xlu0 %v1076, 120
        %v2877 = vpop.permute.xlu0 %2876
        %2878 = vrot.lane.b32.xlu0 %v1079, 120
        %v2879 = vpop.permute.xlu0 %2878
        %2880 = vrot.lane.b32.xlu0 %v1082, 120
        %v2881 = vpop.permute.xlu0 %2880
        %v2887 = vsel %vm1573, %v2047, 0
        %v2890 = vsel %vm1573, %v2049, 0
        %v2893 = vsel %vm1573, %v2051, 0
        %v2896 = vsel %vm1573, %v2053, 0
        %2898 = vmatpush.msra.mxu0 0.0
        %2899 = vmatpush.msra.mxu0 0.0
        %2900 = vmatpush.msra.mxu0 0.0
        %2901 = vmatpush.msra.mxu0 0.0
        %2902 = vmatpush.msra.mxu0 0.0
        %2903 = vmatpush.msra.mxu0 0.0
        %2904 = vmatpush.msra.mxu0 0.0
        %2905 = vmatpush.msra.mxu0 0.0
        %2906 = vmatpush.msra.mxu0 0.0
        %2907 = vmatpush.msra.mxu0 0.0
        %2908 = vmatpush.msra.mxu0 0.0
        %2909 = vmatpush.msra.mxu0 0.0
        %2910 = vmatpush.msra.mxu0 %v2881
        %2911 = vmatpush.msra.mxu0 %v2879
        %2912 = vmatpush.msra.mxu0 %v2877
        %2913 = vmatpush.msra.mxu0 %v2875
        %2914 = vmatmul.f32.gmra.mxu0 %v2887
        %v2915 = vpop.f32.mrf.mxu0
        %v2916 = vadd.f32 0.0, %v2915
        %2917 = vmatmul.f32.gmra.mxu0 %v2890
        %v2918 = vpop.f32.mrf.mxu0
        %v2919 = vadd.f32 0.0, %v2918
        %2920 = vmatmul.f32.gmra.mxu0 %v2893
        %v2921 = vpop.f32.mrf.mxu0
        %v2922 = vadd.f32 0.0, %v2921
        %2923 = vmatmul.f32.gmra.mxu0 %v2896
        %v2924 = vpop.f32.mrf.mxu0
        %v2925 = vadd.f32 0.0, %v2924
        %2926 = vdwg.mxu0
        %v2927 = vadd.f32 %v2471, %v2545
        %v2928 = vadd.f32 %v2472, %v2548
        %v2929 = vadd.f32 %v2473, %v2551
        %v2930 = vadd.f32 %v2474, %v2554
        %v2931 = vadd.f32 %v2475, %v2598
        %v2932 = vadd.f32 %v2476, %v2601
        %v2933 = vadd.f32 %v2477, %v2604
        %v2934 = vadd.f32 %v2478, %v2607
        %v2935 = vadd.f32 %v2479, %v2651
        %v2936 = vadd.f32 %v2480, %v2654
        %v2937 = vadd.f32 %v2481, %v2657
        %v2938 = vadd.f32 %v2482, %v2660
        %v2939 = vadd.f32 %v2483, %v2704
        %v2940 = vadd.f32 %v2484, %v2707
        %v2941 = vadd.f32 %v2485, %v2710
        %v2942 = vadd.f32 %v2486, %v2713
        %v2943 = vadd.f32 %v2487, %v2757
        %v2944 = vadd.f32 %v2488, %v2760
        %v2945 = vadd.f32 %v2489, %v2763
        %v2946 = vadd.f32 %v2490, %v2766
        %v2947 = vadd.f32 %v2491, %v2810
        %v2948 = vadd.f32 %v2492, %v2813
        %v2949 = vadd.f32 %v2493, %v2816
        %v2950 = vadd.f32 %v2494, %v2819
        %v2951 = vadd.f32 %v2495, %v2863
        %v2952 = vadd.f32 %v2496, %v2866
        %v2953 = vadd.f32 %v2497, %v2869
        %v2954 = vadd.f32 %v2498, %v2872
        %v2955 = vadd.f32 %v2499, %v2916
        %v2956 = vadd.f32 %v2500, %v2919
        %v2957 = vadd.f32 %v2501, %v2922
        %v2958 = vadd.f32 %v2502, %v2925
        %2959 = vst.msk [vmem:[#allocation5] sm:$0xff] %vm1116, %v2927
        %2960 = vst.msk [vmem:[#allocation5 + $0x8] sm:$0xff] %vm1116, %v2928
        %2961 = vst.msk [vmem:[#allocation5 + $0x10] sm:$0xff] %vm1116, %v2929
        %2962 = vst.msk [vmem:[#allocation5 + $0x18] sm:$0xff] %vm1116, %v2930
        %2963 = vst.msk [vmem:[#allocation5 + $0x20] sm:$0xff] %vm1116, %v2931
        %2964 = vst.msk [vmem:[#allocation5 + $0x28] sm:$0xff] %vm1116, %v2932
        %2965 = vst.msk [vmem:[#allocation5 + $0x30] sm:$0xff] %vm1116, %v2933
        %2966 = vst.msk [vmem:[#allocation5 + $0x38] sm:$0xff] %vm1116, %v2934
        %2967 = vst.msk [vmem:[#allocation5 + $0x40] sm:$0xff] %vm1116, %v2935
        %2968 = vst.msk [vmem:[#allocation5 + $0x48] sm:$0xff] %vm1116, %v2936
        %2969 = vst.msk [vmem:[#allocation5 + $0x50] sm:$0xff] %vm1116, %v2937
        %2970 = vst.msk [vmem:[#allocation5 + $0x58] sm:$0xff] %vm1116, %v2938
        %2971 = vst.msk [vmem:[#allocation5 + $0x60] sm:$0xff] %vm1116, %v2939
        %2972 = vst.msk [vmem:[#allocation5 + $0x68] sm:$0xff] %vm1116, %v2940
        %2973 = vst.msk [vmem:[#allocation5 + $0x70] sm:$0xff] %vm1116, %v2941
        %2974 = vst.msk [vmem:[#allocation5 + $0x78] sm:$0xff] %vm1116, %v2942
        %2975 = vst.msk [vmem:[#allocation5 + $0x80] sm:$0xff] %vm1116, %v2943
        %2976 = vst.msk [vmem:[#allocation5 + $0x88] sm:$0xff] %vm1116, %v2944
        %2977 = vst.msk [vmem:[#allocation5 + $0x90] sm:$0xff] %vm1116, %v2945
        %2978 = vst.msk [vmem:[#allocation5 + $0x98] sm:$0xff] %vm1116, %v2946
        %2979 = vst.msk [vmem:[#allocation5 + $0xa0] sm:$0xff] %vm1116, %v2947
        %2980 = vst.msk [vmem:[#allocation5 + $0xa8] sm:$0xff] %vm1116, %v2948
        %2981 = vst.msk [vmem:[#allocation5 + $0xb0] sm:$0xff] %vm1116, %v2949
        %2982 = vst.msk [vmem:[#allocation5 + $0xb8] sm:$0xff] %vm1116, %v2950
        %2983 = vst.msk [vmem:[#allocation5 + $0xc0] sm:$0xff] %vm1116, %v2951
        %2984 = vst.msk [vmem:[#allocation5 + $0xc8] sm:$0xff] %vm1116, %v2952
        %2985 = vst.msk [vmem:[#allocation5 + $0xd0] sm:$0xff] %vm1116, %v2953
        %2986 = vst.msk [vmem:[#allocation5 + $0xd8] sm:$0xff] %vm1116, %v2954
        %2987 = vst.msk [vmem:[#allocation5 + $0xe0] sm:$0xff] %vm1116, %v2955
        %2988 = vst.msk [vmem:[#allocation5 + $0xe8] sm:$0xff] %vm1116, %v2956
        %2989 = vst.msk [vmem:[#allocation5 + $0xf0] sm:$0xff] %vm1116, %v2957
        %2990 = vst.msk [vmem:[#allocation5 + $0xf8] sm:$0xff] %vm1116, %v2958
        %2991 = vst.msk [vmem:[#allocation3] sm:$0xff] %vm2246, %v1670
        %2992 = vst.msk [vmem:[#allocation3 + $0x8] sm:$0xff] %vm2246, %v1671
        %2993 = vst.msk [vmem:[#allocation3 + $0x10] sm:$0xff] %vm2246, %v1672
        %2994 = vst.msk [vmem:[#allocation3 + $0x18] sm:$0xff] %vm2246, %v1673
        %2995 = vst.msk [vmem:[#allocation3 + $0x20] sm:$0xff] %vm2246, %v1674
        %2996 = vst.msk [vmem:[#allocation3 + $0x28] sm:$0xff] %vm2246, %v1675
        %2997 = vst.msk [vmem:[#allocation3 + $0x30] sm:$0xff] %vm2246, %v1676
        %2998 = vst.msk [vmem:[#allocation3 + $0x38] sm:$0xff] %vm2246, %v1677
        %2999 = vst.msk [vmem:[#allocation3 + $0x40] sm:$0xff] %vm2246, %v1678
        %3000 = vst.msk [vmem:[#allocation3 + $0x48] sm:$0xff] %vm2246, %v1679
        %3001 = vst.msk [vmem:[#allocation3 + $0x50] sm:$0xff] %vm2246, %v1680
        %3002 = vst.msk [vmem:[#allocation3 + $0x58] sm:$0xff] %vm2246, %v1681
        %3003 = vst.msk [vmem:[#allocation3 + $0x60] sm:$0xff] %vm2246, %v1682
        %3004 = vst.msk [vmem:[#allocation3 + $0x68] sm:$0xff] %vm2246, %v1683
        %3005 = vst.msk [vmem:[#allocation3 + $0x70] sm:$0xff] %vm2246, %v1684
        %3006 = vst.msk [vmem:[#allocation3 + $0x78] sm:$0xff] %vm2246, %v1685
        %3007 = vst.msk [vmem:[#allocation3 + $0x80] sm:$0xff] %vm2246, %v1686
        %3008 = vst.msk [vmem:[#allocation3 + $0x88] sm:$0xff] %vm2246, %v1687
        %3009 = vst.msk [vmem:[#allocation3 + $0x90] sm:$0xff] %vm2246, %v1688
        %3010 = vst.msk [vmem:[#allocation3 + $0x98] sm:$0xff] %vm2246, %v1689
        %3011 = vst.msk [vmem:[#allocation3 + $0xa0] sm:$0xff] %vm2246, %v1690
        %3012 = vst.msk [vmem:[#allocation3 + $0xa8] sm:$0xff] %vm2246, %v1691
        %3013 = vst.msk [vmem:[#allocation3 + $0xb0] sm:$0xff] %vm2246, %v1692
        %3014 = vst.msk [vmem:[#allocation3 + $0xb8] sm:$0xff] %vm2246, %v1693
        %3015 = vst.msk [vmem:[#allocation3 + $0xc0] sm:$0xff] %vm2246, %v1694
        %3016 = vst.msk [vmem:[#allocation3 + $0xc8] sm:$0xff] %vm2246, %v1695
        %3017 = vst.msk [vmem:[#allocation3 + $0xd0] sm:$0xff] %vm2246, %v1696
        %3018 = vst.msk [vmem:[#allocation3 + $0xd8] sm:$0xff] %vm2246, %v1697
        %3019 = vst.msk [vmem:[#allocation3 + $0xe0] sm:$0xff] %vm2246, %v1698
        %3020 = vst.msk [vmem:[#allocation3 + $0xe8] sm:$0xff] %vm2246, %v1699
        %3021 = vst.msk [vmem:[#allocation3 + $0xf0] sm:$0xff] %vm2246, %v1700
        %3022 = vst.msk [vmem:[#allocation3 + $0xf8] sm:$0xff] %vm2246, %v1701
        %p3023 = scmp.eq.s32.totalorder %s27, 1
        // Predicated region
        $region49: #{tpu_custom_call.1} parent=43 // pred_check
          %p3024 = pneg %p3023
        $region50: #{tpu_custom_call.1} parent=43 // pred_check_branch
          %3026 = sbr.rel (%p3024) target = $region52
        $region51: #{tpu_custom_call.1} parent=43 // pred_region
          %v3027 = vld [vmem:[#allocation4] sm:$0xff]
          %v3028 = vld [vmem:[#allocation4 + $0x8] sm:$0xff]
          %v3029 = vld [vmem:[#allocation4 + $0x10] sm:$0xff]
          %v3030 = vld [vmem:[#allocation4 + $0x18] sm:$0xff]
          %v3031 = vld [vmem:[#allocation4 + $0x20] sm:$0xff]
          %v3032 = vld [vmem:[#allocation4 + $0x28] sm:$0xff]
          %v3033 = vld [vmem:[#allocation4 + $0x30] sm:$0xff]
          %v3034 = vld [vmem:[#allocation4 + $0x38] sm:$0xff]
          %v3035 = vld [vmem:[#allocation4 + $0x40] sm:$0xff]
          %v3036 = vld [vmem:[#allocation4 + $0x48] sm:$0xff]
          %v3037 = vld [vmem:[#allocation4 + $0x50] sm:$0xff]
          %v3038 = vld [vmem:[#allocation4 + $0x58] sm:$0xff]
          %v3039 = vld [vmem:[#allocation4 + $0x60] sm:$0xff]
          %v3040 = vld [vmem:[#allocation4 + $0x68] sm:$0xff]
          %v3041 = vld [vmem:[#allocation4 + $0x70] sm:$0xff]
          %v3042 = vld [vmem:[#allocation4 + $0x78] sm:$0xff]
          %v3043 = vld [vmem:[#allocation4 + $0x80] sm:$0xff]
          %v3044 = vld [vmem:[#allocation4 + $0x88] sm:$0xff]
          %v3045 = vld [vmem:[#allocation4 + $0x90] sm:$0xff]
          %v3046 = vld [vmem:[#allocation4 + $0x98] sm:$0xff]
          %v3047 = vld [vmem:[#allocation4 + $0xa0] sm:$0xff]
          %v3048 = vld [vmem:[#allocation4 + $0xa8] sm:$0xff]
          %v3049 = vld [vmem:[#allocation4 + $0xb0] sm:$0xff]
          %v3050 = vld [vmem:[#allocation4 + $0xb8] sm:$0xff]
          %v3051 = vld [vmem:[#allocation4 + $0xc0] sm:$0xff]
          %v3052 = vld [vmem:[#allocation4 + $0xc8] sm:$0xff]
          %v3053 = vld [vmem:[#allocation4 + $0xd0] sm:$0xff]
          %v3054 = vld [vmem:[#allocation4 + $0xd8] sm:$0xff]
          %v3055 = vld [vmem:[#allocation4 + $0xe0] sm:$0xff]
          %v3056 = vld [vmem:[#allocation4 + $0xe8] sm:$0xff]
          %v3057 = vld [vmem:[#allocation4 + $0xf0] sm:$0xff]
          %v3058 = vld [vmem:[#allocation4 + $0xf8] sm:$0xff]
          %v3059 = vrcp.pop %v3027
          %v3060 = vmul.f32 %v3027, %v3059
          %v3061 = vsub.f32 1.0, %v3060
          %v3062 = vmul.f32 %v3059, %v3061
          %v3063 = vadd.f32 %v3059, %v3062
          %vm3064 = vweird.f32 %v3027
          %vm3065 = vweird.f32 %v3059
          %vm3066 = vmor %vm3064, %vm3065
          %v3067 = vsel %vm3066, %v3059, %v3063
          %v3068 = vand.u32 2147483647, %v3027
          %vm3069 = vcmp.eq.f32.partialorder %v3068, 8.507059e+37
          %v3070 = vand.u32 %v3027, 2147483648
          %v3071 = vor.u32 1.1754944e-38, %v3070
          %v3072 = vsel %vm3069, %v3071, %v3067
          %v3073 = vrcp.pop %v3028
          %v3074 = vmul.f32 %v3028, %v3073
          %v3075 = vsub.f32 1.0, %v3074
          %v3076 = vmul.f32 %v3073, %v3075
          %v3077 = vadd.f32 %v3073, %v3076
          %vm3078 = vweird.f32 %v3028
          %vm3079 = vweird.f32 %v3073
          %vm3080 = vmor %vm3078, %vm3079
          %v3081 = vsel %vm3080, %v3073, %v3077
          %v3082 = vand.u32 2147483647, %v3028
          %vm3083 = vcmp.eq.f32.partialorder %v3082, 8.507059e+37
          %v3084 = vand.u32 %v3028, 2147483648
          %v3085 = vor.u32 1.1754944e-38, %v3084
          %v3086 = vsel %vm3083, %v3085, %v3081
          %v3087 = vrcp.pop %v3029
          %v3088 = vmul.f32 %v3029, %v3087
          %v3089 = vsub.f32 1.0, %v3088
          %v3090 = vmul.f32 %v3087, %v3089
          %v3091 = vadd.f32 %v3087, %v3090
          %vm3092 = vweird.f32 %v3029
          %vm3093 = vweird.f32 %v3087
          %vm3094 = vmor %vm3092, %vm3093
          %v3095 = vsel %vm3094, %v3087, %v3091
          %v3096 = vand.u32 2147483647, %v3029
          %vm3097 = vcmp.eq.f32.partialorder %v3096, 8.507059e+37
          %v3098 = vand.u32 %v3029, 2147483648
          %v3099 = vor.u32 1.1754944e-38, %v3098
          %v3100 = vsel %vm3097, %v3099, %v3095
          %v3101 = vrcp.pop %v3030
          %v3102 = vmul.f32 %v3030, %v3101
          %v3103 = vsub.f32 1.0, %v3102
          %v3104 = vmul.f32 %v3101, %v3103
          %v3105 = vadd.f32 %v3101, %v3104
          %vm3106 = vweird.f32 %v3030
          %vm3107 = vweird.f32 %v3101
          %vm3108 = vmor %vm3106, %vm3107
          %v3109 = vsel %vm3108, %v3101, %v3105
          %v3110 = vand.u32 2147483647, %v3030
          %vm3111 = vcmp.eq.f32.partialorder %v3110, 8.507059e+37
          %v3112 = vand.u32 %v3030, 2147483648
          %v3113 = vor.u32 1.1754944e-38, %v3112
          %v3114 = vsel %vm3111, %v3113, %v3109
          %v3115 = vrcp.pop %v3031
          %v3116 = vmul.f32 %v3031, %v3115
          %v3117 = vsub.f32 1.0, %v3116
          %v3118 = vmul.f32 %v3115, %v3117
          %v3119 = vadd.f32 %v3115, %v3118
          %vm3120 = vweird.f32 %v3031
          %vm3121 = vweird.f32 %v3115
          %vm3122 = vmor %vm3120, %vm3121
          %v3123 = vsel %vm3122, %v3115, %v3119
          %v3124 = vand.u32 2147483647, %v3031
          %vm3125 = vcmp.eq.f32.partialorder %v3124, 8.507059e+37
          %v3126 = vand.u32 %v3031, 2147483648
          %v3127 = vor.u32 1.1754944e-38, %v3126
          %v3128 = vsel %vm3125, %v3127, %v3123
          %v3129 = vrcp.pop %v3032
          %v3130 = vmul.f32 %v3032, %v3129
          %v3131 = vsub.f32 1.0, %v3130
          %v3132 = vmul.f32 %v3129, %v3131
          %v3133 = vadd.f32 %v3129, %v3132
          %vm3134 = vweird.f32 %v3032
          %vm3135 = vweird.f32 %v3129
          %vm3136 = vmor %vm3134, %vm3135
          %v3137 = vsel %vm3136, %v3129, %v3133
          %v3138 = vand.u32 2147483647, %v3032
          %vm3139 = vcmp.eq.f32.partialorder %v3138, 8.507059e+37
          %v3140 = vand.u32 %v3032, 2147483648
          %v3141 = vor.u32 1.1754944e-38, %v3140
          %v3142 = vsel %vm3139, %v3141, %v3137
          %v3143 = vrcp.pop %v3033
          %v3144 = vmul.f32 %v3033, %v3143
          %v3145 = vsub.f32 1.0, %v3144
          %v3146 = vmul.f32 %v3143, %v3145
          %v3147 = vadd.f32 %v3143, %v3146
          %vm3148 = vweird.f32 %v3033
          %vm3149 = vweird.f32 %v3143
          %vm3150 = vmor %vm3148, %vm3149
          %v3151 = vsel %vm3150, %v3143, %v3147
          %v3152 = vand.u32 2147483647, %v3033
          %vm3153 = vcmp.eq.f32.partialorder %v3152, 8.507059e+37
          %v3154 = vand.u32 %v3033, 2147483648
          %v3155 = vor.u32 1.1754944e-38, %v3154
          %v3156 = vsel %vm3153, %v3155, %v3151
          %v3157 = vrcp.pop %v3034
          %v3158 = vmul.f32 %v3034, %v3157
          %v3159 = vsub.f32 1.0, %v3158
          %v3160 = vmul.f32 %v3157, %v3159
          %v3161 = vadd.f32 %v3157, %v3160
          %vm3162 = vweird.f32 %v3034
          %vm3163 = vweird.f32 %v3157
          %vm3164 = vmor %vm3162, %vm3163
          %v3165 = vsel %vm3164, %v3157, %v3161
          %v3166 = vand.u32 2147483647, %v3034
          %vm3167 = vcmp.eq.f32.partialorder %v3166, 8.507059e+37
          %v3168 = vand.u32 %v3034, 2147483648
          %v3169 = vor.u32 1.1754944e-38, %v3168
          %v3170 = vsel %vm3167, %v3169, %v3165
          %v3171 = vrcp.pop %v3035
          %v3172 = vmul.f32 %v3035, %v3171
          %v3173 = vsub.f32 1.0, %v3172
          %v3174 = vmul.f32 %v3171, %v3173
          %v3175 = vadd.f32 %v3171, %v3174
          %vm3176 = vweird.f32 %v3035
          %vm3177 = vweird.f32 %v3171
          %vm3178 = vmor %vm3176, %vm3177
          %v3179 = vsel %vm3178, %v3171, %v3175
          %v3180 = vand.u32 2147483647, %v3035
          %vm3181 = vcmp.eq.f32.partialorder %v3180, 8.507059e+37
          %v3182 = vand.u32 %v3035, 2147483648
          %v3183 = vor.u32 1.1754944e-38, %v3182
          %v3184 = vsel %vm3181, %v3183, %v3179
          %v3185 = vrcp.pop %v3036
          %v3186 = vmul.f32 %v3036, %v3185
          %v3187 = vsub.f32 1.0, %v3186
          %v3188 = vmul.f32 %v3185, %v3187
          %v3189 = vadd.f32 %v3185, %v3188
          %vm3190 = vweird.f32 %v3036
          %vm3191 = vweird.f32 %v3185
          %vm3192 = vmor %vm3190, %vm3191
          %v3193 = vsel %vm3192, %v3185, %v3189
          %v3194 = vand.u32 2147483647, %v3036
          %vm3195 = vcmp.eq.f32.partialorder %v3194, 8.507059e+37
          %v3196 = vand.u32 %v3036, 2147483648
          %v3197 = vor.u32 1.1754944e-38, %v3196
          %v3198 = vsel %vm3195, %v3197, %v3193
          %v3199 = vrcp.pop %v3037
          %v3200 = vmul.f32 %v3037, %v3199
          %v3201 = vsub.f32 1.0, %v3200
          %v3202 = vmul.f32 %v3199, %v3201
          %v3203 = vadd.f32 %v3199, %v3202
          %vm3204 = vweird.f32 %v3037
          %vm3205 = vweird.f32 %v3199
          %vm3206 = vmor %vm3204, %vm3205
          %v3207 = vsel %vm3206, %v3199, %v3203
          %v3208 = vand.u32 2147483647, %v3037
          %vm3209 = vcmp.eq.f32.partialorder %v3208, 8.507059e+37
          %v3210 = vand.u32 %v3037, 2147483648
          %v3211 = vor.u32 1.1754944e-38, %v3210
          %v3212 = vsel %vm3209, %v3211, %v3207
          %v3213 = vrcp.pop %v3038
          %v3214 = vmul.f32 %v3038, %v3213
          %v3215 = vsub.f32 1.0, %v3214
          %v3216 = vmul.f32 %v3213, %v3215
          %v3217 = vadd.f32 %v3213, %v3216
          %vm3218 = vweird.f32 %v3038
          %vm3219 = vweird.f32 %v3213
          %vm3220 = vmor %vm3218, %vm3219
          %v3221 = vsel %vm3220, %v3213, %v3217
          %v3222 = vand.u32 2147483647, %v3038
          %vm3223 = vcmp.eq.f32.partialorder %v3222, 8.507059e+37
          %v3224 = vand.u32 %v3038, 2147483648
          %v3225 = vor.u32 1.1754944e-38, %v3224
          %v3226 = vsel %vm3223, %v3225, %v3221
          %v3227 = vrcp.pop %v3039
          %v3228 = vmul.f32 %v3039, %v3227
          %v3229 = vsub.f32 1.0, %v3228
          %v3230 = vmul.f32 %v3227, %v3229
          %v3231 = vadd.f32 %v3227, %v3230
          %vm3232 = vweird.f32 %v3039
          %vm3233 = vweird.f32 %v3227
          %vm3234 = vmor %vm3232, %vm3233
          %v3235 = vsel %vm3234, %v3227, %v3231
          %v3236 = vand.u32 2147483647, %v3039
          %vm3237 = vcmp.eq.f32.partialorder %v3236, 8.507059e+37
          %v3238 = vand.u32 %v3039, 2147483648
          %v3239 = vor.u32 1.1754944e-38, %v3238
          %v3240 = vsel %vm3237, %v3239, %v3235
          %v3241 = vrcp.pop %v3040
          %v3242 = vmul.f32 %v3040, %v3241
          %v3243 = vsub.f32 1.0, %v3242
          %v3244 = vmul.f32 %v3241, %v3243
          %v3245 = vadd.f32 %v3241, %v3244
          %vm3246 = vweird.f32 %v3040
          %vm3247 = vweird.f32 %v3241
          %vm3248 = vmor %vm3246, %vm3247
          %v3249 = vsel %vm3248, %v3241, %v3245
          %v3250 = vand.u32 2147483647, %v3040
          %vm3251 = vcmp.eq.f32.partialorder %v3250, 8.507059e+37
          %v3252 = vand.u32 %v3040, 2147483648
          %v3253 = vor.u32 1.1754944e-38, %v3252
          %v3254 = vsel %vm3251, %v3253, %v3249
          %v3255 = vrcp.pop %v3041
          %v3256 = vmul.f32 %v3041, %v3255
          %v3257 = vsub.f32 1.0, %v3256
          %v3258 = vmul.f32 %v3255, %v3257
          %v3259 = vadd.f32 %v3255, %v3258
          %vm3260 = vweird.f32 %v3041
          %vm3261 = vweird.f32 %v3255
          %vm3262 = vmor %vm3260, %vm3261
          %v3263 = vsel %vm3262, %v3255, %v3259
          %v3264 = vand.u32 2147483647, %v3041
          %vm3265 = vcmp.eq.f32.partialorder %v3264, 8.507059e+37
          %v3266 = vand.u32 %v3041, 2147483648
          %v3267 = vor.u32 1.1754944e-38, %v3266
          %v3268 = vsel %vm3265, %v3267, %v3263
          %v3269 = vrcp.pop %v3042
          %v3270 = vmul.f32 %v3042, %v3269
          %v3271 = vsub.f32 1.0, %v3270
          %v3272 = vmul.f32 %v3269, %v3271
          %v3273 = vadd.f32 %v3269, %v3272
          %vm3274 = vweird.f32 %v3042
          %vm3275 = vweird.f32 %v3269
          %vm3276 = vmor %vm3274, %vm3275
          %v3277 = vsel %vm3276, %v3269, %v3273
          %v3278 = vand.u32 2147483647, %v3042
          %vm3279 = vcmp.eq.f32.partialorder %v3278, 8.507059e+37
          %v3280 = vand.u32 %v3042, 2147483648
          %v3281 = vor.u32 1.1754944e-38, %v3280
          %v3282 = vsel %vm3279, %v3281, %v3277
          %v3283 = vrcp.pop %v3043
          %v3284 = vmul.f32 %v3043, %v3283
          %v3285 = vsub.f32 1.0, %v3284
          %v3286 = vmul.f32 %v3283, %v3285
          %v3287 = vadd.f32 %v3283, %v3286
          %vm3288 = vweird.f32 %v3043
          %vm3289 = vweird.f32 %v3283
          %vm3290 = vmor %vm3288, %vm3289
          %v3291 = vsel %vm3290, %v3283, %v3287
          %v3292 = vand.u32 2147483647, %v3043
          %vm3293 = vcmp.eq.f32.partialorder %v3292, 8.507059e+37
          %v3294 = vand.u32 %v3043, 2147483648
          %v3295 = vor.u32 1.1754944e-38, %v3294
          %v3296 = vsel %vm3293, %v3295, %v3291
          %v3297 = vrcp.pop %v3044
          %v3298 = vmul.f32 %v3044, %v3297
          %v3299 = vsub.f32 1.0, %v3298
          %v3300 = vmul.f32 %v3297, %v3299
          %v3301 = vadd.f32 %v3297, %v3300
          %vm3302 = vweird.f32 %v3044
          %vm3303 = vweird.f32 %v3297
          %vm3304 = vmor %vm3302, %vm3303
          %v3305 = vsel %vm3304, %v3297, %v3301
          %v3306 = vand.u32 2147483647, %v3044
          %vm3307 = vcmp.eq.f32.partialorder %v3306, 8.507059e+37
          %v3308 = vand.u32 %v3044, 2147483648
          %v3309 = vor.u32 1.1754944e-38, %v3308
          %v3310 = vsel %vm3307, %v3309, %v3305
          %v3311 = vrcp.pop %v3045
          %v3312 = vmul.f32 %v3045, %v3311
          %v3313 = vsub.f32 1.0, %v3312
          %v3314 = vmul.f32 %v3311, %v3313
          %v3315 = vadd.f32 %v3311, %v3314
          %vm3316 = vweird.f32 %v3045
          %vm3317 = vweird.f32 %v3311
          %vm3318 = vmor %vm3316, %vm3317
          %v3319 = vsel %vm3318, %v3311, %v3315
          %v3320 = vand.u32 2147483647, %v3045
          %vm3321 = vcmp.eq.f32.partialorder %v3320, 8.507059e+37
          %v3322 = vand.u32 %v3045, 2147483648
          %v3323 = vor.u32 1.1754944e-38, %v3322
          %v3324 = vsel %vm3321, %v3323, %v3319
          %v3325 = vrcp.pop %v3046
          %v3326 = vmul.f32 %v3046, %v3325
          %v3327 = vsub.f32 1.0, %v3326
          %v3328 = vmul.f32 %v3325, %v3327
          %v3329 = vadd.f32 %v3325, %v3328
          %vm3330 = vweird.f32 %v3046
          %vm3331 = vweird.f32 %v3325
          %vm3332 = vmor %vm3330, %vm3331
          %v3333 = vsel %vm3332, %v3325, %v3329
          %v3334 = vand.u32 2147483647, %v3046
          %vm3335 = vcmp.eq.f32.partialorder %v3334, 8.507059e+37
          %v3336 = vand.u32 %v3046, 2147483648
          %v3337 = vor.u32 1.1754944e-38, %v3336
          %v3338 = vsel %vm3335, %v3337, %v3333
          %v3339 = vrcp.pop %v3047
          %v3340 = vmul.f32 %v3047, %v3339
          %v3341 = vsub.f32 1.0, %v3340
          %v3342 = vmul.f32 %v3339, %v3341
          %v3343 = vadd.f32 %v3339, %v3342
          %vm3344 = vweird.f32 %v3047
          %vm3345 = vweird.f32 %v3339
          %vm3346 = vmor %vm3344, %vm3345
          %v3347 = vsel %vm3346, %v3339, %v3343
          %v3348 = vand.u32 2147483647, %v3047
          %vm3349 = vcmp.eq.f32.partialorder %v3348, 8.507059e+37
          %v3350 = vand.u32 %v3047, 2147483648
          %v3351 = vor.u32 1.1754944e-38, %v3350
          %v3352 = vsel %vm3349, %v3351, %v3347
          %v3353 = vrcp.pop %v3048
          %v3354 = vmul.f32 %v3048, %v3353
          %v3355 = vsub.f32 1.0, %v3354
          %v3356 = vmul.f32 %v3353, %v3355
          %v3357 = vadd.f32 %v3353, %v3356
          %vm3358 = vweird.f32 %v3048
          %vm3359 = vweird.f32 %v3353
          %vm3360 = vmor %vm3358, %vm3359
          %v3361 = vsel %vm3360, %v3353, %v3357
          %v3362 = vand.u32 2147483647, %v3048
          %vm3363 = vcmp.eq.f32.partialorder %v3362, 8.507059e+37
          %v3364 = vand.u32 %v3048, 2147483648
          %v3365 = vor.u32 1.1754944e-38, %v3364
          %v3366 = vsel %vm3363, %v3365, %v3361
          %v3367 = vrcp.pop %v3049
          %v3368 = vmul.f32 %v3049, %v3367
          %v3369 = vsub.f32 1.0, %v3368
          %v3370 = vmul.f32 %v3367, %v3369
          %v3371 = vadd.f32 %v3367, %v3370
          %vm3372 = vweird.f32 %v3049
          %vm3373 = vweird.f32 %v3367
          %vm3374 = vmor %vm3372, %vm3373
          %v3375 = vsel %vm3374, %v3367, %v3371
          %v3376 = vand.u32 2147483647, %v3049
          %vm3377 = vcmp.eq.f32.partialorder %v3376, 8.507059e+37
          %v3378 = vand.u32 %v3049, 2147483648
          %v3379 = vor.u32 1.1754944e-38, %v3378
          %v3380 = vsel %vm3377, %v3379, %v3375
          %v3381 = vrcp.pop %v3050
          %v3382 = vmul.f32 %v3050, %v3381
          %v3383 = vsub.f32 1.0, %v3382
          %v3384 = vmul.f32 %v3381, %v3383
          %v3385 = vadd.f32 %v3381, %v3384
          %vm3386 = vweird.f32 %v3050
          %vm3387 = vweird.f32 %v3381
          %vm3388 = vmor %vm3386, %vm3387
          %v3389 = vsel %vm3388, %v3381, %v3385
          %v3390 = vand.u32 2147483647, %v3050
          %vm3391 = vcmp.eq.f32.partialorder %v3390, 8.507059e+37
          %v3392 = vand.u32 %v3050, 2147483648
          %v3393 = vor.u32 1.1754944e-38, %v3392
          %v3394 = vsel %vm3391, %v3393, %v3389
          %v3395 = vrcp.pop %v3051
          %v3396 = vmul.f32 %v3051, %v3395
          %v3397 = vsub.f32 1.0, %v3396
          %v3398 = vmul.f32 %v3395, %v3397
          %v3399 = vadd.f32 %v3395, %v3398
          %vm3400 = vweird.f32 %v3051
          %vm3401 = vweird.f32 %v3395
          %vm3402 = vmor %vm3400, %vm3401
          %v3403 = vsel %vm3402, %v3395, %v3399
          %v3404 = vand.u32 2147483647, %v3051
          %vm3405 = vcmp.eq.f32.partialorder %v3404, 8.507059e+37
          %v3406 = vand.u32 %v3051, 2147483648
          %v3407 = vor.u32 1.1754944e-38, %v3406
          %v3408 = vsel %vm3405, %v3407, %v3403
          %v3409 = vrcp.pop %v3052
          %v3410 = vmul.f32 %v3052, %v3409
          %v3411 = vsub.f32 1.0, %v3410
          %v3412 = vmul.f32 %v3409, %v3411
          %v3413 = vadd.f32 %v3409, %v3412
          %vm3414 = vweird.f32 %v3052
          %vm3415 = vweird.f32 %v3409
          %vm3416 = vmor %vm3414, %vm3415
          %v3417 = vsel %vm3416, %v3409, %v3413
          %v3418 = vand.u32 2147483647, %v3052
          %vm3419 = vcmp.eq.f32.partialorder %v3418, 8.507059e+37
          %v3420 = vand.u32 %v3052, 2147483648
          %v3421 = vor.u32 1.1754944e-38, %v3420
          %v3422 = vsel %vm3419, %v3421, %v3417
          %v3423 = vrcp.pop %v3053
          %v3424 = vmul.f32 %v3053, %v3423
          %v3425 = vsub.f32 1.0, %v3424
          %v3426 = vmul.f32 %v3423, %v3425
          %v3427 = vadd.f32 %v3423, %v3426
          %vm3428 = vweird.f32 %v3053
          %vm3429 = vweird.f32 %v3423
          %vm3430 = vmor %vm3428, %vm3429
          %v3431 = vsel %vm3430, %v3423, %v3427
          %v3432 = vand.u32 2147483647, %v3053
          %vm3433 = vcmp.eq.f32.partialorder %v3432, 8.507059e+37
          %v3434 = vand.u32 %v3053, 2147483648
          %v3435 = vor.u32 1.1754944e-38, %v3434
          %v3436 = vsel %vm3433, %v3435, %v3431
          %v3437 = vrcp.pop %v3054
          %v3438 = vmul.f32 %v3054, %v3437
          %v3439 = vsub.f32 1.0, %v3438
          %v3440 = vmul.f32 %v3437, %v3439
          %v3441 = vadd.f32 %v3437, %v3440
          %vm3442 = vweird.f32 %v3054
          %vm3443 = vweird.f32 %v3437
          %vm3444 = vmor %vm3442, %vm3443
          %v3445 = vsel %vm3444, %v3437, %v3441
          %v3446 = vand.u32 2147483647, %v3054
          %vm3447 = vcmp.eq.f32.partialorder %v3446, 8.507059e+37
          %v3448 = vand.u32 %v3054, 2147483648
          %v3449 = vor.u32 1.1754944e-38, %v3448
          %v3450 = vsel %vm3447, %v3449, %v3445
          %v3451 = vrcp.pop %v3055
          %v3452 = vmul.f32 %v3055, %v3451
          %v3453 = vsub.f32 1.0, %v3452
          %v3454 = vmul.f32 %v3451, %v3453
          %v3455 = vadd.f32 %v3451, %v3454
          %vm3456 = vweird.f32 %v3055
          %vm3457 = vweird.f32 %v3451
          %vm3458 = vmor %vm3456, %vm3457
          %v3459 = vsel %vm3458, %v3451, %v3455
          %v3460 = vand.u32 2147483647, %v3055
          %vm3461 = vcmp.eq.f32.partialorder %v3460, 8.507059e+37
          %v3462 = vand.u32 %v3055, 2147483648
          %v3463 = vor.u32 1.1754944e-38, %v3462
          %v3464 = vsel %vm3461, %v3463, %v3459
          %v3465 = vrcp.pop %v3056
          %v3466 = vmul.f32 %v3056, %v3465
          %v3467 = vsub.f32 1.0, %v3466
          %v3468 = vmul.f32 %v3465, %v3467
          %v3469 = vadd.f32 %v3465, %v3468
          %vm3470 = vweird.f32 %v3056
          %vm3471 = vweird.f32 %v3465
          %vm3472 = vmor %vm3470, %vm3471
          %v3473 = vsel %vm3472, %v3465, %v3469
          %v3474 = vand.u32 2147483647, %v3056
          %vm3475 = vcmp.eq.f32.partialorder %v3474, 8.507059e+37
          %v3476 = vand.u32 %v3056, 2147483648
          %v3477 = vor.u32 1.1754944e-38, %v3476
          %v3478 = vsel %vm3475, %v3477, %v3473
          %v3479 = vrcp.pop %v3057
          %v3480 = vmul.f32 %v3057, %v3479
          %v3481 = vsub.f32 1.0, %v3480
          %v3482 = vmul.f32 %v3479, %v3481
          %v3483 = vadd.f32 %v3479, %v3482
          %vm3484 = vweird.f32 %v3057
          %vm3485 = vweird.f32 %v3479
          %vm3486 = vmor %vm3484, %vm3485
          %v3487 = vsel %vm3486, %v3479, %v3483
          %v3488 = vand.u32 2147483647, %v3057
          %vm3489 = vcmp.eq.f32.partialorder %v3488, 8.507059e+37
          %v3490 = vand.u32 %v3057, 2147483648
          %v3491 = vor.u32 1.1754944e-38, %v3490
          %v3492 = vsel %vm3489, %v3491, %v3487
          %v3493 = vrcp.pop %v3058
          %v3494 = vmul.f32 %v3058, %v3493
          %v3495 = vsub.f32 1.0, %v3494
          %v3496 = vmul.f32 %v3493, %v3495
          %v3497 = vadd.f32 %v3493, %v3496
          %vm3498 = vweird.f32 %v3058
          %vm3499 = vweird.f32 %v3493
          %vm3500 = vmor %vm3498, %vm3499
          %v3501 = vsel %vm3500, %v3493, %v3497
          %v3502 = vand.u32 2147483647, %v3058
          %vm3503 = vcmp.eq.f32.partialorder %v3502, 8.507059e+37
          %v3504 = vand.u32 %v3058, 2147483648
          %v3505 = vor.u32 1.1754944e-38, %v3504
          %v3506 = vsel %vm3503, %v3505, %v3501
          %v3507 = vld [vmem:[#allocation5] sm:$0xff]
          %v3508 = vld [vmem:[#allocation5 + $0x8] sm:$0xff]
          %v3509 = vld [vmem:[#allocation5 + $0x10] sm:$0xff]
          %v3510 = vld [vmem:[#allocation5 + $0x18] sm:$0xff]
          %v3511 = vld [vmem:[#allocation5 + $0x20] sm:$0xff]
          %v3512 = vld [vmem:[#allocation5 + $0x28] sm:$0xff]
          %v3513 = vld [vmem:[#allocation5 + $0x30] sm:$0xff]
          %v3514 = vld [vmem:[#allocation5 + $0x38] sm:$0xff]
          %v3515 = vld [vmem:[#allocation5 + $0x40] sm:$0xff]
          %v3516 = vld [vmem:[#allocation5 + $0x48] sm:$0xff]
          %v3517 = vld [vmem:[#allocation5 + $0x50] sm:$0xff]
          %v3518 = vld [vmem:[#allocation5 + $0x58] sm:$0xff]
          %v3519 = vld [vmem:[#allocation5 + $0x60] sm:$0xff]
          %v3520 = vld [vmem:[#allocation5 + $0x68] sm:$0xff]
          %v3521 = vld [vmem:[#allocation5 + $0x70] sm:$0xff]
          %v3522 = vld [vmem:[#allocation5 + $0x78] sm:$0xff]
          %v3523 = vld [vmem:[#allocation5 + $0x80] sm:$0xff]
          %v3524 = vld [vmem:[#allocation5 + $0x88] sm:$0xff]
          %v3525 = vld [vmem:[#allocation5 + $0x90] sm:$0xff]
          %v3526 = vld [vmem:[#allocation5 + $0x98] sm:$0xff]
          %v3527 = vld [vmem:[#allocation5 + $0xa0] sm:$0xff]
          %v3528 = vld [vmem:[#allocation5 + $0xa8] sm:$0xff]
          %v3529 = vld [vmem:[#allocation5 + $0xb0] sm:$0xff]
          %v3530 = vld [vmem:[#allocation5 + $0xb8] sm:$0xff]
          %v3531 = vld [vmem:[#allocation5 + $0xc0] sm:$0xff]
          %v3532 = vld [vmem:[#allocation5 + $0xc8] sm:$0xff]
          %v3533 = vld [vmem:[#allocation5 + $0xd0] sm:$0xff]
          %v3534 = vld [vmem:[#allocation5 + $0xd8] sm:$0xff]
          %v3535 = vld [vmem:[#allocation5 + $0xe0] sm:$0xff]
          %v3536 = vld [vmem:[#allocation5 + $0xe8] sm:$0xff]
          %v3537 = vld [vmem:[#allocation5 + $0xf0] sm:$0xff]
          %v3538 = vld [vmem:[#allocation5 + $0xf8] sm:$0xff]
          %3540 = vset.pattern.permute.xlu0 0
          %3541 = vperm.xlu0 %3540, %v3072
          %v3542 = vpop.permute.xlu0 %3541
          %3545 = vset.pattern.permute.xlu0 0
          %3546 = vperm.xlu0 %3545, %v3086
          %v3547 = vpop.permute.xlu0 %3546
          %3550 = vset.pattern.permute.xlu0 0
          %3551 = vperm.xlu0 %3550, %v3100
          %v3552 = vpop.permute.xlu0 %3551
          %3555 = vset.pattern.permute.xlu0 0
          %3556 = vperm.xlu0 %3555, %v3114
          %v3557 = vpop.permute.xlu0 %3556
          %3560 = vset.pattern.permute.xlu0 0
          %3561 = vperm.xlu0 %3560, %v3128
          %v3562 = vpop.permute.xlu0 %3561
          %3565 = vset.pattern.permute.xlu0 0
          %3566 = vperm.xlu0 %3565, %v3142
          %v3567 = vpop.permute.xlu0 %3566
          %3570 = vset.pattern.permute.xlu0 0
          %3571 = vperm.xlu0 %3570, %v3156
          %v3572 = vpop.permute.xlu0 %3571
          %3575 = vset.pattern.permute.xlu0 0
          %3576 = vperm.xlu0 %3575, %v3170
          %v3577 = vpop.permute.xlu0 %3576
          %3580 = vset.pattern.permute.xlu0 0
          %3581 = vperm.xlu0 %3580, %v3184
          %v3582 = vpop.permute.xlu0 %3581
          %3585 = vset.pattern.permute.xlu0 0
          %3586 = vperm.xlu0 %3585, %v3198
          %v3587 = vpop.permute.xlu0 %3586
          %3590 = vset.pattern.permute.xlu0 0
          %3591 = vperm.xlu0 %3590, %v3212
          %v3592 = vpop.permute.xlu0 %3591
          %3595 = vset.pattern.permute.xlu0 0
          %3596 = vperm.xlu0 %3595, %v3226
          %v3597 = vpop.permute.xlu0 %3596
          %3600 = vset.pattern.permute.xlu0 0
          %3601 = vperm.xlu0 %3600, %v3240
          %v3602 = vpop.permute.xlu0 %3601
          %3605 = vset.pattern.permute.xlu0 0
          %3606 = vperm.xlu0 %3605, %v3254
          %v3607 = vpop.permute.xlu0 %3606
          %3610 = vset.pattern.permute.xlu0 0
          %3611 = vperm.xlu0 %3610, %v3268
          %v3612 = vpop.permute.xlu0 %3611
          %3615 = vset.pattern.permute.xlu0 0
          %3616 = vperm.xlu0 %3615, %v3282
          %v3617 = vpop.permute.xlu0 %3616
          %3620 = vset.pattern.permute.xlu0 0
          %3621 = vperm.xlu0 %3620, %v3296
          %v3622 = vpop.permute.xlu0 %3621
          %3625 = vset.pattern.permute.xlu0 0
          %3626 = vperm.xlu0 %3625, %v3310
          %v3627 = vpop.permute.xlu0 %3626
          %3630 = vset.pattern.permute.xlu0 0
          %3631 = vperm.xlu0 %3630, %v3324
          %v3632 = vpop.permute.xlu0 %3631
          %3635 = vset.pattern.permute.xlu0 0
          %3636 = vperm.xlu0 %3635, %v3338
          %v3637 = vpop.permute.xlu0 %3636
          %3640 = vset.pattern.permute.xlu0 0
          %3641 = vperm.xlu0 %3640, %v3352
          %v3642 = vpop.permute.xlu0 %3641
          %3645 = vset.pattern.permute.xlu0 0
          %3646 = vperm.xlu0 %3645, %v3366
          %v3647 = vpop.permute.xlu0 %3646
          %3650 = vset.pattern.permute.xlu0 0
          %3651 = vperm.xlu0 %3650, %v3380
          %v3652 = vpop.permute.xlu0 %3651
          %3655 = vset.pattern.permute.xlu0 0
          %3656 = vperm.xlu0 %3655, %v3394
          %v3657 = vpop.permute.xlu0 %3656
          %3660 = vset.pattern.permute.xlu0 0
          %3661 = vperm.xlu0 %3660, %v3408
          %v3662 = vpop.permute.xlu0 %3661
          %3665 = vset.pattern.permute.xlu0 0
          %3666 = vperm.xlu0 %3665, %v3422
          %v3667 = vpop.permute.xlu0 %3666
          %3670 = vset.pattern.permute.xlu0 0
          %3671 = vperm.xlu0 %3670, %v3436
          %v3672 = vpop.permute.xlu0 %3671
          %3675 = vset.pattern.permute.xlu0 0
          %3676 = vperm.xlu0 %3675, %v3450
          %v3677 = vpop.permute.xlu0 %3676
          %3680 = vset.pattern.permute.xlu0 0
          %3681 = vperm.xlu0 %3680, %v3464
          %v3682 = vpop.permute.xlu0 %3681
          %3685 = vset.pattern.permute.xlu0 0
          %3686 = vperm.xlu0 %3685, %v3478
          %v3687 = vpop.permute.xlu0 %3686
          %3690 = vset.pattern.permute.xlu0 0
          %3691 = vperm.xlu0 %3690, %v3492
          %v3692 = vpop.permute.xlu0 %3691
          %3695 = vset.pattern.permute.xlu0 0
          %3696 = vperm.xlu0 %3695, %v3506
          %v3697 = vpop.permute.xlu0 %3696
          %v3699 = vmul.f32 %v3507, %v3542
          %v3700 = vmul.f32 %v3508, %v3547
          %v3701 = vmul.f32 %v3509, %v3552
          %v3702 = vmul.f32 %v3510, %v3557
          %v3703 = vmul.f32 %v3511, %v3562
          %v3704 = vmul.f32 %v3512, %v3567
          %v3705 = vmul.f32 %v3513, %v3572
          %v3706 = vmul.f32 %v3514, %v3577
          %v3707 = vmul.f32 %v3515, %v3582
          %v3708 = vmul.f32 %v3516, %v3587
          %v3709 = vmul.f32 %v3517, %v3592
          %v3710 = vmul.f32 %v3518, %v3597
          %v3711 = vmul.f32 %v3519, %v3602
          %v3712 = vmul.f32 %v3520, %v3607
          %v3713 = vmul.f32 %v3521, %v3612
          %v3714 = vmul.f32 %v3522, %v3617
          %v3715 = vmul.f32 %v3523, %v3622
          %v3716 = vmul.f32 %v3524, %v3627
          %v3717 = vmul.f32 %v3525, %v3632
          %v3718 = vmul.f32 %v3526, %v3637
          %v3719 = vmul.f32 %v3527, %v3642
          %v3720 = vmul.f32 %v3528, %v3647
          %v3721 = vmul.f32 %v3529, %v3652
          %v3722 = vmul.f32 %v3530, %v3657
          %v3723 = vmul.f32 %v3531, %v3662
          %v3724 = vmul.f32 %v3532, %v3667
          %v3725 = vmul.f32 %v3533, %v3672
          %v3726 = vmul.f32 %v3534, %v3677
          %v3727 = vmul.f32 %v3535, %v3682
          %v3728 = vmul.f32 %v3536, %v3687
          %v3729 = vmul.f32 %v3537, %v3692
          %v3730 = vmul.f32 %v3538, %v3697
          %3731 = vst.msk [vmem:[#allocation6] sm:$0xff] %vm1116, %v3699
          %3732 = vst.msk [vmem:[#allocation6 + $0x8] sm:$0xff] %vm1116, %v3700
          %3733 = vst.msk [vmem:[#allocation6 + $0x10] sm:$0xff] %vm1116, %v3701
          %3734 = vst.msk [vmem:[#allocation6 + $0x18] sm:$0xff] %vm1116, %v3702
          %3739 = vrot.lane.b32.xlu0 %v3703, 8
          %v3740 = vpop.permute.xlu0 %3739
          %3741 = vrot.lane.b32.xlu0 %v3704, 8
          %v3742 = vpop.permute.xlu0 %3741
          %3743 = vrot.lane.b32.xlu0 %v3705, 8
          %v3744 = vpop.permute.xlu0 %3743
          %3745 = vrot.lane.b32.xlu0 %v3706, 8
          %v3746 = vpop.permute.xlu0 %3745
          %vm3751 = vcmask 130112
          %3752 = vst.msk [vmem:[#allocation6] sm:$0xff] %vm3751, %v3740
          %3753 = vst.msk [vmem:[#allocation6 + $0x8] sm:$0xff] %vm3751, %v3742
          %3754 = vst.msk [vmem:[#allocation6 + $0x10] sm:$0xff] %vm3751, %v3744
          %3755 = vst.msk [vmem:[#allocation6 + $0x18] sm:$0xff] %vm3751, %v3746
          %3760 = vrot.lane.b32.xlu0 %v3707, 16
          %v3761 = vpop.permute.xlu0 %3760
          %3762 = vrot.lane.b32.xlu0 %v3708, 16
          %v3763 = vpop.permute.xlu0 %3762
          %3764 = vrot.lane.b32.xlu0 %v3709, 16
          %v3765 = vpop.permute.xlu0 %3764
          %3766 = vrot.lane.b32.xlu0 %v3710, 16
          %v3767 = vpop.permute.xlu0 %3766
          %vm3772 = vcmask 195712
          %3773 = vst.msk [vmem:[#allocation6] sm:$0xff] %vm3772, %v3761
          %3774 = vst.msk [vmem:[#allocation6 + $0x8] sm:$0xff] %vm3772, %v3763
          %3775 = vst.msk [vmem:[#allocation6 + $0x10] sm:$0xff] %vm3772, %v3765
          %3776 = vst.msk [vmem:[#allocation6 + $0x18] sm:$0xff] %vm3772, %v3767
          %3781 = vrot.lane.b32.xlu0 %v3711, 24
          %v3782 = vpop.permute.xlu0 %3781
          %3783 = vrot.lane.b32.xlu0 %v3712, 24
          %v3784 = vpop.permute.xlu0 %3783
          %3785 = vrot.lane.b32.xlu0 %v3713, 24
          %v3786 = vpop.permute.xlu0 %3785
          %3787 = vrot.lane.b32.xlu0 %v3714, 24
          %v3788 = vpop.permute.xlu0 %3787
          %vm3793 = vcmask 261312
          %3794 = vst.msk [vmem:[#allocation6] sm:$0xff] %vm3793, %v3782
          %3795 = vst.msk [vmem:[#allocation6 + $0x8] sm:$0xff] %vm3793, %v3784
          %3796 = vst.msk [vmem:[#allocation6 + $0x10] sm:$0xff] %vm3793, %v3786
          %3797 = vst.msk [vmem:[#allocation6 + $0x18] sm:$0xff] %vm3793, %v3788
          %3802 = vrot.lane.b32.xlu0 %v3715, 32
          %v3803 = vpop.permute.xlu0 %3802
          %3804 = vrot.lane.b32.xlu0 %v3716, 32
          %v3805 = vpop.permute.xlu0 %3804
          %3806 = vrot.lane.b32.xlu0 %v3717, 32
          %v3807 = vpop.permute.xlu0 %3806
          %3808 = vrot.lane.b32.xlu0 %v3718, 32
          %v3809 = vpop.permute.xlu0 %3808
          %vm3814 = vcmask 326912
          %3815 = vst.msk [vmem:[#allocation6] sm:$0xff] %vm3814, %v3803
          %3816 = vst.msk [vmem:[#allocation6 + $0x8] sm:$0xff] %vm3814, %v3805
          %3817 = vst.msk [vmem:[#allocation6 + $0x10] sm:$0xff] %vm3814, %v3807
          %3818 = vst.msk [vmem:[#allocation6 + $0x18] sm:$0xff] %vm3814, %v3809
          %3823 = vrot.lane.b32.xlu0 %v3719, 40
          %v3824 = vpop.permute.xlu0 %3823
          %3825 = vrot.lane.b32.xlu0 %v3720, 40
          %v3826 = vpop.permute.xlu0 %3825
          %3827 = vrot.lane.b32.xlu0 %v3721, 40
          %v3828 = vpop.permute.xlu0 %3827
          %3829 = vrot.lane.b32.xlu0 %v3722, 40
          %v3830 = vpop.permute.xlu0 %3829
          %vm3835 = vcmask 392512
          %3836 = vst.msk [vmem:[#allocation6] sm:$0xff] %vm3835, %v3824
          %3837 = vst.msk [vmem:[#allocation6 + $0x8] sm:$0xff] %vm3835, %v3826
          %3838 = vst.msk [vmem:[#allocation6 + $0x10] sm:$0xff] %vm3835, %v3828
          %3839 = vst.msk [vmem:[#allocation6 + $0x18] sm:$0xff] %vm3835, %v3830
          %3844 = vrot.lane.b32.xlu0 %v3723, 48
          %v3845 = vpop.permute.xlu0 %3844
          %3846 = vrot.lane.b32.xlu0 %v3724, 48
          %v3847 = vpop.permute.xlu0 %3846
          %3848 = vrot.lane.b32.xlu0 %v3725, 48
          %v3849 = vpop.permute.xlu0 %3848
          %3850 = vrot.lane.b32.xlu0 %v3726, 48
          %v3851 = vpop.permute.xlu0 %3850
          %vm3856 = vcmask 458112
          %3857 = vst.msk [vmem:[#allocation6] sm:$0xff] %vm3856, %v3845
          %3858 = vst.msk [vmem:[#allocation6 + $0x8] sm:$0xff] %vm3856, %v3847
          %3859 = vst.msk [vmem:[#allocation6 + $0x10] sm:$0xff] %vm3856, %v3849
          %3860 = vst.msk [vmem:[#allocation6 + $0x18] sm:$0xff] %vm3856, %v3851
          %3865 = vrot.lane.b32.xlu0 %v3727, 56
          %v3866 = vpop.permute.xlu0 %3865
          %3867 = vrot.lane.b32.xlu0 %v3728, 56
          %v3868 = vpop.permute.xlu0 %3867
          %3869 = vrot.lane.b32.xlu0 %v3729, 56
          %v3870 = vpop.permute.xlu0 %3869
          %3871 = vrot.lane.b32.xlu0 %v3730, 56
          %v3872 = vpop.permute.xlu0 %3871
          %vm3877 = vcmask 523712
          %3878 = vst.msk [vmem:[#allocation6] sm:$0xff] %vm3877, %v3866
          %3879 = vst.msk [vmem:[#allocation6 + $0x8] sm:$0xff] %vm3877, %v3868
          %3880 = vst.msk [vmem:[#allocation6 + $0x10] sm:$0xff] %vm3877, %v3870
          %3881 = vst.msk [vmem:[#allocation6 + $0x18] sm:$0xff] %vm3877, %v3872
          %v3882 = vld [vmem:[#allocation6] sm:$0xff]
          %v3883 = vld [vmem:[#allocation6 + $0x8] sm:$0xff]
          %v3884 = vld [vmem:[#allocation6 + $0x10] sm:$0xff]
          %v3885 = vld [vmem:[#allocation6 + $0x18] sm:$0xff]
          %v3886 = vld [vmem:[%s4] sm:$0xff]
          %v3887 = vld [vmem:[%s4 + $0x8] sm:$0xff]
          %v3888 = vld [vmem:[%s4 + $0x10] sm:$0xff]
          %v3889 = vld [vmem:[%s4 + $0x18] sm:$0xff]
          %v3890 = vld [vmem:[%s4 + $0x20] sm:$0xff]
          %v3891 = vld [vmem:[%s4 + $0x28] sm:$0xff]
          %v3892 = vld [vmem:[%s4 + $0x30] sm:$0xff]
          %v3893 = vld [vmem:[%s4 + $0x38] sm:$0xff]
          %v3894 = vld [vmem:[%s5] sm:$0x1]
          %v3896 = vperm.slane %v3894, 0
          %v3899 = vsel %vm839, %v3882, 0
          %v3902 = vsel %vm839, %v3883, 0
          %v3905 = vsel %vm839, %v3884, 0
          %v3908 = vsel %vm839, %v3885, 0
          %3910 = vmatpush.msra.mxu0 0.0
          %3911 = vmatpush.msra.mxu0 0.0
          %3912 = vmatpush.msra.mxu0 0.0
          %3913 = vmatpush.msra.mxu0 0.0
          %3914 = vmatpush.msra.mxu0 0.0
          %3915 = vmatpush.msra.mxu0 0.0
          %3916 = vmatpush.msra.mxu0 0.0
          %3917 = vmatpush.msra.mxu0 0.0
          %3918 = vmatpush.msra.mxu0 %v3893
          %3919 = vmatpush.msra.mxu0 %v3892
          %3920 = vmatpush.msra.mxu0 %v3891
          %3921 = vmatpush.msra.mxu0 %v3890
          %3922 = vmatpush.msra.mxu0 %v3889
          %3923 = vmatpush.msra.mxu0 %v3888
          %3924 = vmatpush.msra.mxu0 %v3887
          %3925 = vmatpush.msra.mxu0 %v3886
          %3926 = vmatmul.f32.gmra.mxu0 %v3899
          %v3927 = vpop.f32.mrf.mxu0
          %v3928 = vadd.f32 %v3896, %v3927
          %3929 = vmatmul.f32.gmra.mxu0 %v3902
          %v3930 = vpop.f32.mrf.mxu0
          %v3931 = vadd.f32 %v3896, %v3930
          %3932 = vmatmul.f32.gmra.mxu0 %v3905
          %v3933 = vpop.f32.mrf.mxu0
          %v3934 = vadd.f32 %v3896, %v3933
          %3935 = vmatmul.f32.gmra.mxu0 %v3908
          %v3936 = vpop.f32.mrf.mxu0
          %v3937 = vadd.f32 %v3896, %v3936
          %3938 = vdwg.mxu0
          %3939 = vst.msk [vmem:[%s302] sm:$0xff] %vm839, %v3928
          %3940 = vst.msk [vmem:[%s302 + $0x8] sm:$0xff] %vm839, %v3931
          %3941 = vst.msk [vmem:[%s302 + $0x10] sm:$0xff] %vm839, %v3934
          %3942 = vst.msk [vmem:[%s302 + $0x18] sm:$0xff] %vm839, %v3937
        $region52: #{tpu_custom_call.1} parent=43 // pred_fallthru
          _
        %s3943 = sand.u32 %s189, 1
        %s3944 = scalar_lea.sflag [#allocation8], %s3943
        %s3945 = sand.u32 %s189, 1
        %s3946 = smul.addr %s3945, 32
        %s3947 = scalar_lea.vmem [#allocation7], %s3946
        // Predicated region
        $region53: #{tpu_custom_call.1} parent=43 // pred_check
          %p3948 = pneg %p199
        $region54: #{tpu_custom_call.1} parent=43 // pred_check_branch
          %3950 = sbr.rel (%p3948) target = $region56
        $region55: #{tpu_custom_call.1} parent=43 // pred_region
          %s3951 = smul.u32 4, %s26
          %3953 = vsyncadd %s3944, 0
          %s3954 = smul.addr %s25, 8
          %s3955 = sadd.s32 %s3951, %s3954
          %s3956 = smul.addr %s3955, 8
          %s3957 = scalar_lea.hbm %s6, %s3956
          %s3958 = sshll.u32 %s3947, 4
          %s3959 = int_to_ptr.vmem [resolvable:$true] %s3958
          %s3960 = sshll.u32 %s3957, 4
          %s3961 = int_to_ptr.hbm [resolvable:$true] %s3960
          %3966 = dma.vmem_to_hbm [thread:$0]  %s3959, 512, %s3961, %s3944, 128, 128, 8
        $region56: #{tpu_custom_call.1} parent=43 // pred_fallthru
          _
      $region44: #{tpu_custom_call.1} parent=5 // pred_fallthru
        _
      %p3967 = scmp.le.s32.totalorder 2, %s15
      // Predicated region
      $region57: #{tpu_custom_call.1} parent=5 // pred_check
        %p3968 = pneg %p3967
      $region58: #{tpu_custom_call.1} parent=5 // pred_check_branch
        %3970 = sbr.rel (%p3968) target = $region60
      $region59: #{tpu_custom_call.1} parent=5 // pred_region
        %s3971 = ssub.s32 %s15, 2
        // Predicated region
        $region61: #{tpu_custom_call.1} parent=59 // pred_check
          %p3972 = pneg %p205
        $region62: #{tpu_custom_call.1} parent=59 // pred_check_branch
          %3974 = sbr.rel (%p3972) target = $region64
        $region63: #{tpu_custom_call.1} parent=59 // pred_region
          %s3975 = sand.u32 %s190, 1
          %s3976 = scalar_lea.sflag [#allocation8], %s3975
          %s3977 = sand.u32 %s190, 1
          %s3978 = smul.addr %s3977, 32
          %s3979 = scalar_lea.vmem [#allocation7], %s3978
          %3981 = dma.done %s3976, 512
        $region64: #{tpu_custom_call.1} parent=59 // pred_fallthru
          _
      $region60: #{tpu_custom_call.1} parent=5 // pred_fallthru
        _
    $region6: #{tpu_custom_call.1} parent=1 // loop_footer
      %s19 = sadd.s32 1, %s15
    $region7: #{tpu_custom_call.1} parent=1 // loop_footer_branch
      %14 = sbr.rel target = $region3
    $region8: #{tpu_custom_call.1} parent=1 // loop_exit
      _
    %3982 = vsyncpa [#allocation8], 1
    %s3983 = scalar_lea.sflag [#allocation8], 1
    %3984 = vsyncpa %s3983, 1

</llo_original>
